<compile_context>
chip_gen: v7x
topology: tpu7x:2x2x1
jax: 0.10.0
libtpu: 0.0.40
codegen_flags: <defaults>
</compile_context>

<pallas_src>
import functools

import numpy as np

import jax
import jax.numpy as jnp
from jax.experimental import pallas as pl
from jax.experimental.pallas import tpu as pltpu


def _encoder_kernel(lens_ref, x_ref, noise_ref,
                    pre_w_ref, pre_b_ref,
                    in_wt_ref, in_bt_ref, in_ws_ref, in_bs_ref,
                    rs_wr_ref, rs_br_ref, rs_ws_ref, rs_bs_ref,
                    proj_wm_ref, proj_bm_ref, proj_wl_ref, proj_bl_ref,
                    out_ref,
                    *, hidden, out_ch, kernel_size, dilation_rate, n_layers):
    T = x_ref.shape[1]
    b = pl.program_id(0)
    length = lens_ref[b]

    # ---- sequence mask (built in-kernel from the prefetched length) ----
    row = jax.lax.broadcasted_iota(jnp.int32, (T, 1), 0)          # (T, 1)
    valid = row < length                                          # (T, 1) bool
    mask1 = valid.astype(jnp.float32)                             # (T, 1)
    # hoist the lane broadcasts once (JAX does not CSE broadcast_in_dim)
    mask_h = jnp.broadcast_to(mask1, (T, hidden))                 # (T, H)
    mask_o = jnp.broadcast_to(mask1, (T, out_ch))                 # (T, out)

    # ---- self.pre : Conv1d(in, hidden, 1), then * x_mask ----
    x = x_ref[0]                                                  # (T, Cin) bf16
    h = (jnp.dot(x, pre_w_ref[...], preferred_element_type=jnp.float32)
         + pre_b_ref[...]) * mask_h                               # (T, H) f32

    # ---- self.enc : WN(hidden, kernel_size, dilation_rate, n_layers) ----
    half = (kernel_size - 1) // 2
    output = None
    for i in range(n_layers):
        d = dilation_rate ** i

        # Dilated "same"-padded conv taps via roll (XLU) + static edge masks;
        # masked rows outside [0, T) reproduce zero padding.
        taps = []
        for k in range(kernel_size):
            off = (k - half) * d
            if off == 0:
                taps.append(h)
            else:
                rolled = pltpu.roll(h, shift=(-off) % T, axis=0)  # tap[t]=h[t+off]
                if off > 0:
                    tap_valid = row < (T - off)
                else:
                    tap_valid = row >= (-off)
                taps.append(jnp.where(tap_valid, rolled, 0.0))
        # fused im2col: one matmul per gate half instead of K small matmuls
        im2col = jnp.concatenate(taps, axis=-1).astype(jnp.bfloat16)  # (T, K*H)

        x_t = (jnp.dot(im2col, in_wt_ref[i],
                       preferred_element_type=jnp.float32) + in_bt_ref[i])
        x_s = (jnp.dot(im2col, in_ws_ref[i],
                       preferred_element_type=jnp.float32) + in_bs_ref[i])

        # fused_add_tanh_sigmoid_multiply (g_l == 0 since gin_channels = 0)
        acts = jnp.tanh(x_t) * jax.nn.sigmoid(x_s)                # (T, H) f32
        acts_b = acts.astype(jnp.bfloat16)

        # skip path (last layer's res_skip conv only has H = "skip" channels)
        skip = (jnp.dot(acts_b, rs_ws_ref[i],
                        preferred_element_type=jnp.float32) + rs_bs_ref[i])
        output = skip if output is None else output + skip

        if i < n_layers - 1:
            res = (jnp.dot(acts_b, rs_wr_ref[i],
                           preferred_element_type=jnp.float32) + rs_br_ref[i])
            h = (h + res) * mask_h

    output = output * mask_h                                      # (T, H)

    # ---- self.proj : Conv1d(hidden, 2*out, 1) (split per half), * x_mask ----
    out_b = output.astype(jnp.bfloat16)
    m = (jnp.dot(out_b, proj_wm_ref[...],
                 preferred_element_type=jnp.float32) + proj_bm_ref[...]) * mask_o
    logs = (jnp.dot(out_b, proj_wl_ref[...],
                    preferred_element_type=jnp.float32) + proj_bl_ref[...]) * mask_o

    # z = (m + randn_like(m) * exp(logs)) * mask
    noise = noise_ref[0]                                          # (T, out) f32
    z = (m + noise * jnp.exp(logs)) * mask_o

    # single lane-dense combined store: [z | m | logs]
    out_ref[0] = jnp.concatenate([z, m, logs], axis=-1)           # (T, 3*out)


def init_params(key, in_channels, out_channels, hidden_channels,
                kernel_size, dilation_rate, n_layers):
    H, K = hidden_channels, kernel_size
    ks = jax.random.split(key, 16)
    s = 0.1
    f = jnp.float32
    return dict(
        pre_w=jax.random.normal(ks[0], (in_channels, H), f) * s,
        pre_b=jax.random.normal(ks[1], (1, H), f) * s,
        # dilated conv weights, tap-major rows, split into tanh/sigmoid halves
        in_w_t=jax.random.normal(ks[2], (n_layers, K * H, H), f) * s,
        in_b_t=jax.random.normal(ks[3], (n_layers, 1, H), f) * s,
        in_w_s=jax.random.normal(ks[4], (n_layers, K * H, H), f) * s,
        in_b_s=jax.random.normal(ks[5], (n_layers, 1, H), f) * s,
        # res/skip 1x1 conv, split into residual and skip halves
        # (rs_w_res[last] exists for uniform indexing but is never used)
        rs_w_res=jax.random.normal(ks[6], (n_layers, H, H), f) * s,
        rs_b_res=jax.random.normal(ks[7], (n_layers, 1, H), f) * s,
        rs_w_skip=jax.random.normal(ks[8], (n_layers, H, H), f) * s,
        rs_b_skip=jax.random.normal(ks[9], (n_layers, 1, H), f) * s,
        # proj 1x1 conv split into m / logs halves
        proj_w_m=jax.random.normal(ks[10], (H, out_channels), f) * s,
        proj_b_m=jax.random.normal(ks[11], (1, out_channels), f) * s,
        proj_w_logs=jax.random.normal(ks[12], (H, out_channels), f) * s,
        proj_b_logs=jax.random.normal(ks[13], (1, out_channels), f) * s,
    )


def encoder_forward(params, x, x_lengths, p=None, g=None, *,
                    out_channels, hidden_channels, kernel_size,
                    dilation_rate, n_layers, noise):
    """x: (B, C_in, T) float32 (PyTorch NCT).  p is unused by the reference
    forward; g must be None (gin_channels = 0).  noise: (B, T, out) f32."""
    del p  # constructed but unused in Encoder.forward of the reference module
    assert g is None, "gin_channels=0 in this synthetic config"

    B, Cin, T = x.shape
    H = hidden_channels
    out_ch = out_channels
    half = (kernel_size - 1) // 2
    assert half * dilation_rate ** (n_layers - 1) < T, "receptive field > T"

    # channels-last activations in bf16 (f32 accumulation happens in-kernel)
    x_tc = jnp.transpose(x, (0, 2, 1)).astype(jnp.bfloat16)       # (B, T, Cin)
    lens = x_lengths.astype(jnp.int32)

    def b16(a):
        return a.astype(jnp.bfloat16)

    weights = (
        b16(params["pre_w"]), params["pre_b"],
        b16(params["in_w_t"]), params["in_b_t"],
        b16(params["in_w_s"]), params["in_b_s"],
        b16(params["rs_w_res"]), params["rs_b_res"],
        b16(params["rs_w_skip"]), params["rs_b_skip"],
        b16(params["proj_w_m"]), params["proj_b_m"],
        b16(params["proj_w_logs"]), params["proj_b_logs"],
    )

    def wspec(arr):
        n = arr.ndim
        return pl.BlockSpec(arr.shape, lambda b, lens_ref, _n=n: (0,) * _n)

    kernel = functools.partial(
        _encoder_kernel,
        hidden=H, out_ch=out_ch, kernel_size=kernel_size,
        dilation_rate=dilation_rate, n_layers=n_layers)

    # TODO(synk): for production sovits sizes (H=192, n_layers=16, K=5), stream
    # in_w per-layer from HBM (pl.ANY + make_async_copy) and tile T, instead of
    # keeping all weights VMEM-resident.
    grid_spec = pltpu.PrefetchScalarGridSpec(
        num_scalar_prefetch=1,                      # x_lengths -> SMEM
        grid=(B,),
        in_specs=[
            pl.BlockSpec((1, T, Cin), lambda b, lens_ref: (b, 0, 0)),     # x
            pl.BlockSpec((1, T, out_ch), lambda b, lens_ref: (b, 0, 0)),  # noise
        ] + [wspec(w) for w in weights],
        out_specs=pl.BlockSpec((1, T, 3 * out_ch), lambda b, lens_ref: (b, 0, 0)),
    )

    combined = pl.pallas_call(
        kernel,
        out_shape=jax.ShapeDtypeStruct((B, T, 3 * out_ch), jnp.float32),
        grid_spec=grid_spec,
        compiler_params=pltpu.CompilerParams(
            dimension_semantics=("parallel",),
            vmem_limit_bytes=48 * 1024 * 1024),
    )(lens, x_tc, noise, *weights)

    # split the lane-dense slab and go back to PyTorch conventions (B, C, T)
    z = jnp.transpose(combined[..., :out_ch], (0, 2, 1))
    m = jnp.transpose(combined[..., out_ch:2 * out_ch], (0, 2, 1))
    logs = jnp.transpose(combined[..., 2 * out_ch:], (0, 2, 1))

    x_mask = (jnp.arange(T)[None, :] < x_lengths[:, None]).astype(x.dtype)
    x_mask_out = x_mask[:, None, :]                               # (B, 1, T)
    return z, m, logs, x_mask_out


def _reference_forward(params, x, x_lengths, noise, *, out_channels,
                       hidden_channels, kernel_size, dilation_rate, n_layers):
    """Pure-JAX reference mirroring the kernel's bf16 matmul casts."""
    B, Cin, T = x.shape
    f32 = jnp.float32
    mask = (jnp.arange(T)[None, :] < x_lengths[:, None]).astype(f32)[:, :, None]

    def mm(a, w):  # (B,T,C) x (C,D) -> (B,T,D), bf16 in / f32 accumulate
        return jax.lax.dot_general(
            a.astype(jnp.bfloat16), w.astype(jnp.bfloat16),
            (((a.ndim - 1,), (0,)), ((), ())),
            preferred_element_type=f32)

    x_tc = jnp.transpose(x, (0, 2, 1)).astype(jnp.bfloat16)       # (B,T,Cin)
    h = (mm(x_tc, params["pre_w"]) + params["pre_b"]) * mask

    half = (kernel_size - 1) // 2
    t_idx = jnp.arange(T)
    output = jnp.zeros((B, T, hidden_channels), f32)
    for i in range(n_layers):
        d = dilation_rate ** i
        taps = []
        for k in range(kernel_size):
            off = (k - half) * d
            if off == 0:
                taps.append(h)
            else:
                rolled = jnp.roll(h, -off, axis=1)
                valid = ((t_idx + off >= 0) & (t_idx + off < T))[None, :, None]
                taps.append(jnp.where(valid, rolled, 0.0))
        im2col = jnp.concatenate(taps, axis=-1)
        x_t = mm(im2col, params["in_w_t"][i]) + params["in_b_t"][i]
        x_s = mm(im2col, params["in_w_s"][i]) + params["in_b_s"][i]
        acts = jnp.tanh(x_t) * jax.nn.sigmoid(x_s)
        output = output + mm(acts, params["rs_w_skip"][i]) + params["rs_b_skip"][i]
        if i < n_layers - 1:
            res = mm(acts, params["rs_w_res"][i]) + params["rs_b_res"][i]
            h = (h + res) * mask
    output = output * mask

    m = (mm(output, params["proj_w_m"]) + params["proj_b_m"]) * mask
    logs = (mm(output, params["proj_w_logs"]) + params["proj_b_logs"]) * mask
    z = (m + noise * jnp.exp(logs)) * mask

    to_nct = lambda a: jnp.transpose(a, (0, 2, 1))
    return to_nct(z), to_nct(m), to_nct(logs), jnp.transpose(mask, (0, 2, 1))


if __name__ == "__main__":
    # Small synthetic configuration consistent with Encoder(in, out, hidden, k, d, n)
    B, Cin, T = 2, 8, 64
    out_channels, hidden_channels = 4, 32
    kernel_size, dilation_rate, n_layers = 3, 2, 4

    key = jax.random.PRNGKey(0)
    k_param, k_x, k_noise, k_p = jax.random.split(key, 4)

    params = init_params(k_param, Cin, out_channels, hidden_channels,
                         kernel_size, dilation_rate, n_layers)

    x = jax.random.normal(k_x, (B, Cin, T), jnp.float32)
    x_lengths = jnp.array([T, 40], dtype=jnp.int32)
    # torch.randn_like(m) equivalent (deterministic, shared with the reference)
    noise = jax.random.normal(k_noise, (B, T, out_channels), jnp.float32)
    # prosody codes `p` (unused by the reference forward, accepted for parity)
    p = jax.random.randint(k_p, (B, 2, T), 0, 320, dtype=jnp.int32)

    z, m, logs, x_mask = encoder_forward(
        params, x, x_lengths, p, g=None,
        out_channels=out_channels, hidden_channels=hidden_channels,
        kernel_size=kernel_size, dilation_rate=dilation_rate,
        n_layers=n_layers, noise=noise)
    jax.block_until_ready((z, m, logs, x_mask))

    assert z.shape == (B, out_channels, T)
    assert m.shape == (B, out_channels, T)
    assert logs.shape == (B, out_channels, T)
    assert x_mask.shape == (B, 1, T)

    # Correctness check against a bf16-matched pure-JAX reference.
    z_r, m_r, logs_r, mask_r = _reference_forward(
        params, x, x_lengths, noise,
        out_channels=out_channels, hidden_channels=hidden_channels,
        kernel_size=kernel_size, dilation_rate=dilation_rate, n_layers=n_layers)
    jax.block_until_ready((z_r, m_r, logs_r, mask_r))

    np.testing.assert_allclose(np.asarray(x_mask), np.asarray(mask_r),
                               rtol=0, atol=0)
    np.testing.assert_allclose(np.asarray(m), np.asarray(m_r),
                               rtol=5e-3, atol=5e-3)
    np.testing.assert_allclose(np.asarray(logs), np.asarray(logs_r),
                               rtol=5e-3, atol=5e-3)
    np.testing.assert_allclose(np.asarray(z), np.asarray(z_r),
                               rtol=5e-3, atol=5e-3)

    print("KERNEL_OK")
</pallas_src>

<mosaic_0001>
module attributes {stable_mosaic.version = 11 : i64} {
  func.func @_encoder_kernel(%arg0: i32, %arg1: memref<2xi32, #tpu.memory_space<smem>>, %arg2: memref<1x64x8xbf16, #tpu.memory_space<vmem>>, %arg3: memref<1x64x4xf32, #tpu.memory_space<vmem>>, %arg4: memref<8x32xbf16, #tpu.memory_space<vmem>>, %arg5: memref<1x32xf32, #tpu.memory_space<vmem>>, %arg6: memref<4x96x32xbf16, #tpu.memory_space<vmem>>, %arg7: memref<4x1x32xf32, #tpu.memory_space<vmem>>, %arg8: memref<4x96x32xbf16, #tpu.memory_space<vmem>>, %arg9: memref<4x1x32xf32, #tpu.memory_space<vmem>>, %arg10: memref<4x32x32xbf16, #tpu.memory_space<vmem>>, %arg11: memref<4x1x32xf32, #tpu.memory_space<vmem>>, %arg12: memref<4x32x32xbf16, #tpu.memory_space<vmem>>, %arg13: memref<4x1x32xf32, #tpu.memory_space<vmem>>, %arg14: memref<32x4xbf16, #tpu.memory_space<vmem>>, %arg15: memref<1x4xf32, #tpu.memory_space<vmem>>, %arg16: memref<32x4xbf16, #tpu.memory_space<vmem>>, %arg17: memref<1x4xf32, #tpu.memory_space<vmem>>, %arg18: memref<1x64x12xf32, #tpu.memory_space<vmem>>) attributes {dimension_semantics = [#tpu.dimension_semantics<parallel>], iteration_bounds = array<i64: 2>, scalar_prefetch = 1 : i64, scratch_operands = 0 : i64, tpu.core_type = #tpu.core_type<tc>, window_params = [{transform_indices = @transform_0, window_bounds = array<i64: 1, 64, 8>}, {transform_indices = @transform_1, window_bounds = array<i64: 1, 64, 4>}, {pipeline_mode = #tpu.pipeline_mode<synchronous>, transform_indices = @transform_2, window_bounds = array<i64: 8, 32>}, {pipeline_mode = #tpu.pipeline_mode<synchronous>, transform_indices = @transform_3, window_bounds = array<i64: 1, 32>}, {pipeline_mode = #tpu.pipeline_mode<synchronous>, transform_indices = @transform_4, window_bounds = array<i64: 4, 96, 32>}, {pipeline_mode = #tpu.pipeline_mode<synchronous>, transform_indices = @transform_5, window_bounds = array<i64: 4, 1, 32>}, {pipeline_mode = #tpu.pipeline_mode<synchronous>, transform_indices = @transform_6, window_bounds = array<i64: 4, 96, 32>}, {pipeline_mode = #tpu.pipeline_mode<synchronous>, transform_indices = @transform_7, window_bounds = array<i64: 4, 1, 32>}, {pipeline_mode = #tpu.pipeline_mode<synchronous>, transform_indices = @transform_8, window_bounds = array<i64: 4, 32, 32>}, {pipeline_mode = #tpu.pipeline_mode<synchronous>, transform_indices = @transform_9, window_bounds = array<i64: 4, 1, 32>}, {pipeline_mode = #tpu.pipeline_mode<synchronous>, transform_indices = @transform_10, window_bounds = array<i64: 4, 32, 32>}, {pipeline_mode = #tpu.pipeline_mode<synchronous>, transform_indices = @transform_11, window_bounds = array<i64: 4, 1, 32>}, {pipeline_mode = #tpu.pipeline_mode<synchronous>, transform_indices = @transform_12, window_bounds = array<i64: 32, 4>}, {pipeline_mode = #tpu.pipeline_mode<synchronous>, transform_indices = @transform_13, window_bounds = array<i64: 1, 4>}, {pipeline_mode = #tpu.pipeline_mode<synchronous>, transform_indices = @transform_14, window_bounds = array<i64: 32, 4>}, {pipeline_mode = #tpu.pipeline_mode<synchronous>, transform_indices = @transform_15, window_bounds = array<i64: 1, 4>}, {transform_indices = @transform_16, window_bounds = array<i64: 1, 64, 12>}]} {
    %0 = arith.index_cast %arg0 : i32 to index
    %1 = memref.load %arg1[%0] : memref<2xi32, #tpu.memory_space<smem>>
    %2 = tpu.iota {dimensions = array<i32: 0>} : vector<64x1xi32>
    %3 = vector.broadcast %1 : i32 to vector<64x1xi32>
    %4 = arith.cmpi slt, %2, %3 : vector<64x1xi32>
    %5 = arith.extui %4 : vector<64x1xi1> to vector<64x1xi32>
    %6 = arith.sitofp %5 : vector<64x1xi32> to vector<64x1xf32>
    %7 = vector.shape_cast %6 : vector<64x1xf32> to vector<64x1xf32>
    %8 = vector.broadcast %7 : vector<64x1xf32> to vector<64x32xf32>
    %9 = vector.shape_cast %6 : vector<64x1xf32> to vector<64x1xf32>
    %10 = vector.broadcast %9 : vector<64x1xf32> to vector<64x4xf32>
    %c0 = arith.constant 0 : index
    %c0_0 = arith.constant 0 : index
    %c0_1 = arith.constant 0 : index
    %11 = vector.load %arg2[%c0, %c0_0, %c0_1] : memref<1x64x8xbf16, #tpu.memory_space<vmem>>, vector<1x64x8xbf16>
    %12 = vector.shape_cast %11 : vector<1x64x8xbf16> to vector<64x8xbf16>
    %c0_2 = arith.constant 0 : index
    %c0_3 = arith.constant 0 : index
    %13 = vector.load %arg4[%c0_2, %c0_3] : memref<8x32xbf16, #tpu.memory_space<vmem>>, vector<8x32xbf16>
    %cst = arith.constant dense<0.000000e+00> : vector<64x32xf32>
    %14 = tpu.matmul %12, %13, %cst {dimension_numbers = #tpu.dot_dimension_numbers<[1], [0], [0], [1], [0, 0, 1, 1], [], []>} : vector<64x8xbf16>, vector<8x32xbf16>, vector<64x32xf32> -> vector<64x32xf32>
    %c0_4 = arith.constant 0 : index
    %c0_5 = arith.constant 0 : index
    %15 = vector.load %arg5[%c0_4, %c0_5] : memref<1x32xf32, #tpu.memory_space<vmem>>, vector<1x32xf32>
    %16 = vector.broadcast %15 : vector<1x32xf32> to vector<64x32xf32>
    %17 = arith.addf %14, %16 : vector<64x32xf32>
    %18 = arith.mulf %17, %8 : vector<64x32xf32>
    %c1_i32 = arith.constant 1 : i32
    %19 = tpu.dynamic_rotate %18 by %c1_i32 dim 0 : vector<64x32xf32>, i32 -> vector<64x32xf32>
    %c1_i32_6 = arith.constant 1 : i32
    %20 = vector.broadcast %c1_i32_6 : i32 to vector<64x1xi32>
    %21 = arith.cmpi sge, %2, %20 : vector<64x1xi32>
    %cst_7 = arith.constant 0.000000e+00 : f32
    %22 = vector.shape_cast %21 : vector<64x1xi1> to vector<64x1xi1>
    %23 = vector.broadcast %22 : vector<64x1xi1> to vector<64x32xi1>
    %24 = vector.broadcast %cst_7 : f32 to vector<64x32xf32>
    %25 = arith.select %23, %19, %24 : vector<64x32xi1>, vector<64x32xf32>
    %c63_i32 = arith.constant 63 : i32
    %26 = tpu.dynamic_rotate %18 by %c63_i32 dim 0 : vector<64x32xf32>, i32 -> vector<64x32xf32>
    %c63_i32_8 = arith.constant 63 : i32
    %27 = vector.broadcast %c63_i32_8 : i32 to vector<64x1xi32>
    %28 = arith.cmpi slt, %2, %27 : vector<64x1xi32>
    %cst_9 = arith.constant 0.000000e+00 : f32
    %29 = vector.shape_cast %28 : vector<64x1xi1> to vector<64x1xi1>
    %30 = vector.broadcast %29 : vector<64x1xi1> to vector<64x32xi1>
    %31 = vector.broadcast %cst_9 : f32 to vector<64x32xf32>
    %32 = arith.select %30, %26, %31 : vector<64x32xi1>, vector<64x32xf32>
    %33 = tpu.concatenate %25, %18, %32 in 1 : vector<64x32xf32>, vector<64x32xf32>, vector<64x32xf32> -> vector<64x96xf32>
    %34 = arith.truncf %33 : vector<64x96xf32> to vector<64x96xbf16>
    %c0_10 = arith.constant 0 : index
    %c0_11 = arith.constant 0 : index
    %c0_12 = arith.constant 0 : index
    %35 = vector.load %arg6[%c0_10, %c0_11, %c0_12] : memref<4x96x32xbf16, #tpu.memory_space<vmem>>, vector<1x96x32xbf16>
    %36 = vector.shape_cast %35 : vector<1x96x32xbf16> to vector<96x32xbf16>
    %cst_13 = arith.constant dense<0.000000e+00> : vector<64x32xf32>
    %37 = tpu.matmul %34, %36, %cst_13 {dimension_numbers = #tpu.dot_dimension_numbers<[1], [0], [0], [1], [0, 0, 1, 1], [], []>} : vector<64x96xbf16>, vector<96x32xbf16>, vector<64x32xf32> -> vector<64x32xf32>
    %c0_14 = arith.constant 0 : index
    %c0_15 = arith.constant 0 : index
    %c0_16 = arith.constant 0 : index
    %38 = vector.load %arg7[%c0_14, %c0_15, %c0_16] : memref<4x1x32xf32, #tpu.memory_space<vmem>>, vector<1x1x32xf32>
    %39 = vector.shape_cast %38 : vector<1x1x32xf32> to vector<1x32xf32>
    %40 = vector.broadcast %39 : vector<1x32xf32> to vector<64x32xf32>
    %41 = arith.addf %37, %40 : vector<64x32xf32>
    %c0_17 = arith.constant 0 : index
    %c0_18 = arith.constant 0 : index
    %c0_19 = arith.constant 0 : index
    %42 = vector.load %arg8[%c0_17, %c0_18, %c0_19] : memref<4x96x32xbf16, #tpu.memory_space<vmem>>, vector<1x96x32xbf16>
    %43 = vector.shape_cast %42 : vector<1x96x32xbf16> to vector<96x32xbf16>
    %cst_20 = arith.constant dense<0.000000e+00> : vector<64x32xf32>
    %44 = tpu.matmul %34, %43, %cst_20 {dimension_numbers = #tpu.dot_dimension_numbers<[1], [0], [0], [1], [0, 0, 1, 1], [], []>} : vector<64x96xbf16>, vector<96x32xbf16>, vector<64x32xf32> -> vector<64x32xf32>
    %c0_21 = arith.constant 0 : index
    %c0_22 = arith.constant 0 : index
    %c0_23 = arith.constant 0 : index
    %45 = vector.load %arg9[%c0_21, %c0_22, %c0_23] : memref<4x1x32xf32, #tpu.memory_space<vmem>>, vector<1x1x32xf32>
    %46 = vector.shape_cast %45 : vector<1x1x32xf32> to vector<1x32xf32>
    %47 = vector.broadcast %46 : vector<1x32xf32> to vector<64x32xf32>
    %48 = arith.addf %44, %47 : vector<64x32xf32>
    %49 = math.tanh %41 : vector<64x32xf32>
    %50 = arith.negf %48 : vector<64x32xf32>
    %51 = math.exp %50 : vector<64x32xf32>
    %cst_24 = arith.constant 1.000000e+00 : f32
    %52 = vector.broadcast %cst_24 : f32 to vector<64x32xf32>
    %53 = arith.addf %52, %51 : vector<64x32xf32>
    %54 = arith.divf %52, %53 : vector<64x32xf32>
    %55 = arith.mulf %49, %54 : vector<64x32xf32>
    %56 = arith.truncf %55 : vector<64x32xf32> to vector<64x32xbf16>
    %c0_25 = arith.constant 0 : index
    %c0_26 = arith.constant 0 : index
    %c0_27 = arith.constant 0 : index
    %57 = vector.load %arg12[%c0_25, %c0_26, %c0_27] : memref<4x32x32xbf16, #tpu.memory_space<vmem>>, vector<1x32x32xbf16>
    %58 = vector.shape_cast %57 : vector<1x32x32xbf16> to vector<32x32xbf16>
    %cst_28 = arith.constant dense<0.000000e+00> : vector<64x32xf32>
    %59 = tpu.matmul %56, %58, %cst_28 {dimension_numbers = #tpu.dot_dimension_numbers<[1], [0], [0], [1], [0, 0, 1, 1], [], []>} : vector<64x32xbf16>, vector<32x32xbf16>, vector<64x32xf32> -> vector<64x32xf32>
    %c0_29 = arith.constant 0 : index
    %c0_30 = arith.constant 0 : index
    %c0_31 = arith.constant 0 : index
    %60 = vector.load %arg13[%c0_29, %c0_30, %c0_31] : memref<4x1x32xf32, #tpu.memory_space<vmem>>, vector<1x1x32xf32>
    %61 = vector.shape_cast %60 : vector<1x1x32xf32> to vector<1x32xf32>
    %62 = vector.broadcast %61 : vector<1x32xf32> to vector<64x32xf32>
    %63 = arith.addf %59, %62 : vector<64x32xf32>
    %c0_32 = arith.constant 0 : index
    %c0_33 = arith.constant 0 : index
    %c0_34 = arith.constant 0 : index
    %64 = vector.load %arg10[%c0_32, %c0_33, %c0_34] : memref<4x32x32xbf16, #tpu.memory_space<vmem>>, vector<1x32x32xbf16>
    %65 = vector.shape_cast %64 : vector<1x32x32xbf16> to vector<32x32xbf16>
    %cst_35 = arith.constant dense<0.000000e+00> : vector<64x32xf32>
    %66 = tpu.matmul %56, %65, %cst_35 {dimension_numbers = #tpu.dot_dimension_numbers<[1], [0], [0], [1], [0, 0, 1, 1], [], []>} : vector<64x32xbf16>, vector<32x32xbf16>, vector<64x32xf32> -> vector<64x32xf32>
    %c0_36 = arith.constant 0 : index
    %c0_37 = arith.constant 0 : index
    %c0_38 = arith.constant 0 : index
    %67 = vector.load %arg11[%c0_36, %c0_37, %c0_38] : memref<4x1x32xf32, #tpu.memory_space<vmem>>, vector<1x1x32xf32>
    %68 = vector.shape_cast %67 : vector<1x1x32xf32> to vector<1x32xf32>
    %69 = vector.broadcast %68 : vector<1x32xf32> to vector<64x32xf32>
    %70 = arith.addf %66, %69 : vector<64x32xf32>
    %71 = arith.addf %18, %70 : vector<64x32xf32>
    %72 = arith.mulf %71, %8 : vector<64x32xf32>
    %c2_i32 = arith.constant 2 : i32
    %73 = tpu.dynamic_rotate %72 by %c2_i32 dim 0 : vector<64x32xf32>, i32 -> vector<64x32xf32>
    %c2_i32_39 = arith.constant 2 : i32
    %74 = vector.broadcast %c2_i32_39 : i32 to vector<64x1xi32>
    %75 = arith.cmpi sge, %2, %74 : vector<64x1xi32>
    %cst_40 = arith.constant 0.000000e+00 : f32
    %76 = vector.shape_cast %75 : vector<64x1xi1> to vector<64x1xi1>
    %77 = vector.broadcast %76 : vector<64x1xi1> to vector<64x32xi1>
    %78 = vector.broadcast %cst_40 : f32 to vector<64x32xf32>
    %79 = arith.select %77, %73, %78 : vector<64x32xi1>, vector<64x32xf32>
    %c62_i32 = arith.constant 62 : i32
    %80 = tpu.dynamic_rotate %72 by %c62_i32 dim 0 : vector<64x32xf32>, i32 -> vector<64x32xf32>
    %c62_i32_41 = arith.constant 62 : i32
    %81 = vector.broadcast %c62_i32_41 : i32 to vector<64x1xi32>
    %82 = arith.cmpi slt, %2, %81 : vector<64x1xi32>
    %cst_42 = arith.constant 0.000000e+00 : f32
    %83 = vector.shape_cast %82 : vector<64x1xi1> to vector<64x1xi1>
    %84 = vector.broadcast %83 : vector<64x1xi1> to vector<64x32xi1>
    %85 = vector.broadcast %cst_42 : f32 to vector<64x32xf32>
    %86 = arith.select %84, %80, %85 : vector<64x32xi1>, vector<64x32xf32>
    %87 = tpu.concatenate %79, %72, %86 in 1 : vector<64x32xf32>, vector<64x32xf32>, vector<64x32xf32> -> vector<64x96xf32>
    %88 = arith.truncf %87 : vector<64x96xf32> to vector<64x96xbf16>
    %c1 = arith.constant 1 : index
    %c0_43 = arith.constant 0 : index
    %c0_44 = arith.constant 0 : index
    %89 = vector.load %arg6[%c1, %c0_43, %c0_44] : memref<4x96x32xbf16, #tpu.memory_space<vmem>>, vector<1x96x32xbf16>
    %90 = vector.shape_cast %89 : vector<1x96x32xbf16> to vector<96x32xbf16>
    %cst_45 = arith.constant dense<0.000000e+00> : vector<64x32xf32>
    %91 = tpu.matmul %88, %90, %cst_45 {dimension_numbers = #tpu.dot_dimension_numbers<[1], [0], [0], [1], [0, 0, 1, 1], [], []>} : vector<64x96xbf16>, vector<96x32xbf16>, vector<64x32xf32> -> vector<64x32xf32>
    %c1_46 = arith.constant 1 : index
    %c0_47 = arith.constant 0 : index
    %c0_48 = arith.constant 0 : index
    %92 = vector.load %arg7[%c1_46, %c0_47, %c0_48] : memref<4x1x32xf32, #tpu.memory_space<vmem>>, vector<1x1x32xf32>
    %93 = vector.shape_cast %92 : vector<1x1x32xf32> to vector<1x32xf32>
    %94 = vector.broadcast %93 : vector<1x32xf32> to vector<64x32xf32>
    %95 = arith.addf %91, %94 : vector<64x32xf32>
    %c1_49 = arith.constant 1 : index
    %c0_50 = arith.constant 0 : index
    %c0_51 = arith.constant 0 : index
    %96 = vector.load %arg8[%c1_49, %c0_50, %c0_51] : memref<4x96x32xbf16, #tpu.memory_space<vmem>>, vector<1x96x32xbf16>
    %97 = vector.shape_cast %96 : vector<1x96x32xbf16> to vector<96x32xbf16>
    %cst_52 = arith.constant dense<0.000000e+00> : vector<64x32xf32>
    %98 = tpu.matmul %88, %97, %cst_52 {dimension_numbers = #tpu.dot_dimension_numbers<[1], [0], [0], [1], [0, 0, 1, 1], [], []>} : vector<64x96xbf16>, vector<96x32xbf16>, vector<64x32xf32> -> vector<64x32xf32>
    %c1_53 = arith.constant 1 : index
    %c0_54 = arith.constant 0 : index
    %c0_55 = arith.constant 0 : index
    %99 = vector.load %arg9[%c1_53, %c0_54, %c0_55] : memref<4x1x32xf32, #tpu.memory_space<vmem>>, vector<1x1x32xf32>
    %100 = vector.shape_cast %99 : vector<1x1x32xf32> to vector<1x32xf32>
    %101 = vector.broadcast %100 : vector<1x32xf32> to vector<64x32xf32>
    %102 = arith.addf %98, %101 : vector<64x32xf32>
    %103 = math.tanh %95 : vector<64x32xf32>
    %104 = arith.negf %102 : vector<64x32xf32>
    %105 = math.exp %104 : vector<64x32xf32>
    %cst_56 = arith.constant 1.000000e+00 : f32
    %106 = vector.broadcast %cst_56 : f32 to vector<64x32xf32>
    %107 = arith.addf %106, %105 : vector<64x32xf32>
    %108 = arith.divf %106, %107 : vector<64x32xf32>
    %109 = arith.mulf %103, %108 : vector<64x32xf32>
    %110 = arith.truncf %109 : vector<64x32xf32> to vector<64x32xbf16>
    %c1_57 = arith.constant 1 : index
    %c0_58 = arith.constant 0 : index
    %c0_59 = arith.constant 0 : index
    %111 = vector.load %arg12[%c1_57, %c0_58, %c0_59] : memref<4x32x32xbf16, #tpu.memory_space<vmem>>, vector<1x32x32xbf16>
    %112 = vector.shape_cast %111 : vector<1x32x32xbf16> to vector<32x32xbf16>
    %cst_60 = arith.constant dense<0.000000e+00> : vector<64x32xf32>
    %113 = tpu.matmul %110, %112, %cst_60 {dimension_numbers = #tpu.dot_dimension_numbers<[1], [0], [0], [1], [0, 0, 1, 1], [], []>} : vector<64x32xbf16>, vector<32x32xbf16>, vector<64x32xf32> -> vector<64x32xf32>
    %c1_61 = arith.constant 1 : index
    %c0_62 = arith.constant 0 : index
    %c0_63 = arith.constant 0 : index
    %114 = vector.load %arg13[%c1_61, %c0_62, %c0_63] : memref<4x1x32xf32, #tpu.memory_space<vmem>>, vector<1x1x32xf32>
    %115 = vector.shape_cast %114 : vector<1x1x32xf32> to vector<1x32xf32>
    %116 = vector.broadcast %115 : vector<1x32xf32> to vector<64x32xf32>
    %117 = arith.addf %113, %116 : vector<64x32xf32>
    %118 = arith.addf %63, %117 : vector<64x32xf32>
    %c1_64 = arith.constant 1 : index
    %c0_65 = arith.constant 0 : index
    %c0_66 = arith.constant 0 : index
    %119 = vector.load %arg10[%c1_64, %c0_65, %c0_66] : memref<4x32x32xbf16, #tpu.memory_space<vmem>>, vector<1x32x32xbf16>
    %120 = vector.shape_cast %119 : vector<1x32x32xbf16> to vector<32x32xbf16>
    %cst_67 = arith.constant dense<0.000000e+00> : vector<64x32xf32>
    %121 = tpu.matmul %110, %120, %cst_67 {dimension_numbers = #tpu.dot_dimension_numbers<[1], [0], [0], [1], [0, 0, 1, 1], [], []>} : vector<64x32xbf16>, vector<32x32xbf16>, vector<64x32xf32> -> vector<64x32xf32>
    %c1_68 = arith.constant 1 : index
    %c0_69 = arith.constant 0 : index
    %c0_70 = arith.constant 0 : index
    %122 = vector.load %arg11[%c1_68, %c0_69, %c0_70] : memref<4x1x32xf32, #tpu.memory_space<vmem>>, vector<1x1x32xf32>
    %123 = vector.shape_cast %122 : vector<1x1x32xf32> to vector<1x32xf32>
    %124 = vector.broadcast %123 : vector<1x32xf32> to vector<64x32xf32>
    %125 = arith.addf %121, %124 : vector<64x32xf32>
    %126 = arith.addf %72, %125 : vector<64x32xf32>
    %127 = arith.mulf %126, %8 : vector<64x32xf32>
    %c4_i32 = arith.constant 4 : i32
    %128 = tpu.dynamic_rotate %127 by %c4_i32 dim 0 : vector<64x32xf32>, i32 -> vector<64x32xf32>
    %c4_i32_71 = arith.constant 4 : i32
    %129 = vector.broadcast %c4_i32_71 : i32 to vector<64x1xi32>
    %130 = arith.cmpi sge, %2, %129 : vector<64x1xi32>
    %cst_72 = arith.constant 0.000000e+00 : f32
    %131 = vector.shape_cast %130 : vector<64x1xi1> to vector<64x1xi1>
    %132 = vector.broadcast %131 : vector<64x1xi1> to vector<64x32xi1>
    %133 = vector.broadcast %cst_72 : f32 to vector<64x32xf32>
    %134 = arith.select %132, %128, %133 : vector<64x32xi1>, vector<64x32xf32>
    %c60_i32 = arith.constant 60 : i32
    %135 = tpu.dynamic_rotate %127 by %c60_i32 dim 0 : vector<64x32xf32>, i32 -> vector<64x32xf32>
    %c60_i32_73 = arith.constant 60 : i32
    %136 = vector.broadcast %c60_i32_73 : i32 to vector<64x1xi32>
    %137 = arith.cmpi slt, %2, %136 : vector<64x1xi32>
    %cst_74 = arith.constant 0.000000e+00 : f32
    %138 = vector.shape_cast %137 : vector<64x1xi1> to vector<64x1xi1>
    %139 = vector.broadcast %138 : vector<64x1xi1> to vector<64x32xi1>
    %140 = vector.broadcast %cst_74 : f32 to vector<64x32xf32>
    %141 = arith.select %139, %135, %140 : vector<64x32xi1>, vector<64x32xf32>
    %142 = tpu.concatenate %134, %127, %141 in 1 : vector<64x32xf32>, vector<64x32xf32>, vector<64x32xf32> -> vector<64x96xf32>
    %143 = arith.truncf %142 : vector<64x96xf32> to vector<64x96xbf16>
    %c2 = arith.constant 2 : index
    %c0_75 = arith.constant 0 : index
    %c0_76 = arith.constant 0 : index
    %144 = vector.load %arg6[%c2, %c0_75, %c0_76] : memref<4x96x32xbf16, #tpu.memory_space<vmem>>, vector<1x96x32xbf16>
    %145 = vector.shape_cast %144 : vector<1x96x32xbf16> to vector<96x32xbf16>
    %cst_77 = arith.constant dense<0.000000e+00> : vector<64x32xf32>
    %146 = tpu.matmul %143, %145, %cst_77 {dimension_numbers = #tpu.dot_dimension_numbers<[1], [0], [0], [1], [0, 0, 1, 1], [], []>} : vector<64x96xbf16>, vector<96x32xbf16>, vector<64x32xf32> -> vector<64x32xf32>
    %c2_78 = arith.constant 2 : index
    %c0_79 = arith.constant 0 : index
    %c0_80 = arith.constant 0 : index
    %147 = vector.load %arg7[%c2_78, %c0_79, %c0_80] : memref<4x1x32xf32, #tpu.memory_space<vmem>>, vector<1x1x32xf32>
    %148 = vector.shape_cast %147 : vector<1x1x32xf32> to vector<1x32xf32>
    %149 = vector.broadcast %148 : vector<1x32xf32> to vector<64x32xf32>
    %150 = arith.addf %146, %149 : vector<64x32xf32>
    %c2_81 = arith.constant 2 : index
    %c0_82 = arith.constant 0 : index
    %c0_83 = arith.constant 0 : index
    %151 = vector.load %arg8[%c2_81, %c0_82, %c0_83] : memref<4x96x32xbf16, #tpu.memory_space<vmem>>, vector<1x96x32xbf16>
    %152 = vector.shape_cast %151 : vector<1x96x32xbf16> to vector<96x32xbf16>
    %cst_84 = arith.constant dense<0.000000e+00> : vector<64x32xf32>
    %153 = tpu.matmul %143, %152, %cst_84 {dimension_numbers = #tpu.dot_dimension_numbers<[1], [0], [0], [1], [0, 0, 1, 1], [], []>} : vector<64x96xbf16>, vector<96x32xbf16>, vector<64x32xf32> -> vector<64x32xf32>
    %c2_85 = arith.constant 2 : index
    %c0_86 = arith.constant 0 : index
    %c0_87 = arith.constant 0 : index
    %154 = vector.load %arg9[%c2_85, %c0_86, %c0_87] : memref<4x1x32xf32, #tpu.memory_space<vmem>>, vector<1x1x32xf32>
    %155 = vector.shape_cast %154 : vector<1x1x32xf32> to vector<1x32xf32>
    %156 = vector.broadcast %155 : vector<1x32xf32> to vector<64x32xf32>
    %157 = arith.addf %153, %156 : vector<64x32xf32>
    %158 = math.tanh %150 : vector<64x32xf32>
    %159 = arith.negf %157 : vector<64x32xf32>
    %160 = math.exp %159 : vector<64x32xf32>
    %cst_88 = arith.constant 1.000000e+00 : f32
    %161 = vector.broadcast %cst_88 : f32 to vector<64x32xf32>
    %162 = arith.addf %161, %160 : vector<64x32xf32>
    %163 = arith.divf %161, %162 : vector<64x32xf32>
    %164 = arith.mulf %158, %163 : vector<64x32xf32>
    %165 = arith.truncf %164 : vector<64x32xf32> to vector<64x32xbf16>
    %c2_89 = arith.constant 2 : index
    %c0_90 = arith.constant 0 : index
    %c0_91 = arith.constant 0 : index
    %166 = vector.load %arg12[%c2_89, %c0_90, %c0_91] : memref<4x32x32xbf16, #tpu.memory_space<vmem>>, vector<1x32x32xbf16>
    %167 = vector.shape_cast %166 : vector<1x32x32xbf16> to vector<32x32xbf16>
    %cst_92 = arith.constant dense<0.000000e+00> : vector<64x32xf32>
    %168 = tpu.matmul %165, %167, %cst_92 {dimension_numbers = #tpu.dot_dimension_numbers<[1], [0], [0], [1], [0, 0, 1, 1], [], []>} : vector<64x32xbf16>, vector<32x32xbf16>, vector<64x32xf32> -> vector<64x32xf32>
    %c2_93 = arith.constant 2 : index
    %c0_94 = arith.constant 0 : index
    %c0_95 = arith.constant 0 : index
    %169 = vector.load %arg13[%c2_93, %c0_94, %c0_95] : memref<4x1x32xf32, #tpu.memory_space<vmem>>, vector<1x1x32xf32>
    %170 = vector.shape_cast %169 : vector<1x1x32xf32> to vector<1x32xf32>
    %171 = vector.broadcast %170 : vector<1x32xf32> to vector<64x32xf32>
    %172 = arith.addf %168, %171 : vector<64x32xf32>
    %173 = arith.addf %118, %172 : vector<64x32xf32>
    %c2_96 = arith.constant 2 : index
    %c0_97 = arith.constant 0 : index
    %c0_98 = arith.constant 0 : index
    %174 = vector.load %arg10[%c2_96, %c0_97, %c0_98] : memref<4x32x32xbf16, #tpu.memory_space<vmem>>, vector<1x32x32xbf16>
    %175 = vector.shape_cast %174 : vector<1x32x32xbf16> to vector<32x32xbf16>
    %cst_99 = arith.constant dense<0.000000e+00> : vector<64x32xf32>
    %176 = tpu.matmul %165, %175, %cst_99 {dimension_numbers = #tpu.dot_dimension_numbers<[1], [0], [0], [1], [0, 0, 1, 1], [], []>} : vector<64x32xbf16>, vector<32x32xbf16>, vector<64x32xf32> -> vector<64x32xf32>
    %c2_100 = arith.constant 2 : index
    %c0_101 = arith.constant 0 : index
    %c0_102 = arith.constant 0 : index
    %177 = vector.load %arg11[%c2_100, %c0_101, %c0_102] : memref<4x1x32xf32, #tpu.memory_space<vmem>>, vector<1x1x32xf32>
    %178 = vector.shape_cast %177 : vector<1x1x32xf32> to vector<1x32xf32>
    %179 = vector.broadcast %178 : vector<1x32xf32> to vector<64x32xf32>
    %180 = arith.addf %176, %179 : vector<64x32xf32>
    %181 = arith.addf %127, %180 : vector<64x32xf32>
    %182 = arith.mulf %181, %8 : vector<64x32xf32>
    %c8_i32 = arith.constant 8 : i32
    %183 = tpu.dynamic_rotate %182 by %c8_i32 dim 0 : vector<64x32xf32>, i32 -> vector<64x32xf32>
    %c8_i32_103 = arith.constant 8 : i32
    %184 = vector.broadcast %c8_i32_103 : i32 to vector<64x1xi32>
    %185 = arith.cmpi sge, %2, %184 : vector<64x1xi32>
    %cst_104 = arith.constant 0.000000e+00 : f32
    %186 = vector.shape_cast %185 : vector<64x1xi1> to vector<64x1xi1>
    %187 = vector.broadcast %186 : vector<64x1xi1> to vector<64x32xi1>
    %188 = vector.broadcast %cst_104 : f32 to vector<64x32xf32>
    %189 = arith.select %187, %183, %188 : vector<64x32xi1>, vector<64x32xf32>
    %c56_i32 = arith.constant 56 : i32
    %190 = tpu.dynamic_rotate %182 by %c56_i32 dim 0 : vector<64x32xf32>, i32 -> vector<64x32xf32>
    %c56_i32_105 = arith.constant 56 : i32
    %191 = vector.broadcast %c56_i32_105 : i32 to vector<64x1xi32>
    %192 = arith.cmpi slt, %2, %191 : vector<64x1xi32>
    %cst_106 = arith.constant 0.000000e+00 : f32
    %193 = vector.shape_cast %192 : vector<64x1xi1> to vector<64x1xi1>
    %194 = vector.broadcast %193 : vector<64x1xi1> to vector<64x32xi1>
    %195 = vector.broadcast %cst_106 : f32 to vector<64x32xf32>
    %196 = arith.select %194, %190, %195 : vector<64x32xi1>, vector<64x32xf32>
    %197 = tpu.concatenate %189, %182, %196 in 1 : vector<64x32xf32>, vector<64x32xf32>, vector<64x32xf32> -> vector<64x96xf32>
    %198 = arith.truncf %197 : vector<64x96xf32> to vector<64x96xbf16>
    %c3 = arith.constant 3 : index
    %c0_107 = arith.constant 0 : index
    %c0_108 = arith.constant 0 : index
    %199 = vector.load %arg6[%c3, %c0_107, %c0_108] : memref<4x96x32xbf16, #tpu.memory_space<vmem>>, vector<1x96x32xbf16>
    %200 = vector.shape_cast %199 : vector<1x96x32xbf16> to vector<96x32xbf16>
    %cst_109 = arith.constant dense<0.000000e+00> : vector<64x32xf32>
    %201 = tpu.matmul %198, %200, %cst_109 {dimension_numbers = #tpu.dot_dimension_numbers<[1], [0], [0], [1], [0, 0, 1, 1], [], []>} : vector<64x96xbf16>, vector<96x32xbf16>, vector<64x32xf32> -> vector<64x32xf32>
    %c3_110 = arith.constant 3 : index
    %c0_111 = arith.constant 0 : index
    %c0_112 = arith.constant 0 : index
    %202 = vector.load %arg7[%c3_110, %c0_111, %c0_112] : memref<4x1x32xf32, #tpu.memory_space<vmem>>, vector<1x1x32xf32>
    %203 = vector.shape_cast %202 : vector<1x1x32xf32> to vector<1x32xf32>
    %204 = vector.broadcast %203 : vector<1x32xf32> to vector<64x32xf32>
    %205 = arith.addf %201, %204 : vector<64x32xf32>
    %c3_113 = arith.constant 3 : index
    %c0_114 = arith.constant 0 : index
    %c0_115 = arith.constant 0 : index
    %206 = vector.load %arg8[%c3_113, %c0_114, %c0_115] : memref<4x96x32xbf16, #tpu.memory_space<vmem>>, vector<1x96x32xbf16>
    %207 = vector.shape_cast %206 : vector<1x96x32xbf16> to vector<96x32xbf16>
    %cst_116 = arith.constant dense<0.000000e+00> : vector<64x32xf32>
    %208 = tpu.matmul %198, %207, %cst_116 {dimension_numbers = #tpu.dot_dimension_numbers<[1], [0], [0], [1], [0, 0, 1, 1], [], []>} : vector<64x96xbf16>, vector<96x32xbf16>, vector<64x32xf32> -> vector<64x32xf32>
    %c3_117 = arith.constant 3 : index
    %c0_118 = arith.constant 0 : index
    %c0_119 = arith.constant 0 : index
    %209 = vector.load %arg9[%c3_117, %c0_118, %c0_119] : memref<4x1x32xf32, #tpu.memory_space<vmem>>, vector<1x1x32xf32>
    %210 = vector.shape_cast %209 : vector<1x1x32xf32> to vector<1x32xf32>
    %211 = vector.broadcast %210 : vector<1x32xf32> to vector<64x32xf32>
    %212 = arith.addf %208, %211 : vector<64x32xf32>
    %213 = math.tanh %205 : vector<64x32xf32>
    %214 = arith.negf %212 : vector<64x32xf32>
    %215 = math.exp %214 : vector<64x32xf32>
    %cst_120 = arith.constant 1.000000e+00 : f32
    %216 = vector.broadcast %cst_120 : f32 to vector<64x32xf32>
    %217 = arith.addf %216, %215 : vector<64x32xf32>
    %218 = arith.divf %216, %217 : vector<64x32xf32>
    %219 = arith.mulf %213, %218 : vector<64x32xf32>
    %220 = arith.truncf %219 : vector<64x32xf32> to vector<64x32xbf16>
    %c3_121 = arith.constant 3 : index
    %c0_122 = arith.constant 0 : index
    %c0_123 = arith.constant 0 : index
    %221 = vector.load %arg12[%c3_121, %c0_122, %c0_123] : memref<4x32x32xbf16, #tpu.memory_space<vmem>>, vector<1x32x32xbf16>
    %222 = vector.shape_cast %221 : vector<1x32x32xbf16> to vector<32x32xbf16>
    %cst_124 = arith.constant dense<0.000000e+00> : vector<64x32xf32>
    %223 = tpu.matmul %220, %222, %cst_124 {dimension_numbers = #tpu.dot_dimension_numbers<[1], [0], [0], [1], [0, 0, 1, 1], [], []>} : vector<64x32xbf16>, vector<32x32xbf16>, vector<64x32xf32> -> vector<64x32xf32>
    %c3_125 = arith.constant 3 : index
    %c0_126 = arith.constant 0 : index
    %c0_127 = arith.constant 0 : index
    %224 = vector.load %arg13[%c3_125, %c0_126, %c0_127] : memref<4x1x32xf32, #tpu.memory_space<vmem>>, vector<1x1x32xf32>
    %225 = vector.shape_cast %224 : vector<1x1x32xf32> to vector<1x32xf32>
    %226 = vector.broadcast %225 : vector<1x32xf32> to vector<64x32xf32>
    %227 = arith.addf %223, %226 : vector<64x32xf32>
    %228 = arith.addf %173, %227 : vector<64x32xf32>
    %229 = arith.mulf %228, %8 : vector<64x32xf32>
    %230 = arith.truncf %229 : vector<64x32xf32> to vector<64x32xbf16>
    %c0_128 = arith.constant 0 : index
    %c0_129 = arith.constant 0 : index
    %231 = vector.load %arg14[%c0_128, %c0_129] : memref<32x4xbf16, #tpu.memory_space<vmem>>, vector<32x4xbf16>
    %cst_130 = arith.constant dense<0.000000e+00> : vector<64x4xf32>
    %232 = tpu.matmul %230, %231, %cst_130 {dimension_numbers = #tpu.dot_dimension_numbers<[1], [0], [0], [1], [0, 0, 1, 1], [], []>} : vector<64x32xbf16>, vector<32x4xbf16>, vector<64x4xf32> -> vector<64x4xf32>
    %c0_131 = arith.constant 0 : index
    %c0_132 = arith.constant 0 : index
    %233 = vector.load %arg15[%c0_131, %c0_132] : memref<1x4xf32, #tpu.memory_space<vmem>>, vector<1x4xf32>
    %234 = vector.broadcast %233 : vector<1x4xf32> to vector<64x4xf32>
    %235 = arith.addf %232, %234 : vector<64x4xf32>
    %236 = arith.mulf %235, %10 : vector<64x4xf32>
    %c0_133 = arith.constant 0 : index
    %c0_134 = arith.constant 0 : index
    %237 = vector.load %arg16[%c0_133, %c0_134] : memref<32x4xbf16, #tpu.memory_space<vmem>>, vector<32x4xbf16>
    %cst_135 = arith.constant dense<0.000000e+00> : vector<64x4xf32>
    %238 = tpu.matmul %230, %237, %cst_135 {dimension_numbers = #tpu.dot_dimension_numbers<[1], [0], [0], [1], [0, 0, 1, 1], [], []>} : vector<64x32xbf16>, vector<32x4xbf16>, vector<64x4xf32> -> vector<64x4xf32>
    %c0_136 = arith.constant 0 : index
    %c0_137 = arith.constant 0 : index
    %239 = vector.load %arg17[%c0_136, %c0_137] : memref<1x4xf32, #tpu.memory_space<vmem>>, vector<1x4xf32>
    %240 = vector.broadcast %239 : vector<1x4xf32> to vector<64x4xf32>
    %241 = arith.addf %238, %240 : vector<64x4xf32>
    %242 = arith.mulf %241, %10 : vector<64x4xf32>
    %c0_138 = arith.constant 0 : index
    %c0_139 = arith.constant 0 : index
    %c0_140 = arith.constant 0 : index
    %243 = vector.load %arg3[%c0_138, %c0_139, %c0_140] : memref<1x64x4xf32, #tpu.memory_space<vmem>>, vector<1x64x4xf32>
    %244 = vector.shape_cast %243 : vector<1x64x4xf32> to vector<64x4xf32>
    %245 = math.exp %242 : vector<64x4xf32>
    %246 = arith.mulf %244, %245 : vector<64x4xf32>
    %247 = arith.addf %236, %246 : vector<64x4xf32>
    %248 = arith.mulf %247, %10 : vector<64x4xf32>
    %249 = tpu.concatenate %248, %236, %242 in 1 : vector<64x4xf32>, vector<64x4xf32>, vector<64x4xf32> -> vector<64x12xf32>
    %c0_141 = arith.constant 0 : index
    %c0_142 = arith.constant 0 : index
    %c0_143 = arith.constant 0 : index
    %250 = vector.load %arg18[%c0_141, %c0_142, %c0_143] : memref<1x64x12xf32, #tpu.memory_space<vmem>>, vector<1x64x12xf32>
    %251 = vector.shape_cast %250 : vector<1x64x12xf32> to vector<64x12xf32>
    %252 = vector.shape_cast %249 : vector<64x12xf32> to vector<1x64x12xf32>
    tpu.vector_store %arg18[%c0_141, %c0_142, %c0_143], %252 {strides = array<i32>} : memref<1x64x12xf32, #tpu.memory_space<vmem>>, vector<1x64x12xf32>,
    return
  }
  func.func @transform_0(%arg0: i32, %arg1: memref<2xi32, #tpu.memory_space<smem>>) -> (i32, i32, i32) {
    %c0_i32 = arith.constant 0 : i32
    %c0_i32_0 = arith.constant 0 : i32
    %c0_i32_1 = arith.constant 0 : i32
    return %arg0, %c0_i32, %c0_i32_0 : i32, i32, i32
  }
  func.func @transform_1(%arg0: i32, %arg1: memref<2xi32, #tpu.memory_space<smem>>) -> (i32, i32, i32) {
    %c0_i32 = arith.constant 0 : i32
    %c0_i32_0 = arith.constant 0 : i32
    %c0_i32_1 = arith.constant 0 : i32
    return %arg0, %c0_i32, %c0_i32_0 : i32, i32, i32
  }
  func.func @transform_2(%arg0: i32, %arg1: memref<2xi32, #tpu.memory_space<smem>>) -> (i32, i32) {
    %c0_i32 = arith.constant 0 : i32
    %c0_i32_0 = arith.constant 0 : i32
    %c0_i32_1 = arith.constant 0 : i32
    return %c0_i32, %c0_i32_0 : i32, i32
  }
  func.func @transform_3(%arg0: i32, %arg1: memref<2xi32, #tpu.memory_space<smem>>) -> (i32, i32) {
    %c0_i32 = arith.constant 0 : i32
    %c0_i32_0 = arith.constant 0 : i32
    %c0_i32_1 = arith.constant 0 : i32
    return %c0_i32, %c0_i32_0 : i32, i32
  }
  func.func @transform_4(%arg0: i32, %arg1: memref<2xi32, #tpu.memory_space<smem>>) -> (i32, i32, i32) {
    %c0_i32 = arith.constant 0 : i32
    %c0_i32_0 = arith.constant 0 : i32
    %c0_i32_1 = arith.constant 0 : i32
    %c0_i32_2 = arith.constant 0 : i32
    return %c0_i32, %c0_i32_0, %c0_i32_1 : i32, i32, i32
  }
  func.func @transform_5(%arg0: i32, %arg1: memref<2xi32, #tpu.memory_space<smem>>) -> (i32, i32, i32) {
    %c0_i32 = arith.constant 0 : i32
    %c0_i32_0 = arith.constant 0 : i32
    %c0_i32_1 = arith.constant 0 : i32
    %c0_i32_2 = arith.constant 0 : i32
    return %c0_i32, %c0_i32_0, %c0_i32_1 : i32, i32, i32
  }
  func.func @transform_6(%arg0: i32, %arg1: memref<2xi32, #tpu.memory_space<smem>>) -> (i32, i32, i32) {
    %c0_i32 = arith.constant 0 : i32
    %c0_i32_0 = arith.constant 0 : i32
    %c0_i32_1 = arith.constant 0 : i32
    %c0_i32_2 = arith.constant 0 : i32
    return %c0_i32, %c0_i32_0, %c0_i32_1 : i32, i32, i32
  }
  func.func @transform_7(%arg0: i32, %arg1: memref<2xi32, #tpu.memory_space<smem>>) -> (i32, i32, i32) {
    %c0_i32 = arith.constant 0 : i32
    %c0_i32_0 = arith.constant 0 : i32
    %c0_i32_1 = arith.constant 0 : i32
    %c0_i32_2 = arith.constant 0 : i32
    return %c0_i32, %c0_i32_0, %c0_i32_1 : i32, i32, i32
  }
  func.func @transform_8(%arg0: i32, %arg1: memref<2xi32, #tpu.memory_space<smem>>) -> (i32, i32, i32) {
    %c0_i32 = arith.constant 0 : i32
    %c0_i32_0 = arith.constant 0 : i32
    %c0_i32_1 = arith.constant 0 : i32
    %c0_i32_2 = arith.constant 0 : i32
    return %c0_i32, %c0_i32_0, %c0_i32_1 : i32, i32, i32
  }
  func.func @transform_9(%arg0: i32, %arg1: memref<2xi32, #tpu.memory_space<smem>>) -> (i32, i32, i32) {
    %c0_i32 = arith.constant 0 : i32
    %c0_i32_0 = arith.constant 0 : i32
    %c0_i32_1 = arith.constant 0 : i32
    %c0_i32_2 = arith.constant 0 : i32
    return %c0_i32, %c0_i32_0, %c0_i32_1 : i32, i32, i32
  }
  func.func @transform_10(%arg0: i32, %arg1: memref<2xi32, #tpu.memory_space<smem>>) -> (i32, i32, i32) {
    %c0_i32 = arith.constant 0 : i32
    %c0_i32_0 = arith.constant 0 : i32
    %c0_i32_1 = arith.constant 0 : i32
    %c0_i32_2 = arith.constant 0 : i32
    return %c0_i32, %c0_i32_0, %c0_i32_1 : i32, i32, i32
  }
  func.func @transform_11(%arg0: i32, %arg1: memref<2xi32, #tpu.memory_space<smem>>) -> (i32, i32, i32) {
    %c0_i32 = arith.constant 0 : i32
    %c0_i32_0 = arith.constant 0 : i32
    %c0_i32_1 = arith.constant 0 : i32
    %c0_i32_2 = arith.constant 0 : i32
    return %c0_i32, %c0_i32_0, %c0_i32_1 : i32, i32, i32
  }
  func.func @transform_12(%arg0: i32, %arg1: memref<2xi32, #tpu.memory_space<smem>>) -> (i32, i32) {
    %c0_i32 = arith.constant 0 : i32
    %c0_i32_0 = arith.constant 0 : i32
    %c0_i32_1 = arith.constant 0 : i32
    return %c0_i32, %c0_i32_0 : i32, i32
  }
  func.func @transform_13(%arg0: i32, %arg1: memref<2xi32, #tpu.memory_space<smem>>) -> (i32, i32) {
    %c0_i32 = arith.constant 0 : i32
    %c0_i32_0 = arith.constant 0 : i32
    %c0_i32_1 = arith.constant 0 : i32
    return %c0_i32, %c0_i32_0 : i32, i32
  }
  func.func @transform_14(%arg0: i32, %arg1: memref<2xi32, #tpu.memory_space<smem>>) -> (i32, i32) {
    %c0_i32 = arith.constant 0 : i32
    %c0_i32_0 = arith.constant 0 : i32
    %c0_i32_1 = arith.constant 0 : i32
    return %c0_i32, %c0_i32_0 : i32, i32
  }
  func.func @transform_15(%arg0: i32, %arg1: memref<2xi32, #tpu.memory_space<smem>>) -> (i32, i32) {
    %c0_i32 = arith.constant 0 : i32
    %c0_i32_0 = arith.constant 0 : i32
    %c0_i32_1 = arith.constant 0 : i32
    return %c0_i32, %c0_i32_0 : i32, i32
  }
  func.func @transform_16(%arg0: i32, %arg1: memref<2xi32, #tpu.memory_space<smem>>) -> (i32, i32, i32) {
    %c0_i32 = arith.constant 0 : i32
    %c0_i32_0 = arith.constant 0 : i32
    %c0_i32_1 = arith.constant 0 : i32
    return %arg0, %c0_i32, %c0_i32_0 : i32, i32, i32
  }
}

</mosaic_0001>

<llo_original>
// kernel: tpu_custom_call.1
$region0: #{tpu_custom_call.1}
  #allocation0 [shape = 'u32[]', space=smem, size = 0x4, offset = 0x4, fixed_abs, tag = 'smem constant byte address 0x4 - core index']
  #allocation1 [shape = 'u32[144,128]{1,0:T(1,128)}', space=vmem, size = 0x12000, scoped, tag = 'internal scratch']
  #allocation2 [shape = 's32[1]{0}', space=sflag, size = 0x4, scoped, tag = 'scoped memory for tpu_custom_call.1']
  #allocation3 [shape = 'u8[512]{0}', space=smem, size = 0x200, scoped, tag = 'prefetched SMEM operand 0']
  %s0 = inlined_call_operand.vmem [shape: s32[2], index: 0, kind: input, shape index: {}]
  %s1 = inlined_call_operand.vmem [shape: bf16[2,64,8], index: 1, kind: input, shape index: {}]
  %s2 = inlined_call_operand.vmem [shape: f32[2,64,4], index: 2, kind: input, shape index: {}]
  %s3 = inlined_call_operand.vmem [shape: bf16[8,32], index: 3, kind: input, shape index: {}]
  %s4 = inlined_call_operand.vmem [shape: f32[1,32], index: 4, kind: input, shape index: {}]
  %s5 = inlined_call_operand.vmem [shape: bf16[4,96,32], index: 5, kind: input, shape index: {}]
  %s6 = inlined_call_operand.vmem [shape: f32[4,1,32], index: 6, kind: input, shape index: {}]
  %s7 = inlined_call_operand.vmem [shape: bf16[4,96,32], index: 7, kind: input, shape index: {}]
  %s8 = inlined_call_operand.vmem [shape: f32[4,1,32], index: 8, kind: input, shape index: {}]
  %s9 = inlined_call_operand.vmem [shape: bf16[4,32,32], index: 9, kind: input, shape index: {}]
  %s10 = inlined_call_operand.vmem [shape: f32[4,1,32], index: 10, kind: input, shape index: {}]
  %s11 = inlined_call_operand.vmem [shape: bf16[4,32,32], index: 11, kind: input, shape index: {}]
  %s12 = inlined_call_operand.vmem [shape: f32[4,1,32], index: 12, kind: input, shape index: {}]
  %s13 = inlined_call_operand.vmem [shape: bf16[32,4], index: 13, kind: input, shape index: {}]
  %s14 = inlined_call_operand.vmem [shape: f32[1,4], index: 14, kind: input, shape index: {}]
  %s15 = inlined_call_operand.vmem [shape: bf16[32,4], index: 15, kind: input, shape index: {}]
  %s16 = inlined_call_operand.vmem [shape: f32[1,4], index: 16, kind: input, shape index: {}]
  %s17 = inlined_call_operand.vmem [shape: f32[2,64,12], index: 17, kind: output, shape index: {}]
  %s18 = sld [smem:[#allocation0]]
  $region97: #{tpu_custom_call.1} parent=0
    _
  %s20 = ssub.s32 1, %s18
  %s21 = scalar_select 0, %s20, %s18
  %s22 = sshll.u32 %s0, 4
  %s23 = int_to_ptr.vmem [resolvable:$true] %s22
  %25 = dma.vmem_to_smem %s23, 16, [#allocation3], [#allocation2]
  %26 = dma.done [#allocation2], 16
  %27 = sfence
  loop: start=0, step=1, limit=4
  $region2: #{tpu_custom_call.1} parent=0 // loop_pre_header
    _
  $region3: #{tpu_custom_call.1} parent=0 // loop_header
    %s29 = sphi 0, %s33
    %p30 = scmp.ge.s32.totalorder %s29, 4
    %s39 = sphi 0, %s41
    %s42 = sphi 0, %s39
    %s43 = sphi 0, %s42
    %s59 = sphi 0, %s43
    %s65 = sphi 0, %s67
    %s68 = sphi 0, %s65
    %s69 = sphi 0, %s68
    %s85 = sphi 0, %s69
    %s89 = sphi 0, %s89
    %s91 = sphi 0, %s89
    %s92 = sphi 0, %s91
    %s106 = sphi 0, %s92
    %s110 = sphi 0, %s110
    %s112 = sphi 0, %s110
    %s113 = sphi 0, %s112
    %s127 = sphi 0, %s113
    %s131 = sphi 0, %s131
    %s133 = sphi 0, %s131
    %s134 = sphi 0, %s133
    %s148 = sphi 0, %s134
    %s152 = sphi 0, %s152
    %s154 = sphi 0, %s152
    %s155 = sphi 0, %s154
    %s169 = sphi 0, %s155
    %s173 = sphi 0, %s173
    %s175 = sphi 0, %s173
    %s176 = sphi 0, %s175
    %s190 = sphi 0, %s176
    %s194 = sphi 0, %s194
    %s196 = sphi 0, %s194
    %s197 = sphi 0, %s196
    %s211 = sphi 0, %s197
    %s215 = sphi 0, %s215
    %s217 = sphi 0, %s215
    %s218 = sphi 0, %s217
    %s232 = sphi 0, %s218
    %s236 = sphi 0, %s236
    %s238 = sphi 0, %s236
    %s239 = sphi 0, %s238
    %s253 = sphi 0, %s239
    %s257 = sphi 0, %s257
    %s259 = sphi 0, %s257
    %s260 = sphi 0, %s259
    %s274 = sphi 0, %s260
    %s278 = sphi 0, %s278
    %s280 = sphi 0, %s278
    %s281 = sphi 0, %s280
    %s295 = sphi 0, %s281
    %s299 = sphi 0, %s299
    %s301 = sphi 0, %s299
    %s302 = sphi 0, %s301
    %s316 = sphi 0, %s302
    %s320 = sphi 0, %s320
    %s322 = sphi 0, %s320
    %s323 = sphi 0, %s322
    %s337 = sphi 0, %s323
    %s341 = sphi 0, %s341
    %s343 = sphi 0, %s341
    %s344 = sphi 0, %s343
    %s358 = sphi 0, %s344
    %s362 = sphi 0, %s362
    %s364 = sphi 0, %s362
    %s365 = sphi 0, %s364
    %s379 = sphi 0, %s365
    %s385 = sphi 0, %s387
    %s388 = sphi 0, %s385
    %s389 = sphi 0, %s388
    %s405 = sphi 0, %s389
  $region4: #{tpu_custom_call.1} parent=0 // loop_header_branch
    %32 = sbr.rel (%p30) target = $region8
  $region5: #{tpu_custom_call.1} parent=0 // loop_body
    %s34 = ssub.s32 %s29, 1
    %s35 = ssub.s32 %s29, 2
    %s36 = sadd.s32 %s29, 1
    %s37 = ssub.s32 %s29, %s36
    %p38 = scmp.eq.s32.totalorder %s37, 0
    %s40 = sadd.s32 %s39, 1
    %s41 = scalar_select %p38, %s39, %s40
    %p44 = pneg %p38
    %p45 = scmp.eq.s32.totalorder %s29, 1
    %p46 = por %p44, %p45
    %p47 = scmp.ne.s32.totalorder %s39, %s42
    %p48 = scmp.eq.s32.totalorder %s29, 0
    %p49 = por %p47, %p48
    %p50 = scmp.ne.s32.totalorder %s39, %s42
    %p51 = scmp.eq.s32.totalorder %s34, 1
    %p52 = por %p50, %p51
    %p53 = scmp.ne.s32.totalorder %s42, %s43
    %p54 = scmp.eq.s32.totalorder %s34, 0
    %p55 = por %p53, %p54
    %p56 = scmp.ne.s32.totalorder %s42, %s43
    %p57 = scmp.eq.s32.totalorder %s35, 1
    %p58 = por %p56, %p57
    %p60 = scmp.ne.s32.totalorder %s43, %s59
    %p61 = scmp.eq.s32.totalorder %s35, 0
    %p62 = por %p60, %p61
    %s63 = ssub.s32 %s29, %s36
    %p64 = scmp.eq.s32.totalorder %s63, 0
    %s66 = sadd.s32 %s65, 1
    %s67 = scalar_select %p64, %s65, %s66
    %p70 = pneg %p64
    %p71 = scmp.eq.s32.totalorder %s29, 1
    %p72 = por %p70, %p71
    %p73 = scmp.ne.s32.totalorder %s65, %s68
    %p74 = scmp.eq.s32.totalorder %s29, 0
    %p75 = por %p73, %p74
    %p76 = scmp.ne.s32.totalorder %s65, %s68
    %p77 = scmp.eq.s32.totalorder %s34, 1
    %p78 = por %p76, %p77
    %p79 = scmp.ne.s32.totalorder %s68, %s69
    %p80 = scmp.eq.s32.totalorder %s34, 0
    %p81 = por %p79, %p80
    %p82 = scmp.ne.s32.totalorder %s68, %s69
    %p83 = scmp.eq.s32.totalorder %s35, 1
    %p84 = por %p82, %p83
    %p86 = scmp.ne.s32.totalorder %s69, %s85
    %p87 = scmp.eq.s32.totalorder %s35, 0
    %p88 = por %p86, %p87
    %s90 = sadd.s32 %s89, 1
    %p93 = scmp.eq.s32.totalorder %s29, 1
    %p94 = scmp.ne.s32.totalorder %s89, %s91
    %p95 = scmp.eq.s32.totalorder %s29, 0
    %p96 = por %p94, %p95
    %p97 = scmp.ne.s32.totalorder %s89, %s91
    %p98 = scmp.eq.s32.totalorder %s34, 1
    %p99 = por %p97, %p98
    %p100 = scmp.ne.s32.totalorder %s91, %s92
    %p101 = scmp.eq.s32.totalorder %s34, 0
    %p102 = por %p100, %p101
    %p103 = scmp.ne.s32.totalorder %s91, %s92
    %p104 = scmp.eq.s32.totalorder %s35, 1
    %p105 = por %p103, %p104
    %p107 = scmp.ne.s32.totalorder %s92, %s106
    %p108 = scmp.eq.s32.totalorder %s35, 0
    %p109 = por %p107, %p108
    %s111 = sadd.s32 %s110, 1
    %p114 = scmp.eq.s32.totalorder %s29, 1
    %p115 = scmp.ne.s32.totalorder %s110, %s112
    %p116 = scmp.eq.s32.totalorder %s29, 0
    %p117 = por %p115, %p116
    %p118 = scmp.ne.s32.totalorder %s110, %s112
    %p119 = scmp.eq.s32.totalorder %s34, 1
    %p120 = por %p118, %p119
    %p121 = scmp.ne.s32.totalorder %s112, %s113
    %p122 = scmp.eq.s32.totalorder %s34, 0
    %p123 = por %p121, %p122
    %p124 = scmp.ne.s32.totalorder %s112, %s113
    %p125 = scmp.eq.s32.totalorder %s35, 1
    %p126 = por %p124, %p125
    %p128 = scmp.ne.s32.totalorder %s113, %s127
    %p129 = scmp.eq.s32.totalorder %s35, 0
    %p130 = por %p128, %p129
    %s132 = sadd.s32 %s131, 1
    %p135 = scmp.eq.s32.totalorder %s29, 1
    %p136 = scmp.ne.s32.totalorder %s131, %s133
    %p137 = scmp.eq.s32.totalorder %s29, 0
    %p138 = por %p136, %p137
    %p139 = scmp.ne.s32.totalorder %s131, %s133
    %p140 = scmp.eq.s32.totalorder %s34, 1
    %p141 = por %p139, %p140
    %p142 = scmp.ne.s32.totalorder %s133, %s134
    %p143 = scmp.eq.s32.totalorder %s34, 0
    %p144 = por %p142, %p143
    %p145 = scmp.ne.s32.totalorder %s133, %s134
    %p146 = scmp.eq.s32.totalorder %s35, 1
    %p147 = por %p145, %p146
    %p149 = scmp.ne.s32.totalorder %s134, %s148
    %p150 = scmp.eq.s32.totalorder %s35, 0
    %p151 = por %p149, %p150
    %s153 = sadd.s32 %s152, 1
    %p156 = scmp.eq.s32.totalorder %s29, 1
    %p157 = scmp.ne.s32.totalorder %s152, %s154
    %p158 = scmp.eq.s32.totalorder %s29, 0
    %p159 = por %p157, %p158
    %p160 = scmp.ne.s32.totalorder %s152, %s154
    %p161 = scmp.eq.s32.totalorder %s34, 1
    %p162 = por %p160, %p161
    %p163 = scmp.ne.s32.totalorder %s154, %s155
    %p164 = scmp.eq.s32.totalorder %s34, 0
    %p165 = por %p163, %p164
    %p166 = scmp.ne.s32.totalorder %s154, %s155
    %p167 = scmp.eq.s32.totalorder %s35, 1
    %p168 = por %p166, %p167
    %p170 = scmp.ne.s32.totalorder %s155, %s169
    %p171 = scmp.eq.s32.totalorder %s35, 0
    %p172 = por %p170, %p171
    %s174 = sadd.s32 %s173, 1
    %p177 = scmp.eq.s32.totalorder %s29, 1
    %p178 = scmp.ne.s32.totalorder %s173, %s175
    %p179 = scmp.eq.s32.totalorder %s29, 0
    %p180 = por %p178, %p179
    %p181 = scmp.ne.s32.totalorder %s173, %s175
    %p182 = scmp.eq.s32.totalorder %s34, 1
    %p183 = por %p181, %p182
    %p184 = scmp.ne.s32.totalorder %s175, %s176
    %p185 = scmp.eq.s32.totalorder %s34, 0
    %p186 = por %p184, %p185
    %p187 = scmp.ne.s32.totalorder %s175, %s176
    %p188 = scmp.eq.s32.totalorder %s35, 1
    %p189 = por %p187, %p188
    %p191 = scmp.ne.s32.totalorder %s176, %s190
    %p192 = scmp.eq.s32.totalorder %s35, 0
    %p193 = por %p191, %p192
    %s195 = sadd.s32 %s194, 1
    %p198 = scmp.eq.s32.totalorder %s29, 1
    %p199 = scmp.ne.s32.totalorder %s194, %s196
    %p200 = scmp.eq.s32.totalorder %s29, 0
    %p201 = por %p199, %p200
    %p202 = scmp.ne.s32.totalorder %s194, %s196
    %p203 = scmp.eq.s32.totalorder %s34, 1
    %p204 = por %p202, %p203
    %p205 = scmp.ne.s32.totalorder %s196, %s197
    %p206 = scmp.eq.s32.totalorder %s34, 0
    %p207 = por %p205, %p206
    %p208 = scmp.ne.s32.totalorder %s196, %s197
    %p209 = scmp.eq.s32.totalorder %s35, 1
    %p210 = por %p208, %p209
    %p212 = scmp.ne.s32.totalorder %s197, %s211
    %p213 = scmp.eq.s32.totalorder %s35, 0
    %p214 = por %p212, %p213
    %s216 = sadd.s32 %s215, 1
    %p219 = scmp.eq.s32.totalorder %s29, 1
    %p220 = scmp.ne.s32.totalorder %s215, %s217
    %p221 = scmp.eq.s32.totalorder %s29, 0
    %p222 = por %p220, %p221
    %p223 = scmp.ne.s32.totalorder %s215, %s217
    %p224 = scmp.eq.s32.totalorder %s34, 1
    %p225 = por %p223, %p224
    %p226 = scmp.ne.s32.totalorder %s217, %s218
    %p227 = scmp.eq.s32.totalorder %s34, 0
    %p228 = por %p226, %p227
    %p229 = scmp.ne.s32.totalorder %s217, %s218
    %p230 = scmp.eq.s32.totalorder %s35, 1
    %p231 = por %p229, %p230
    %p233 = scmp.ne.s32.totalorder %s218, %s232
    %p234 = scmp.eq.s32.totalorder %s35, 0
    %p235 = por %p233, %p234
    %s237 = sadd.s32 %s236, 1
    %p240 = scmp.eq.s32.totalorder %s29, 1
    %p241 = scmp.ne.s32.totalorder %s236, %s238
    %p242 = scmp.eq.s32.totalorder %s29, 0
    %p243 = por %p241, %p242
    %p244 = scmp.ne.s32.totalorder %s236, %s238
    %p245 = scmp.eq.s32.totalorder %s34, 1
    %p246 = por %p244, %p245
    %p247 = scmp.ne.s32.totalorder %s238, %s239
    %p248 = scmp.eq.s32.totalorder %s34, 0
    %p249 = por %p247, %p248
    %p250 = scmp.ne.s32.totalorder %s238, %s239
    %p251 = scmp.eq.s32.totalorder %s35, 1
    %p252 = por %p250, %p251
    %p254 = scmp.ne.s32.totalorder %s239, %s253
    %p255 = scmp.eq.s32.totalorder %s35, 0
    %p256 = por %p254, %p255
    %s258 = sadd.s32 %s257, 1
    %p261 = scmp.eq.s32.totalorder %s29, 1
    %p262 = scmp.ne.s32.totalorder %s257, %s259
    %p263 = scmp.eq.s32.totalorder %s29, 0
    %p264 = por %p262, %p263
    %p265 = scmp.ne.s32.totalorder %s257, %s259
    %p266 = scmp.eq.s32.totalorder %s34, 1
    %p267 = por %p265, %p266
    %p268 = scmp.ne.s32.totalorder %s259, %s260
    %p269 = scmp.eq.s32.totalorder %s34, 0
    %p270 = por %p268, %p269
    %p271 = scmp.ne.s32.totalorder %s259, %s260
    %p272 = scmp.eq.s32.totalorder %s35, 1
    %p273 = por %p271, %p272
    %p275 = scmp.ne.s32.totalorder %s260, %s274
    %p276 = scmp.eq.s32.totalorder %s35, 0
    %p277 = por %p275, %p276
    %s279 = sadd.s32 %s278, 1
    %p282 = scmp.eq.s32.totalorder %s29, 1
    %p283 = scmp.ne.s32.totalorder %s278, %s280
    %p284 = scmp.eq.s32.totalorder %s29, 0
    %p285 = por %p283, %p284
    %p286 = scmp.ne.s32.totalorder %s278, %s280
    %p287 = scmp.eq.s32.totalorder %s34, 1
    %p288 = por %p286, %p287
    %p289 = scmp.ne.s32.totalorder %s280, %s281
    %p290 = scmp.eq.s32.totalorder %s34, 0
    %p291 = por %p289, %p290
    %p292 = scmp.ne.s32.totalorder %s280, %s281
    %p293 = scmp.eq.s32.totalorder %s35, 1
    %p294 = por %p292, %p293
    %p296 = scmp.ne.s32.totalorder %s281, %s295
    %p297 = scmp.eq.s32.totalorder %s35, 0
    %p298 = por %p296, %p297
    %s300 = sadd.s32 %s299, 1
    %p303 = scmp.eq.s32.totalorder %s29, 1
    %p304 = scmp.ne.s32.totalorder %s299, %s301
    %p305 = scmp.eq.s32.totalorder %s29, 0
    %p306 = por %p304, %p305
    %p307 = scmp.ne.s32.totalorder %s299, %s301
    %p308 = scmp.eq.s32.totalorder %s34, 1
    %p309 = por %p307, %p308
    %p310 = scmp.ne.s32.totalorder %s301, %s302
    %p311 = scmp.eq.s32.totalorder %s34, 0
    %p312 = por %p310, %p311
    %p313 = scmp.ne.s32.totalorder %s301, %s302
    %p314 = scmp.eq.s32.totalorder %s35, 1
    %p315 = por %p313, %p314
    %p317 = scmp.ne.s32.totalorder %s302, %s316
    %p318 = scmp.eq.s32.totalorder %s35, 0
    %p319 = por %p317, %p318
    %s321 = sadd.s32 %s320, 1
    %p324 = scmp.eq.s32.totalorder %s29, 1
    %p325 = scmp.ne.s32.totalorder %s320, %s322
    %p326 = scmp.eq.s32.totalorder %s29, 0
    %p327 = por %p325, %p326
    %p328 = scmp.ne.s32.totalorder %s320, %s322
    %p329 = scmp.eq.s32.totalorder %s34, 1
    %p330 = por %p328, %p329
    %p331 = scmp.ne.s32.totalorder %s322, %s323
    %p332 = scmp.eq.s32.totalorder %s34, 0
    %p333 = por %p331, %p332
    %p334 = scmp.ne.s32.totalorder %s322, %s323
    %p335 = scmp.eq.s32.totalorder %s35, 1
    %p336 = por %p334, %p335
    %p338 = scmp.ne.s32.totalorder %s323, %s337
    %p339 = scmp.eq.s32.totalorder %s35, 0
    %p340 = por %p338, %p339
    %s342 = sadd.s32 %s341, 1
    %p345 = scmp.eq.s32.totalorder %s29, 1
    %p346 = scmp.ne.s32.totalorder %s341, %s343
    %p347 = scmp.eq.s32.totalorder %s29, 0
    %p348 = por %p346, %p347
    %p349 = scmp.ne.s32.totalorder %s341, %s343
    %p350 = scmp.eq.s32.totalorder %s34, 1
    %p351 = por %p349, %p350
    %p352 = scmp.ne.s32.totalorder %s343, %s344
    %p353 = scmp.eq.s32.totalorder %s34, 0
    %p354 = por %p352, %p353
    %p355 = scmp.ne.s32.totalorder %s343, %s344
    %p356 = scmp.eq.s32.totalorder %s35, 1
    %p357 = por %p355, %p356
    %p359 = scmp.ne.s32.totalorder %s344, %s358
    %p360 = scmp.eq.s32.totalorder %s35, 0
    %p361 = por %p359, %p360
    %s363 = sadd.s32 %s362, 1
    %p366 = scmp.eq.s32.totalorder %s29, 1
    %p367 = scmp.ne.s32.totalorder %s362, %s364
    %p368 = scmp.eq.s32.totalorder %s29, 0
    %p369 = por %p367, %p368
    %p370 = scmp.ne.s32.totalorder %s362, %s364
    %p371 = scmp.eq.s32.totalorder %s34, 1
    %p372 = por %p370, %p371
    %p373 = scmp.ne.s32.totalorder %s364, %s365
    %p374 = scmp.eq.s32.totalorder %s34, 0
    %p375 = por %p373, %p374
    %p376 = scmp.ne.s32.totalorder %s364, %s365
    %p377 = scmp.eq.s32.totalorder %s35, 1
    %p378 = por %p376, %p377
    %p380 = scmp.ne.s32.totalorder %s365, %s379
    %p381 = scmp.eq.s32.totalorder %s35, 0
    %p382 = por %p380, %p381
    %s383 = ssub.s32 %s29, %s36
    %p384 = scmp.eq.s32.totalorder %s383, 0
    %s386 = sadd.s32 %s385, 1
    %s387 = scalar_select %p384, %s385, %s386
    %p390 = pneg %p384
    %p391 = scmp.eq.s32.totalorder %s29, 1
    %p392 = por %p390, %p391
    %p393 = scmp.ne.s32.totalorder %s385, %s388
    %p394 = scmp.eq.s32.totalorder %s29, 0
    %p395 = por %p393, %p394
    %p396 = scmp.ne.s32.totalorder %s385, %s388
    %p397 = scmp.eq.s32.totalorder %s34, 1
    %p398 = por %p396, %p397
    %p399 = scmp.ne.s32.totalorder %s388, %s389
    %p400 = scmp.eq.s32.totalorder %s34, 0
    %p401 = por %p399, %p400
    %p402 = scmp.ne.s32.totalorder %s388, %s389
    %p403 = scmp.eq.s32.totalorder %s35, 1
    %p404 = por %p402, %p403
    %p406 = scmp.ne.s32.totalorder %s389, %s405
    %p407 = scmp.eq.s32.totalorder %s35, 0
    %p408 = por %p406, %p407
    %p409 = scmp.le.s32.totalorder 1, %s29
    %p410 = scmp.lt.s32.totalorder %s29, 3
    %p411 = pnand %p409, %p410
    %p412 = pneg %p411
    // Predicated region
    $region9: #{tpu_custom_call.1} parent=5 // pred_check
      _
    $region10: #{tpu_custom_call.1} parent=5 // pred_check_branch
      %414 = sbr.rel (%p411) target = $region12
    $region11: #{tpu_custom_call.1} parent=5 // pred_region
      %s415 = ssub.s32 %s29, 1
      // Predicated region
      $region13: #{tpu_custom_call.1} parent=11 // pred_check
        %p416 = pneg %p102
      $region14: #{tpu_custom_call.1} parent=11 // pred_check_branch
        %418 = sbr.rel (%p416) target = $region16
      $region15: #{tpu_custom_call.1} parent=11 // pred_region
        _
      $region16: #{tpu_custom_call.1} parent=11 // pred_fallthru
        _
      // Predicated region
      $region17: #{tpu_custom_call.1} parent=11 // pred_check
        %p419 = pneg %p123
      $region18: #{tpu_custom_call.1} parent=11 // pred_check_branch
        %421 = sbr.rel (%p419) target = $region20
      $region19: #{tpu_custom_call.1} parent=11 // pred_region
        _
      $region20: #{tpu_custom_call.1} parent=11 // pred_fallthru
        _
      // Predicated region
      $region21: #{tpu_custom_call.1} parent=11 // pred_check
        %p422 = pneg %p144
      $region22: #{tpu_custom_call.1} parent=11 // pred_check_branch
        %424 = sbr.rel (%p422) target = $region24
      $region23: #{tpu_custom_call.1} parent=11 // pred_region
        _
      $region24: #{tpu_custom_call.1} parent=11 // pred_fallthru
        _
      // Predicated region
      $region25: #{tpu_custom_call.1} parent=11 // pred_check
        %p425 = pneg %p165
      $region26: #{tpu_custom_call.1} parent=11 // pred_check_branch
        %427 = sbr.rel (%p425) target = $region28
      $region27: #{tpu_custom_call.1} parent=11 // pred_region
        _
      $region28: #{tpu_custom_call.1} parent=11 // pred_fallthru
        _
      // Predicated region
      $region29: #{tpu_custom_call.1} parent=11 // pred_check
        %p428 = pneg %p186
      $region30: #{tpu_custom_call.1} parent=11 // pred_check_branch
        %430 = sbr.rel (%p428) target = $region32
      $region31: #{tpu_custom_call.1} parent=11 // pred_region
        _
      $region32: #{tpu_custom_call.1} parent=11 // pred_fallthru
        _
      // Predicated region
      $region33: #{tpu_custom_call.1} parent=11 // pred_check
        %p431 = pneg %p207
      $region34: #{tpu_custom_call.1} parent=11 // pred_check_branch
        %433 = sbr.rel (%p431) target = $region36
      $region35: #{tpu_custom_call.1} parent=11 // pred_region
        _
      $region36: #{tpu_custom_call.1} parent=11 // pred_fallthru
        _
      // Predicated region
      $region37: #{tpu_custom_call.1} parent=11 // pred_check
        %p434 = pneg %p228
      $region38: #{tpu_custom_call.1} parent=11 // pred_check_branch
        %436 = sbr.rel (%p434) target = $region40
      $region39: #{tpu_custom_call.1} parent=11 // pred_region
        _
      $region40: #{tpu_custom_call.1} parent=11 // pred_fallthru
        _
      // Predicated region
      $region41: #{tpu_custom_call.1} parent=11 // pred_check
        %p437 = pneg %p249
      $region42: #{tpu_custom_call.1} parent=11 // pred_check_branch
        %439 = sbr.rel (%p437) target = $region44
      $region43: #{tpu_custom_call.1} parent=11 // pred_region
        _
      $region44: #{tpu_custom_call.1} parent=11 // pred_fallthru
        _
      // Predicated region
      $region45: #{tpu_custom_call.1} parent=11 // pred_check
        %p440 = pneg %p270
      $region46: #{tpu_custom_call.1} parent=11 // pred_check_branch
        %442 = sbr.rel (%p440) target = $region48
      $region47: #{tpu_custom_call.1} parent=11 // pred_region
        _
      $region48: #{tpu_custom_call.1} parent=11 // pred_fallthru
        _
      // Predicated region
      $region49: #{tpu_custom_call.1} parent=11 // pred_check
        %p443 = pneg %p291
      $region50: #{tpu_custom_call.1} parent=11 // pred_check_branch
        %445 = sbr.rel (%p443) target = $region52
      $region51: #{tpu_custom_call.1} parent=11 // pred_region
        _
      $region52: #{tpu_custom_call.1} parent=11 // pred_fallthru
        _
      // Predicated region
      $region53: #{tpu_custom_call.1} parent=11 // pred_check
        %p446 = pneg %p312
      $region54: #{tpu_custom_call.1} parent=11 // pred_check_branch
        %448 = sbr.rel (%p446) target = $region56
      $region55: #{tpu_custom_call.1} parent=11 // pred_region
        _
      $region56: #{tpu_custom_call.1} parent=11 // pred_fallthru
        _
      // Predicated region
      $region57: #{tpu_custom_call.1} parent=11 // pred_check
        %p449 = pneg %p333
      $region58: #{tpu_custom_call.1} parent=11 // pred_check_branch
        %451 = sbr.rel (%p449) target = $region60
      $region59: #{tpu_custom_call.1} parent=11 // pred_region
        _
      $region60: #{tpu_custom_call.1} parent=11 // pred_fallthru
        _
      // Predicated region
      $region61: #{tpu_custom_call.1} parent=11 // pred_check
        %p452 = pneg %p354
      $region62: #{tpu_custom_call.1} parent=11 // pred_check_branch
        %454 = sbr.rel (%p452) target = $region64
      $region63: #{tpu_custom_call.1} parent=11 // pred_region
        _
      $region64: #{tpu_custom_call.1} parent=11 // pred_fallthru
        _
      // Predicated region
      $region65: #{tpu_custom_call.1} parent=11 // pred_check
        %p455 = pneg %p375
      $region66: #{tpu_custom_call.1} parent=11 // pred_check_branch
        %457 = sbr.rel (%p455) target = $region68
      $region67: #{tpu_custom_call.1} parent=11 // pred_region
        _
      $region68: #{tpu_custom_call.1} parent=11 // pred_fallthru
        _
    $region12: #{tpu_custom_call.1} parent=5 // pred_fallthru
      _
    %p458 = scmp.lt.s32.totalorder %s29, 2
    // Predicated region
    $region69: #{tpu_custom_call.1} parent=5 // pred_check
      %p459 = pneg %p458
    $region70: #{tpu_custom_call.1} parent=5 // pred_check_branch
      %461 = sbr.rel (%p459) target = $region72
    $region71: #{tpu_custom_call.1} parent=5 // pred_region
      // Predicated region
      $region73: #{tpu_custom_call.1} parent=71 // pred_check
        %p462 = pneg %p49
      $region74: #{tpu_custom_call.1} parent=71 // pred_check_branch
        %464 = sbr.rel (%p462) target = $region76
      $region75: #{tpu_custom_call.1} parent=71 // pred_region
        %p465 = scmp.lt.s32.totalorder %s29, 1
        %s466 = scalar_select %p465, %s29, 1
        %s467 = smul.addr %s466, 8
        %s468 = smul.addr %s467, 4
        %s469 = scalar_lea.vmem %s1, %s468
      $region76: #{tpu_custom_call.1} parent=71 // pred_fallthru
        _
      // Predicated region
      $region77: #{tpu_custom_call.1} parent=71 // pred_check
        %p470 = pneg %p75
      $region78: #{tpu_custom_call.1} parent=71 // pred_check_branch
        %472 = sbr.rel (%p470) target = $region80
      $region79: #{tpu_custom_call.1} parent=71 // pred_region
        %p473 = scmp.lt.s32.totalorder %s29, 1
        %s474 = scalar_select %p473, %s29, 1
        %s475 = smul.addr %s474, 8
        %s476 = smul.addr %s475, 8
        %s477 = scalar_lea.vmem %s2, %s476
      $region80: #{tpu_custom_call.1} parent=71 // pred_fallthru
        _
    $region72: #{tpu_custom_call.1} parent=5 // pred_fallthru
      _
    %p478 = scmp.le.s32.totalorder 1, %s29
    %p479 = scmp.lt.s32.totalorder %s29, 3
    %p480 = pnand %p478, %p479
    %p481 = pneg %p480
    // Predicated region
    $region81: #{tpu_custom_call.1} parent=5 // pred_check
      _
    $region82: #{tpu_custom_call.1} parent=5 // pred_check_branch
      %483 = sbr.rel (%p480) target = $region84
    $region83: #{tpu_custom_call.1} parent=5 // pred_region
      %s484 = ssub.s32 %s29, 1
      %p485 = scmp.lt.s32.totalorder %s34, 1
      %s486 = scalar_select %p485, %s34, 1
      %s487 = smul.addr %s486, 8
      %s488 = smul.addr %s487, 4
      %s489 = scalar_lea.vmem %s1, %s488
      %p490 = pneg %p55
      %p491 = pneg %p52
      %p492 = scmp.lt.s32.totalorder %s34, 1
      %s493 = scalar_select %p492, %s34, 1
      %s494 = smul.addr %s493, 8
      %s495 = smul.addr %s494, 8
      %s496 = scalar_lea.vmem %s2, %s495
      %p497 = pneg %p81
      %p498 = pneg %p78
      %p499 = pneg %p102
      %p500 = pneg %p99
      %p501 = pneg %p123
      %p502 = pneg %p120
      %p503 = pneg %p144
      %p504 = pneg %p141
      %p505 = pneg %p165
      %p506 = pneg %p162
      %p507 = pneg %p186
      %p508 = pneg %p183
      %p509 = pneg %p207
      %p510 = pneg %p204
      %p511 = pneg %p228
      %p512 = pneg %p225
      %p513 = pneg %p249
      %p514 = pneg %p246
      %p515 = pneg %p270
      %p516 = pneg %p267
      %p517 = pneg %p291
      %p518 = pneg %p288
      %p519 = pneg %p312
      %p520 = pneg %p309
      %p521 = pneg %p333
      %p522 = pneg %p330
      %p523 = pneg %p354
      %p524 = pneg %p351
      %p525 = pneg %p375
      %p526 = pneg %p372
      %p527 = pneg %p401
      %p528 = pneg %p398
      %p529 = scmp.lt.s32.totalorder %s34, 1
      %s530 = scalar_select %p529, %s34, 1
      %s531 = smul.addr %s530, 8
      %s532 = smul.addr %s531, 8
      %s533 = scalar_lea.vmem %s17, %s532
      %p534 = scmp.lt.s32.totalorder %s34, 1
      %s535 = scalar_select %p534, %s34, 1
      %s536 = smul.addr %s535, 8
      %s537 = smul.addr %s536, 4
      %s538 = scalar_lea.vmem %s1, %s537
      %p539 = scmp.lt.s32.totalorder %s34, 1
      %s540 = scalar_select %p539, %s34, 1
      %s541 = smul.addr %s540, 8
      %s542 = smul.addr %s541, 8
      %s543 = scalar_lea.vmem %s2, %s542
      %p544 = scmp.lt.s32.totalorder %s34, 1
      %s545 = scalar_select %p544, %s34, 1
      %s546 = smul.addr %s545, 8
      %s547 = smul.addr %s546, 8
      %s548 = scalar_lea.vmem %s17, %s547
      %s550 = sld [smem:[#allocation3 + %s34]]
      %v551 = vlaneseq
      %v552 = vshrl.u32 %v551, 7
      %v553 = vadd.s32 %v552, 8
      %v554 = vadd.s32 %v552, 16
      %v555 = vadd.s32 %v552, 24
      %v556 = vadd.s32 %v552, 32
      %v557 = vadd.s32 %v552, 40
      %v558 = vadd.s32 %v552, 48
      %v559 = vadd.s32 %v552, 56
      %v560 = vstv %s550
      %vm561 = vcmp.lt.s32.totalorder %v552, %v560
      %vm562 = vcmp.lt.s32.totalorder %v553, %v560
      %vm563 = vcmp.lt.s32.totalorder %v554, %v560
      %vm564 = vcmp.lt.s32.totalorder %v555, %v560
      %vm565 = vcmp.lt.s32.totalorder %v556, %v560
      %vm566 = vcmp.lt.s32.totalorder %v557, %v560
      %vm567 = vcmp.lt.s32.totalorder %v558, %v560
      %vm568 = vcmp.lt.s32.totalorder %v559, %v560
      %v569 = vsel %vm561, 1, 0
      %v570 = vsel %vm562, 1, 0
      %v571 = vsel %vm563, 1, 0
      %v572 = vsel %vm564, 1, 0
      %v573 = vsel %vm565, 1, 0
      %v574 = vsel %vm566, 1, 0
      %v575 = vsel %vm567, 1, 0
      %v576 = vsel %vm568, 1, 0
      %v577 = vcvt.s32.f32 %v569
      %v578 = vcvt.s32.f32 %v570
      %v579 = vcvt.s32.f32 %v571
      %v580 = vcvt.s32.f32 %v572
      %v581 = vcvt.s32.f32 %v573
      %v582 = vcvt.s32.f32 %v574
      %v583 = vcvt.s32.f32 %v575
      %v584 = vcvt.s32.f32 %v576
      %v585 = vld [vmem:[%s538] sm:$0xf]
      %v586 = vld [vmem:[%s538 + $0x4] sm:$0xf]
      %v587 = vld [vmem:[%s538 + $0x8] sm:$0xf]
      %v588 = vld [vmem:[%s538 + $0xc] sm:$0xf]
      %v589 = vld [vmem:[%s538 + $0x10] sm:$0xf]
      %v590 = vld [vmem:[%s538 + $0x14] sm:$0xf]
      %v591 = vld [vmem:[%s538 + $0x18] sm:$0xf]
      %v592 = vld [vmem:[%s538 + $0x1c] sm:$0xf]
      %v593 = vld [vmem:[%s3] sm:$0xf]
      %v594 = vld [vmem:[%s4] sm:$0x1]
      %v596 = vlaneseq
      %v597 = vshrl.u32 %v596, 7
      %v598 = vsub.s32 0, %v597
      %v599 = vrot.slane %v594, %v598
      %v609 = vunpack.c.l.b16 %v585
      %v610 = vunpack.c.l.b16 %v586
      %v611 = vunpack.c.l.b16 %v587
      %v612 = vunpack.c.l.b16 %v588
      %v613 = vunpack.c.l.b16 %v589
      %v614 = vunpack.c.l.b16 %v590
      %v615 = vunpack.c.l.b16 %v591
      %v616 = vunpack.c.l.b16 %v592
      %v617 = vpack.c.b16 %v610, %v609
      %v618 = vpack.c.b16 %v612, %v611
      %v619 = vpack.c.b16 %v614, %v613
      %v620 = vpack.c.b16 %v616, %v615
      %vm621 = vcmask 64512
      %v623 = vsel %vm621, %v617, 0
      %v626 = vsel %vm621, %v618, 0
      %v629 = vsel %vm621, %v619, 0
      %v632 = vsel %vm621, %v620, 0
      %vm634 = vcmask 1043456
      %v636 = vsel %vm634, %v593, 0
      %638 = vmatprep.subr.bf16.mxu0 0
      %639 = vmatpush1.bf16.msra.mxu0 %v636
      %640 = vmatprep.subr.bf16.mxu0 0
      %641 = vmatpush1.bf16.msra.mxu0 0
      %642 = vmatprep.subr.bf16.mxu0 0
      %643 = vmatpush1.bf16.msra.mxu0 0
      %644 = vmatprep.subr.bf16.mxu0 0
      %645 = vmatpush1.bf16.msra.mxu0 0
      %646 = vmatprep.subr.bf16.mxu0 0
      %647 = vmatpush1.bf16.msra.mxu0 0
      %648 = vmatprep.subr.bf16.mxu0 0
      %649 = vmatpush1.bf16.msra.mxu0 0
      %650 = vmatprep.subr.bf16.mxu0 0
      %651 = vmatpush1.bf16.msra.mxu0 0
      %652 = vmatprep.subr.bf16.mxu0 0
      %653 = vmatpush1.bf16.msra.mxu0 0
      %654 = vmatprep.subr.bf16.mxu0 0
      %655 = vmatpush1.bf16.msra.mxu0 0
      %656 = vmatprep.subr.bf16.mxu0 0
      %657 = vmatpush1.bf16.msra.mxu0 0
      %658 = vmatprep.subr.bf16.mxu0 0
      %659 = vmatpush1.bf16.msra.mxu0 0
      %660 = vmatprep.subr.bf16.mxu0 0
      %661 = vmatpush1.bf16.msra.mxu0 0
      %662 = vmatprep.subr.bf16.mxu0 0
      %663 = vmatpush1.bf16.msra.mxu0 0
      %664 = vmatprep.subr.bf16.mxu0 0
      %665 = vmatpush1.bf16.msra.mxu0 0
      %666 = vmatprep.subr.bf16.mxu0 0
      %667 = vmatpush1.bf16.msra.mxu0 0
      %668 = vmatprep.subr.bf16.mxu0 0
      %669 = vmatpush1.bf16.msra.mxu0 0
      %670 = vmatprep.mubr.bf16.mxu0 0
      %671 = vmatmul.mubr.bf16.gmra.mrb[0].mxu0 %v623
      %v672 = vpop.f32.mrb[0].mxu0
      %v673 = vadd.f32 %v599, %v672
      %v674 = vpop.f32.mrb[0].mxu0
      %v675 = vpop.f32.mrb[0].mxu0
      %v676 = vadd.f32 %v599, %v675
      %v677 = vpop.f32.mrb[0].mxu0
      %678 = vmatprep.mubr.bf16.mxu0 0
      %679 = vmatmul.mubr.bf16.gmra.mrb[0].mxu0 %v626
      %v680 = vpop.f32.mrb[0].mxu0
      %v681 = vadd.f32 %v599, %v680
      %v682 = vpop.f32.mrb[0].mxu0
      %v683 = vpop.f32.mrb[0].mxu0
      %v684 = vadd.f32 %v599, %v683
      %v685 = vpop.f32.mrb[0].mxu0
      %686 = vmatprep.mubr.bf16.mxu0 0
      %687 = vmatmul.mubr.bf16.gmra.mrb[0].mxu0 %v629
      %v688 = vpop.f32.mrb[0].mxu0
      %v689 = vadd.f32 %v599, %v688
      %v690 = vpop.f32.mrb[0].mxu0
      %v691 = vpop.f32.mrb[0].mxu0
      %v692 = vadd.f32 %v599, %v691
      %v693 = vpop.f32.mrb[0].mxu0
      %694 = vmatprep.mubr.bf16.mxu0 0
      %695 = vmatmul.mubr.bf16.gmra.mrb[0].mxu0 %v632
      %v696 = vpop.f32.mrb[0].mxu0
      %v697 = vadd.f32 %v599, %v696
      %v698 = vpop.f32.mrb[0].mxu0
      %v699 = vpop.f32.mrb[0].mxu0
      %v700 = vadd.f32 %v599, %v699
      %v701 = vpop.f32.mrb[0].mxu0
      %702 = vdwg.mxu0
      %v703 = vmul.f32 %v673, %v577
      %v704 = vmul.f32 %v676, %v578
      %v705 = vmul.f32 %v681, %v579
      %v706 = vmul.f32 %v684, %v580
      %v707 = vmul.f32 %v689, %v581
      %v708 = vmul.f32 %v692, %v582
      %v709 = vmul.f32 %v697, %v583
      %v710 = vmul.f32 %v700, %v584
      %v711 = vrot.slane %v703, 7
      %v712 = vrot.slane %v704, 7
      %v713 = vrot.slane %v705, 7
      %v714 = vrot.slane %v706, 7
      %v715 = vrot.slane %v707, 7
      %v716 = vrot.slane %v708, 7
      %v717 = vrot.slane %v709, 7
      %v718 = vrot.slane %v710, 7
      %vm719 = vcmp.lt.s32.totalorder %v552, 1
      %v720 = vsel %vm719, %v717, %v718
      %v721 = vsel %vm719, %v716, %v717
      %v722 = vsel %vm719, %v715, %v716
      %v723 = vsel %vm719, %v714, %v715
      %v724 = vsel %vm719, %v713, %v714
      %v725 = vsel %vm719, %v712, %v713
      %v726 = vsel %vm719, %v711, %v712
      %v727 = vsel %vm719, %v718, %v711
      %vm728 = vcmp.ge.s32.totalorder %v552, 1
      %vm729 = vcmp.ge.s32.totalorder %v553, 1
      %vm730 = vcmp.ge.s32.totalorder %v554, 1
      %vm731 = vcmp.ge.s32.totalorder %v555, 1
      %vm732 = vcmp.ge.s32.totalorder %v556, 1
      %vm733 = vcmp.ge.s32.totalorder %v557, 1
      %vm734 = vcmp.ge.s32.totalorder %v558, 1
      %vm735 = vcmp.ge.s32.totalorder %v559, 1
      %v736 = vsel %vm728, 1, 0
      %v737 = vsel %vm729, 1, 0
      %v738 = vsel %vm730, 1, 0
      %v739 = vsel %vm731, 1, 0
      %v740 = vsel %vm732, 1, 0
      %v741 = vsel %vm733, 1, 0
      %v742 = vsel %vm734, 1, 0
      %v743 = vsel %vm735, 1, 0
      %vm744 = vcmp.eq.s32.totalorder %v736, 1
      %vm745 = vcmp.eq.s32.totalorder %v737, 1
      %vm746 = vcmp.eq.s32.totalorder %v738, 1
      %vm747 = vcmp.eq.s32.totalorder %v739, 1
      %vm748 = vcmp.eq.s32.totalorder %v740, 1
      %vm749 = vcmp.eq.s32.totalorder %v741, 1
      %vm750 = vcmp.eq.s32.totalorder %v742, 1
      %vm751 = vcmp.eq.s32.totalorder %v743, 1
      %v752 = vsel %vm744, %v727, 0.0
      %v753 = vsel %vm745, %v726, 0.0
      %v754 = vsel %vm746, %v725, 0.0
      %v755 = vsel %vm747, %v724, 0.0
      %v756 = vsel %vm748, %v723, 0.0
      %v757 = vsel %vm749, %v722, 0.0
      %v758 = vsel %vm750, %v721, 0.0
      %v759 = vsel %vm751, %v720, 0.0
      %v760 = vrot.slane %v703, 1
      %v761 = vrot.slane %v704, 1
      %v762 = vrot.slane %v705, 1
      %v763 = vrot.slane %v706, 1
      %v764 = vrot.slane %v707, 1
      %v765 = vrot.slane %v708, 1
      %v766 = vrot.slane %v709, 1
      %v767 = vrot.slane %v710, 1
      %vm768 = vcmp.lt.s32.totalorder %v552, 7
      %v769 = vsel %vm768, %v766, %v767
      %v770 = vsel %vm768, %v765, %v766
      %v771 = vsel %vm768, %v764, %v765
      %v772 = vsel %vm768, %v763, %v764
      %v773 = vsel %vm768, %v762, %v763
      %v774 = vsel %vm768, %v761, %v762
      %v775 = vsel %vm768, %v760, %v761
      %v776 = vsel %vm768, %v767, %v760
      %vm777 = vcmp.lt.s32.totalorder %v552, 63
      %vm778 = vcmp.lt.s32.totalorder %v553, 63
      %vm779 = vcmp.lt.s32.totalorder %v554, 63
      %vm780 = vcmp.lt.s32.totalorder %v555, 63
      %vm781 = vcmp.lt.s32.totalorder %v556, 63
      %vm782 = vcmp.lt.s32.totalorder %v557, 63
      %vm783 = vcmp.lt.s32.totalorder %v558, 63
      %vm784 = vcmp.lt.s32.totalorder %v559, 63
      %v785 = vsel %vm777, 1, 0
      %v786 = vsel %vm778, 1, 0
      %v787 = vsel %vm779, 1, 0
      %v788 = vsel %vm780, 1, 0
      %v789 = vsel %vm781, 1, 0
      %v790 = vsel %vm782, 1, 0
      %v791 = vsel %vm783, 1, 0
      %v792 = vsel %vm784, 1, 0
      %vm793 = vcmp.eq.s32.totalorder %v785, 1
      %vm794 = vcmp.eq.s32.totalorder %v786, 1
      %vm795 = vcmp.eq.s32.totalorder %v787, 1
      %vm796 = vcmp.eq.s32.totalorder %v788, 1
      %vm797 = vcmp.eq.s32.totalorder %v789, 1
      %vm798 = vcmp.eq.s32.totalorder %v790, 1
      %vm799 = vcmp.eq.s32.totalorder %v791, 1
      %vm800 = vcmp.eq.s32.totalorder %v792, 1
      %v801 = vsel %vm793, %v775, 0.0
      %v802 = vsel %vm794, %v774, 0.0
      %v803 = vsel %vm795, %v773, 0.0
      %v804 = vsel %vm796, %v772, 0.0
      %v805 = vsel %vm797, %v771, 0.0
      %v806 = vsel %vm798, %v770, 0.0
      %v807 = vsel %vm799, %v769, 0.0
      %v808 = vsel %vm800, %v776, 0.0
      %817 = vrot.lane.b32.xlu0 %v703, 32
      %v818 = vpop.permute.xlu0 %817
      %819 = vrot.lane.b32.xlu0 %v704, 32
      %v820 = vpop.permute.xlu0 %819
      %821 = vrot.lane.b32.xlu0 %v705, 32
      %v822 = vpop.permute.xlu0 %821
      %823 = vrot.lane.b32.xlu0 %v706, 32
      %v824 = vpop.permute.xlu0 %823
      %825 = vrot.lane.b32.xlu0 %v707, 32
      %v826 = vpop.permute.xlu0 %825
      %827 = vrot.lane.b32.xlu0 %v708, 32
      %v828 = vpop.permute.xlu0 %827
      %829 = vrot.lane.b32.xlu0 %v709, 32
      %v830 = vpop.permute.xlu0 %829
      %831 = vrot.lane.b32.xlu0 %v710, 32
      %v832 = vpop.permute.xlu0 %831
      %849 = vrot.lane.b32.xlu0 %v801, 64
      %v850 = vpop.permute.xlu0 %849
      %851 = vrot.lane.b32.xlu0 %v802, 64
      %v852 = vpop.permute.xlu0 %851
      %853 = vrot.lane.b32.xlu0 %v803, 64
      %v854 = vpop.permute.xlu0 %853
      %855 = vrot.lane.b32.xlu0 %v804, 64
      %v856 = vpop.permute.xlu0 %855
      %857 = vrot.lane.b32.xlu0 %v805, 64
      %v858 = vpop.permute.xlu0 %857
      %859 = vrot.lane.b32.xlu0 %v806, 64
      %v860 = vpop.permute.xlu0 %859
      %861 = vrot.lane.b32.xlu0 %v807, 64
      %v862 = vpop.permute.xlu0 %861
      %863 = vrot.lane.b32.xlu0 %v808, 64
      %v864 = vpop.permute.xlu0 %863
      %vm873 = vcmask 261120
      %v874 = vsel %vm873, %v752, %v818
      %v875 = vsel %vm873, %v753, %v820
      %v876 = vsel %vm873, %v754, %v822
      %v877 = vsel %vm873, %v755, %v824
      %v878 = vsel %vm873, %v756, %v826
      %v879 = vsel %vm873, %v757, %v828
      %v880 = vsel %vm873, %v758, %v830
      %v881 = vsel %vm873, %v759, %v832
      %vm882 = vcmask 523264
      %v883 = vsel %vm882, %v874, %v850
      %v884 = vsel %vm882, %v875, %v852
      %v885 = vsel %vm882, %v876, %v854
      %v886 = vsel %vm882, %v877, %v856
      %v887 = vsel %vm882, %v878, %v858
      %v888 = vsel %vm882, %v879, %v860
      %v889 = vsel %vm882, %v880, %v862
      %v890 = vsel %vm882, %v881, %v864
      %v891 = vpack.c.bf16 %v884, %v883
      %v892 = vpack.c.bf16 %v886, %v885
      %v893 = vpack.c.bf16 %v888, %v887
      %v894 = vpack.c.bf16 %v890, %v889
      %v895 = vld [vmem:[%s5] sm:$0xf]
      %v896 = vld [vmem:[%s5 + $0x4] sm:$0xf]
      %v897 = vld [vmem:[%s5 + $0x8] sm:$0xf]
      %v898 = vld [vmem:[%s5 + $0xc] sm:$0xf]
      %v899 = vld [vmem:[%s5 + $0x10] sm:$0xf]
      %v900 = vld [vmem:[%s5 + $0x14] sm:$0xf]
      %v901 = vld [vmem:[%s5 + $0x18] sm:$0xf]
      %v902 = vld [vmem:[%s5 + $0x1c] sm:$0xf]
      %v903 = vld [vmem:[%s5 + $0x20] sm:$0xf]
      %v904 = vld [vmem:[%s5 + $0x24] sm:$0xf]
      %v905 = vld [vmem:[%s5 + $0x28] sm:$0xf]
      %v906 = vld [vmem:[%s5 + $0x2c] sm:$0xf]
      %v907 = vld [vmem:[%s6] sm:$0x1]
      %v909 = vlaneseq
      %v910 = vshrl.u32 %v909, 7
      %v911 = vsub.s32 0, %v910
      %v912 = vrot.slane %v907, %v911
      %v926 = vunpack.c.l.b16 %v895
      %v927 = vunpack.c.l.b16 %v896
      %v928 = vunpack.c.l.b16 %v897
      %v929 = vunpack.c.l.b16 %v898
      %v930 = vunpack.c.l.b16 %v899
      %v931 = vunpack.c.l.b16 %v900
      %v932 = vunpack.c.l.b16 %v901
      %v933 = vunpack.c.l.b16 %v902
      %v934 = vunpack.c.l.b16 %v903
      %v935 = vunpack.c.l.b16 %v904
      %v936 = vunpack.c.l.b16 %v905
      %v937 = vunpack.c.l.b16 %v906
      %v938 = vpack.c.b16 %v927, %v926
      %v939 = vpack.c.b16 %v929, %v928
      %v940 = vpack.c.b16 %v931, %v930
      %v941 = vpack.c.b16 %v933, %v932
      %v942 = vpack.c.b16 %v935, %v934
      %v943 = vpack.c.b16 %v937, %v936
      %vm950 = vcmask 785408
      %v952 = vsel %vm950, %v891, 0
      %v955 = vsel %vm950, %v892, 0
      %v958 = vsel %vm950, %v893, 0
      %v961 = vsel %vm950, %v894, 0
      %963 = vmatprep.subr.bf16.mxu0 0
      %964 = vmatpush1.bf16.msra.mxu0 %v938
      %965 = vmatprep.subr.bf16.mxu0 0
      %966 = vmatpush1.bf16.msra.mxu0 %v939
      %967 = vmatprep.subr.bf16.mxu0 0
      %968 = vmatpush1.bf16.msra.mxu0 %v940
      %969 = vmatprep.subr.bf16.mxu0 0
      %970 = vmatpush1.bf16.msra.mxu0 %v941
      %971 = vmatprep.subr.bf16.mxu0 0
      %972 = vmatpush1.bf16.msra.mxu0 %v942
      %973 = vmatprep.subr.bf16.mxu0 0
      %974 = vmatpush1.bf16.msra.mxu0 %v943
      %975 = vmatprep.subr.bf16.mxu0 0
      %976 = vmatpush1.bf16.msra.mxu0 0
      %977 = vmatprep.subr.bf16.mxu0 0
      %978 = vmatpush1.bf16.msra.mxu0 0
      %979 = vmatprep.subr.bf16.mxu0 0
      %980 = vmatpush1.bf16.msra.mxu0 0
      %981 = vmatprep.subr.bf16.mxu0 0
      %982 = vmatpush1.bf16.msra.mxu0 0
      %983 = vmatprep.subr.bf16.mxu0 0
      %984 = vmatpush1.bf16.msra.mxu0 0
      %985 = vmatprep.subr.bf16.mxu0 0
      %986 = vmatpush1.bf16.msra.mxu0 0
      %987 = vmatprep.subr.bf16.mxu0 0
      %988 = vmatpush1.bf16.msra.mxu0 0
      %989 = vmatprep.subr.bf16.mxu0 0
      %990 = vmatpush1.bf16.msra.mxu0 0
      %991 = vmatprep.subr.bf16.mxu0 0
      %992 = vmatpush1.bf16.msra.mxu0 0
      %993 = vmatprep.subr.bf16.mxu0 0
      %994 = vmatpush1.bf16.msra.mxu0 0
      %995 = vmatprep.mubr.bf16.mxu0 0
      %996 = vmatmul.mubr.bf16.gmra.mrb[0].mxu0 %v952
      %v997 = vpop.f32.mrb[0].mxu0
      %v998 = vadd.f32 %v912, %v997
      %v999 = vpop.f32.mrb[0].mxu0
      %v1000 = vpop.f32.mrb[0].mxu0
      %v1001 = vadd.f32 %v912, %v1000
      %v1002 = vpop.f32.mrb[0].mxu0
      %1003 = vmatprep.mubr.bf16.mxu0 0
      %1004 = vmatmul.mubr.bf16.gmra.mrb[0].mxu0 %v955
      %v1005 = vpop.f32.mrb[0].mxu0
      %v1006 = vadd.f32 %v912, %v1005
      %v1007 = vpop.f32.mrb[0].mxu0
      %v1008 = vpop.f32.mrb[0].mxu0
      %v1009 = vadd.f32 %v912, %v1008
      %v1010 = vpop.f32.mrb[0].mxu0
      %1011 = vmatprep.mubr.bf16.mxu0 0
      %1012 = vmatmul.mubr.bf16.gmra.mrb[0].mxu0 %v958
      %v1013 = vpop.f32.mrb[0].mxu0
      %v1014 = vadd.f32 %v912, %v1013
      %v1015 = vpop.f32.mrb[0].mxu0
      %v1016 = vpop.f32.mrb[0].mxu0
      %v1017 = vadd.f32 %v912, %v1016
      %v1018 = vpop.f32.mrb[0].mxu0
      %1019 = vmatprep.mubr.bf16.mxu0 0
      %1020 = vmatmul.mubr.bf16.gmra.mrb[0].mxu0 %v961
      %v1021 = vpop.f32.mrb[0].mxu0
      %v1022 = vadd.f32 %v912, %v1021
      %v1023 = vpop.f32.mrb[0].mxu0
      %v1024 = vpop.f32.mrb[0].mxu0
      %v1025 = vadd.f32 %v912, %v1024
      %v1026 = vpop.f32.mrb[0].mxu0
      %1027 = vdwg.mxu0
      %v1028 = vld [vmem:[%s7] sm:$0xf]
      %v1029 = vld [vmem:[%s7 + $0x4] sm:$0xf]
      %v1030 = vld [vmem:[%s7 + $0x8] sm:$0xf]
      %v1031 = vld [vmem:[%s7 + $0xc] sm:$0xf]
      %v1032 = vld [vmem:[%s7 + $0x10] sm:$0xf]
      %v1033 = vld [vmem:[%s7 + $0x14] sm:$0xf]
      %v1034 = vld [vmem:[%s7 + $0x18] sm:$0xf]
      %v1035 = vld [vmem:[%s7 + $0x1c] sm:$0xf]
      %v1036 = vld [vmem:[%s7 + $0x20] sm:$0xf]
      %v1037 = vld [vmem:[%s7 + $0x24] sm:$0xf]
      %v1038 = vld [vmem:[%s7 + $0x28] sm:$0xf]
      %v1039 = vld [vmem:[%s7 + $0x2c] sm:$0xf]
      %v1040 = vld [vmem:[%s8] sm:$0x1]
      %v1042 = vlaneseq
      %v1043 = vshrl.u32 %v1042, 7
      %v1044 = vsub.s32 0, %v1043
      %v1045 = vrot.slane %v1040, %v1044
      %v1059 = vunpack.c.l.b16 %v1028
      %v1060 = vunpack.c.l.b16 %v1029
      %v1061 = vunpack.c.l.b16 %v1030
      %v1062 = vunpack.c.l.b16 %v1031
      %v1063 = vunpack.c.l.b16 %v1032
      %v1064 = vunpack.c.l.b16 %v1033
      %v1065 = vunpack.c.l.b16 %v1034
      %v1066 = vunpack.c.l.b16 %v1035
      %v1067 = vunpack.c.l.b16 %v1036
      %v1068 = vunpack.c.l.b16 %v1037
      %v1069 = vunpack.c.l.b16 %v1038
      %v1070 = vunpack.c.l.b16 %v1039
      %v1071 = vpack.c.b16 %v1060, %v1059
      %v1072 = vpack.c.b16 %v1062, %v1061
      %v1073 = vpack.c.b16 %v1064, %v1063
      %v1074 = vpack.c.b16 %v1066, %v1065
      %v1075 = vpack.c.b16 %v1068, %v1067
      %v1076 = vpack.c.b16 %v1070, %v1069
      %1083 = vmatprep.subr.bf16.mxu0 0
      %1084 = vmatpush1.bf16.msra.mxu0 %v1071
      %1085 = vmatprep.subr.bf16.mxu0 0
      %1086 = vmatpush1.bf16.msra.mxu0 %v1072
      %1087 = vmatprep.subr.bf16.mxu0 0
      %1088 = vmatpush1.bf16.msra.mxu0 %v1073
      %1089 = vmatprep.subr.bf16.mxu0 0
      %1090 = vmatpush1.bf16.msra.mxu0 %v1074
      %1091 = vmatprep.subr.bf16.mxu0 0
      %1092 = vmatpush1.bf16.msra.mxu0 %v1075
      %1093 = vmatprep.subr.bf16.mxu0 0
      %1094 = vmatpush1.bf16.msra.mxu0 %v1076
      %1095 = vmatprep.subr.bf16.mxu0 0
      %1096 = vmatpush1.bf16.msra.mxu0 0
      %1097 = vmatprep.subr.bf16.mxu0 0
      %1098 = vmatpush1.bf16.msra.mxu0 0
      %1099 = vmatprep.subr.bf16.mxu0 0
      %1100 = vmatpush1.bf16.msra.mxu0 0
      %1101 = vmatprep.subr.bf16.mxu0 0
      %1102 = vmatpush1.bf16.msra.mxu0 0
      %1103 = vmatprep.subr.bf16.mxu0 0
      %1104 = vmatpush1.bf16.msra.mxu0 0
      %1105 = vmatprep.subr.bf16.mxu0 0
      %1106 = vmatpush1.bf16.msra.mxu0 0
      %1107 = vmatprep.subr.bf16.mxu0 0
      %1108 = vmatpush1.bf16.msra.mxu0 0
      %1109 = vmatprep.subr.bf16.mxu0 0
      %1110 = vmatpush1.bf16.msra.mxu0 0
      %1111 = vmatprep.subr.bf16.mxu0 0
      %1112 = vmatpush1.bf16.msra.mxu0 0
      %1113 = vmatprep.subr.bf16.mxu0 0
      %1114 = vmatpush1.bf16.msra.mxu0 0
      %1115 = vmatprep.mubr.bf16.mxu0 0
      %1116 = vmatmul.mubr.bf16.gmra.mrb[0].mxu0 %v952
      %v1117 = vpop.f32.mrb[0].mxu0
      %v1118 = vadd.f32 %v1045, %v1117
      %v1119 = vpop.f32.mrb[0].mxu0
      %v1120 = vpop.f32.mrb[0].mxu0
      %v1121 = vadd.f32 %v1045, %v1120
      %v1122 = vpop.f32.mrb[0].mxu0
      %1123 = vmatprep.mubr.bf16.mxu0 0
      %1124 = vmatmul.mubr.bf16.gmra.mrb[0].mxu0 %v955
      %v1125 = vpop.f32.mrb[0].mxu0
      %v1126 = vadd.f32 %v1045, %v1125
      %v1127 = vpop.f32.mrb[0].mxu0
      %v1128 = vpop.f32.mrb[0].mxu0
      %v1129 = vadd.f32 %v1045, %v1128
      %v1130 = vpop.f32.mrb[0].mxu0
      %1131 = vmatprep.mubr.bf16.mxu0 0
      %1132 = vmatmul.mubr.bf16.gmra.mrb[0].mxu0 %v958
      %v1133 = vpop.f32.mrb[0].mxu0
      %v1134 = vadd.f32 %v1045, %v1133
      %v1135 = vpop.f32.mrb[0].mxu0
      %v1136 = vpop.f32.mrb[0].mxu0
      %v1137 = vadd.f32 %v1045, %v1136
      %v1138 = vpop.f32.mrb[0].mxu0
      %1139 = vmatprep.mubr.bf16.mxu0 0
      %1140 = vmatmul.mubr.bf16.gmra.mrb[0].mxu0 %v961
      %v1141 = vpop.f32.mrb[0].mxu0
      %v1142 = vadd.f32 %v1045, %v1141
      %v1143 = vpop.f32.mrb[0].mxu0
      %v1144 = vpop.f32.mrb[0].mxu0
      %v1145 = vadd.f32 %v1045, %v1144
      %v1146 = vpop.f32.mrb[0].mxu0
      %1147 = vdwg.mxu0
      %v1148 = vtanh.pop %v998
      %v1149 = vtanh.pop %v1001
      %v1150 = vtanh.pop %v1006
      %v1151 = vtanh.pop %v1009
      %v1152 = vtanh.pop %v1014
      %v1153 = vtanh.pop %v1017
      %v1154 = vtanh.pop %v1022
      %v1155 = vtanh.pop %v1025
      %v1156 = vxor.u32 %v1118, 2147483648
      %v1157 = vxor.u32 %v1121, 2147483648
      %v1158 = vxor.u32 %v1126, 2147483648
      %v1159 = vxor.u32 %v1129, 2147483648
      %v1160 = vxor.u32 %v1134, 2147483648
      %v1161 = vxor.u32 %v1137, 2147483648
      %v1162 = vxor.u32 %v1142, 2147483648
      %v1163 = vxor.u32 %v1145, 2147483648
      %v1164 = vmul.f32 %v1156, 1.442695
      %v1165 = vpow.pop %v1164
      %v1166 = vmul.f32 %v1157, 1.442695
      %v1167 = vpow.pop %v1166
      %v1168 = vmul.f32 %v1158, 1.442695
      %v1169 = vpow.pop %v1168
      %v1170 = vmul.f32 %v1159, 1.442695
      %v1171 = vpow.pop %v1170
      %v1172 = vmul.f32 %v1160, 1.442695
      %v1173 = vpow.pop %v1172
      %v1174 = vmul.f32 %v1161, 1.442695
      %v1175 = vpow.pop %v1174
      %v1176 = vmul.f32 %v1162, 1.442695
      %v1177 = vpow.pop %v1176
      %v1178 = vmul.f32 %v1163, 1.442695
      %v1179 = vpow.pop %v1178
      %v1180 = vadd.f32 %v1165, 1.0
      %v1181 = vadd.f32 %v1167, 1.0
      %v1182 = vadd.f32 %v1169, 1.0
      %v1183 = vadd.f32 %v1171, 1.0
      %v1184 = vadd.f32 %v1173, 1.0
      %v1185 = vadd.f32 %v1175, 1.0
      %v1186 = vadd.f32 %v1177, 1.0
      %v1187 = vadd.f32 %v1179, 1.0
      %v1188 = vrcp.pop %v1180
      %v1189 = vmul.f32 1.0, %v1188
      %v1190 = vrcp.pop %v1181
      %v1191 = vmul.f32 1.0, %v1190
      %v1192 = vrcp.pop %v1182
      %v1193 = vmul.f32 1.0, %v1192
      %v1194 = vrcp.pop %v1183
      %v1195 = vmul.f32 1.0, %v1194
      %v1196 = vrcp.pop %v1184
      %v1197 = vmul.f32 1.0, %v1196
      %v1198 = vrcp.pop %v1185
      %v1199 = vmul.f32 1.0, %v1198
      %v1200 = vrcp.pop %v1186
      %v1201 = vmul.f32 1.0, %v1200
      %v1202 = vrcp.pop %v1187
      %v1203 = vmul.f32 1.0, %v1202
      %v1204 = vmul.f32 %v1148, %v1189
      %v1205 = vmul.f32 %v1149, %v1191
      %v1206 = vmul.f32 %v1150, %v1193
      %v1207 = vmul.f32 %v1151, %v1195
      %v1208 = vmul.f32 %v1152, %v1197
      %v1209 = vmul.f32 %v1153, %v1199
      %v1210 = vmul.f32 %v1154, %v1201
      %v1211 = vmul.f32 %v1155, %v1203
      %v1212 = vpack.c.bf16 %v1205, %v1204
      %v1213 = vpack.c.bf16 %v1207, %v1206
      %v1214 = vpack.c.bf16 %v1209, %v1208
      %v1215 = vpack.c.bf16 %v1211, %v1210
      %v1216 = vld [vmem:[%s11] sm:$0xf]
      %v1217 = vld [vmem:[%s11 + $0x4] sm:$0xf]
      %v1218 = vld [vmem:[%s11 + $0x8] sm:$0xf]
      %v1219 = vld [vmem:[%s11 + $0xc] sm:$0xf]
      %v1220 = vld [vmem:[%s12] sm:$0x1]
      %v1222 = vlaneseq
      %v1223 = vshrl.u32 %v1222, 7
      %v1224 = vsub.s32 0, %v1223
      %v1225 = vrot.slane %v1220, %v1224
      %v1231 = vunpack.c.l.b16 %v1216
      %v1232 = vunpack.c.l.b16 %v1217
      %v1233 = vunpack.c.l.b16 %v1218
      %v1234 = vunpack.c.l.b16 %v1219
      %v1235 = vpack.c.b16 %v1232, %v1231
      %v1236 = vpack.c.b16 %v1234, %v1233
      %v1240 = vsel %vm873, %v1212, 0
      %v1243 = vsel %vm873, %v1213, 0
      %v1246 = vsel %vm873, %v1214, 0
      %v1249 = vsel %vm873, %v1215, 0
      %1251 = vmatprep.subr.bf16.mxu0 0
      %1252 = vmatpush1.bf16.msra.mxu0 %v1235
      %1253 = vmatprep.subr.bf16.mxu0 0
      %1254 = vmatpush1.bf16.msra.mxu0 %v1236
      %1255 = vmatprep.subr.bf16.mxu0 0
      %1256 = vmatpush1.bf16.msra.mxu0 0
      %1257 = vmatprep.subr.bf16.mxu0 0
      %1258 = vmatpush1.bf16.msra.mxu0 0
      %1259 = vmatprep.subr.bf16.mxu0 0
      %1260 = vmatpush1.bf16.msra.mxu0 0
      %1261 = vmatprep.subr.bf16.mxu0 0
      %1262 = vmatpush1.bf16.msra.mxu0 0
      %1263 = vmatprep.subr.bf16.mxu0 0
      %1264 = vmatpush1.bf16.msra.mxu0 0
      %1265 = vmatprep.subr.bf16.mxu0 0
      %1266 = vmatpush1.bf16.msra.mxu0 0
      %1267 = vmatprep.subr.bf16.mxu0 0
      %1268 = vmatpush1.bf16.msra.mxu0 0
      %1269 = vmatprep.subr.bf16.mxu0 0
      %1270 = vmatpush1.bf16.msra.mxu0 0
      %1271 = vmatprep.subr.bf16.mxu0 0
      %1272 = vmatpush1.bf16.msra.mxu0 0
      %1273 = vmatprep.subr.bf16.mxu0 0
      %1274 = vmatpush1.bf16.msra.mxu0 0
      %1275 = vmatprep.subr.bf16.mxu0 0
      %1276 = vmatpush1.bf16.msra.mxu0 0
      %1277 = vmatprep.subr.bf16.mxu0 0
      %1278 = vmatpush1.bf16.msra.mxu0 0
      %1279 = vmatprep.subr.bf16.mxu0 0
      %1280 = vmatpush1.bf16.msra.mxu0 0
      %1281 = vmatprep.subr.bf16.mxu0 0
      %1282 = vmatpush1.bf16.msra.mxu0 0
      %1283 = vmatprep.mubr.bf16.mxu0 0
      %1284 = vmatmul.mubr.bf16.gmra.mrb[0].mxu0 %v1240
      %v1285 = vpop.f32.mrb[0].mxu0
      %v1286 = vadd.f32 %v1225, %v1285
      %v1287 = vpop.f32.mrb[0].mxu0
      %v1288 = vpop.f32.mrb[0].mxu0
      %v1289 = vadd.f32 %v1225, %v1288
      %v1290 = vpop.f32.mrb[0].mxu0
      %1291 = vmatprep.mubr.bf16.mxu0 0
      %1292 = vmatmul.mubr.bf16.gmra.mrb[0].mxu0 %v1243
      %v1293 = vpop.f32.mrb[0].mxu0
      %v1294 = vadd.f32 %v1225, %v1293
      %v1295 = vpop.f32.mrb[0].mxu0
      %v1296 = vpop.f32.mrb[0].mxu0
      %v1297 = vadd.f32 %v1225, %v1296
      %v1298 = vpop.f32.mrb[0].mxu0
      %1299 = vmatprep.mubr.bf16.mxu0 0
      %1300 = vmatmul.mubr.bf16.gmra.mrb[0].mxu0 %v1246
      %v1301 = vpop.f32.mrb[0].mxu0
      %v1302 = vadd.f32 %v1225, %v1301
      %v1303 = vpop.f32.mrb[0].mxu0
      %v1304 = vpop.f32.mrb[0].mxu0
      %v1305 = vadd.f32 %v1225, %v1304
      %v1306 = vpop.f32.mrb[0].mxu0
      %1307 = vmatprep.mubr.bf16.mxu0 0
      %1308 = vmatmul.mubr.bf16.gmra.mrb[0].mxu0 %v1249
      %v1309 = vpop.f32.mrb[0].mxu0
      %v1310 = vadd.f32 %v1225, %v1309
      %v1311 = vpop.f32.mrb[0].mxu0
      %v1312 = vpop.f32.mrb[0].mxu0
      %v1313 = vadd.f32 %v1225, %v1312
      %v1314 = vpop.f32.mrb[0].mxu0
      %1315 = vdwg.mxu0
      %v1316 = vld [vmem:[%s9] sm:$0xf]
      %v1317 = vld [vmem:[%s9 + $0x4] sm:$0xf]
      %v1318 = vld [vmem:[%s9 + $0x8] sm:$0xf]
      %v1319 = vld [vmem:[%s9 + $0xc] sm:$0xf]
      %v1320 = vld [vmem:[%s10] sm:$0x1]
      %v1322 = vlaneseq
      %v1323 = vshrl.u32 %v1322, 7
      %v1324 = vsub.s32 0, %v1323
      %v1325 = vrot.slane %v1320, %v1324
      %v1331 = vunpack.c.l.b16 %v1316
      %v1332 = vunpack.c.l.b16 %v1317
      %v1333 = vunpack.c.l.b16 %v1318
      %v1334 = vunpack.c.l.b16 %v1319
      %v1335 = vpack.c.b16 %v1332, %v1331
      %v1336 = vpack.c.b16 %v1334, %v1333
      %1339 = vmatprep.subr.bf16.mxu0 0
      %1340 = vmatpush1.bf16.msra.mxu0 %v1335
      %1341 = vmatprep.subr.bf16.mxu0 0
      %1342 = vmatpush1.bf16.msra.mxu0 %v1336
      %1343 = vmatprep.subr.bf16.mxu0 0
      %1344 = vmatpush1.bf16.msra.mxu0 0
      %1345 = vmatprep.subr.bf16.mxu0 0
      %1346 = vmatpush1.bf16.msra.mxu0 0
      %1347 = vmatprep.subr.bf16.mxu0 0
      %1348 = vmatpush1.bf16.msra.mxu0 0
      %1349 = vmatprep.subr.bf16.mxu0 0
      %1350 = vmatpush1.bf16.msra.mxu0 0
      %1351 = vmatprep.subr.bf16.mxu0 0
      %1352 = vmatpush1.bf16.msra.mxu0 0
      %1353 = vmatprep.subr.bf16.mxu0 0
      %1354 = vmatpush1.bf16.msra.mxu0 0
      %1355 = vmatprep.subr.bf16.mxu0 0
      %1356 = vmatpush1.bf16.msra.mxu0 0
      %1357 = vmatprep.subr.bf16.mxu0 0
      %1358 = vmatpush1.bf16.msra.mxu0 0
      %1359 = vmatprep.subr.bf16.mxu0 0
      %1360 = vmatpush1.bf16.msra.mxu0 0
      %1361 = vmatprep.subr.bf16.mxu0 0
      %1362 = vmatpush1.bf16.msra.mxu0 0
      %1363 = vmatprep.subr.bf16.mxu0 0
      %1364 = vmatpush1.bf16.msra.mxu0 0
      %1365 = vmatprep.subr.bf16.mxu0 0
      %1366 = vmatpush1.bf16.msra.mxu0 0
      %1367 = vmatprep.subr.bf16.mxu0 0
      %1368 = vmatpush1.bf16.msra.mxu0 0
      %1369 = vmatprep.subr.bf16.mxu0 0
      %1370 = vmatpush1.bf16.msra.mxu0 0
      %1371 = vmatprep.mubr.bf16.mxu0 0
      %1372 = vmatmul.mubr.bf16.gmra.mrb[0].mxu0 %v1240
      %v1373 = vpop.f32.mrb[0].mxu0
      %v1374 = vadd.f32 %v1325, %v1373
      %v1375 = vpop.f32.mrb[0].mxu0
      %v1376 = vpop.f32.mrb[0].mxu0
      %v1377 = vadd.f32 %v1325, %v1376
      %v1378 = vpop.f32.mrb[0].mxu0
      %1379 = vmatprep.mubr.bf16.mxu0 0
      %1380 = vmatmul.mubr.bf16.gmra.mrb[0].mxu0 %v1243
      %v1381 = vpop.f32.mrb[0].mxu0
      %v1382 = vadd.f32 %v1325, %v1381
      %v1383 = vpop.f32.mrb[0].mxu0
      %v1384 = vpop.f32.mrb[0].mxu0
      %v1385 = vadd.f32 %v1325, %v1384
      %v1386 = vpop.f32.mrb[0].mxu0
      %1387 = vmatprep.mubr.bf16.mxu0 0
      %1388 = vmatmul.mubr.bf16.gmra.mrb[0].mxu0 %v1246
      %v1389 = vpop.f32.mrb[0].mxu0
      %v1390 = vadd.f32 %v1325, %v1389
      %v1391 = vpop.f32.mrb[0].mxu0
      %v1392 = vpop.f32.mrb[0].mxu0
      %v1393 = vadd.f32 %v1325, %v1392
      %v1394 = vpop.f32.mrb[0].mxu0
      %1395 = vmatprep.mubr.bf16.mxu0 0
      %1396 = vmatmul.mubr.bf16.gmra.mrb[0].mxu0 %v1249
      %v1397 = vpop.f32.mrb[0].mxu0
      %v1398 = vadd.f32 %v1325, %v1397
      %v1399 = vpop.f32.mrb[0].mxu0
      %v1400 = vpop.f32.mrb[0].mxu0
      %v1401 = vadd.f32 %v1325, %v1400
      %v1402 = vpop.f32.mrb[0].mxu0
      %1403 = vdwg.mxu0
      %v1404 = vadd.f32 %v703, %v1374
      %v1405 = vadd.f32 %v704, %v1377
      %v1406 = vadd.f32 %v705, %v1382
      %v1407 = vadd.f32 %v706, %v1385
      %v1408 = vadd.f32 %v707, %v1390
      %v1409 = vadd.f32 %v708, %v1393
      %v1410 = vadd.f32 %v709, %v1398
      %v1411 = vadd.f32 %v710, %v1401
      %v1412 = vmul.f32 %v1404, %v577
      %v1413 = vmul.f32 %v1405, %v578
      %v1414 = vmul.f32 %v1406, %v579
      %v1415 = vmul.f32 %v1407, %v580
      %v1416 = vmul.f32 %v1408, %v581
      %v1417 = vmul.f32 %v1409, %v582
      %v1418 = vmul.f32 %v1410, %v583
      %v1419 = vmul.f32 %v1411, %v584
      %v1420 = vrot.slane %v1412, 6
      %v1421 = vrot.slane %v1413, 6
      %v1422 = vrot.slane %v1414, 6
      %v1423 = vrot.slane %v1415, 6
      %v1424 = vrot.slane %v1416, 6
      %v1425 = vrot.slane %v1417, 6
      %v1426 = vrot.slane %v1418, 6
      %v1427 = vrot.slane %v1419, 6
      %vm1428 = vcmp.lt.s32.totalorder %v552, 2
      %v1429 = vsel %vm1428, %v1426, %v1427
      %v1430 = vsel %vm1428, %v1425, %v1426
      %v1431 = vsel %vm1428, %v1424, %v1425
      %v1432 = vsel %vm1428, %v1423, %v1424
      %v1433 = vsel %vm1428, %v1422, %v1423
      %v1434 = vsel %vm1428, %v1421, %v1422
      %v1435 = vsel %vm1428, %v1420, %v1421
      %v1436 = vsel %vm1428, %v1427, %v1420
      %vm1437 = vcmp.ge.s32.totalorder %v552, 2
      %vm1438 = vcmp.ge.s32.totalorder %v553, 2
      %vm1439 = vcmp.ge.s32.totalorder %v554, 2
      %vm1440 = vcmp.ge.s32.totalorder %v555, 2
      %vm1441 = vcmp.ge.s32.totalorder %v556, 2
      %vm1442 = vcmp.ge.s32.totalorder %v557, 2
      %vm1443 = vcmp.ge.s32.totalorder %v558, 2
      %vm1444 = vcmp.ge.s32.totalorder %v559, 2
      %v1445 = vsel %vm1437, 1, 0
      %v1446 = vsel %vm1438, 1, 0
      %v1447 = vsel %vm1439, 1, 0
      %v1448 = vsel %vm1440, 1, 0
      %v1449 = vsel %vm1441, 1, 0
      %v1450 = vsel %vm1442, 1, 0
      %v1451 = vsel %vm1443, 1, 0
      %v1452 = vsel %vm1444, 1, 0
      %vm1453 = vcmp.eq.s32.totalorder %v1445, 1
      %vm1454 = vcmp.eq.s32.totalorder %v1446, 1
      %vm1455 = vcmp.eq.s32.totalorder %v1447, 1
      %vm1456 = vcmp.eq.s32.totalorder %v1448, 1
      %vm1457 = vcmp.eq.s32.totalorder %v1449, 1
      %vm1458 = vcmp.eq.s32.totalorder %v1450, 1
      %vm1459 = vcmp.eq.s32.totalorder %v1451, 1
      %vm1460 = vcmp.eq.s32.totalorder %v1452, 1
      %v1461 = vsel %vm1453, %v1436, 0.0
      %v1462 = vsel %vm1454, %v1435, 0.0
      %v1463 = vsel %vm1455, %v1434, 0.0
      %v1464 = vsel %vm1456, %v1433, 0.0
      %v1465 = vsel %vm1457, %v1432, 0.0
      %v1466 = vsel %vm1458, %v1431, 0.0
      %v1467 = vsel %vm1459, %v1430, 0.0
      %v1468 = vsel %vm1460, %v1429, 0.0
      %v1469 = vrot.slane %v1412, 2
      %v1470 = vrot.slane %v1413, 2
      %v1471 = vrot.slane %v1414, 2
      %v1472 = vrot.slane %v1415, 2
      %v1473 = vrot.slane %v1416, 2
      %v1474 = vrot.slane %v1417, 2
      %v1475 = vrot.slane %v1418, 2
      %v1476 = vrot.slane %v1419, 2
      %vm1477 = vcmp.lt.s32.totalorder %v552, 6
      %v1478 = vsel %vm1477, %v1475, %v1476
      %v1479 = vsel %vm1477, %v1474, %v1475
      %v1480 = vsel %vm1477, %v1473, %v1474
      %v1481 = vsel %vm1477, %v1472, %v1473
      %v1482 = vsel %vm1477, %v1471, %v1472
      %v1483 = vsel %vm1477, %v1470, %v1471
      %v1484 = vsel %vm1477, %v1469, %v1470
      %v1485 = vsel %vm1477, %v1476, %v1469
      %vm1486 = vcmp.lt.s32.totalorder %v552, 62
      %vm1487 = vcmp.lt.s32.totalorder %v553, 62
      %vm1488 = vcmp.lt.s32.totalorder %v554, 62
      %vm1489 = vcmp.lt.s32.totalorder %v555, 62
      %vm1490 = vcmp.lt.s32.totalorder %v556, 62
      %vm1491 = vcmp.lt.s32.totalorder %v557, 62
      %vm1492 = vcmp.lt.s32.totalorder %v558, 62
      %vm1493 = vcmp.lt.s32.totalorder %v559, 62
      %v1494 = vsel %vm1486, 1, 0
      %v1495 = vsel %vm1487, 1, 0
      %v1496 = vsel %vm1488, 1, 0
      %v1497 = vsel %vm1489, 1, 0
      %v1498 = vsel %vm1490, 1, 0
      %v1499 = vsel %vm1491, 1, 0
      %v1500 = vsel %vm1492, 1, 0
      %v1501 = vsel %vm1493, 1, 0
      %vm1502 = vcmp.eq.s32.totalorder %v1494, 1
      %vm1503 = vcmp.eq.s32.totalorder %v1495, 1
      %vm1504 = vcmp.eq.s32.totalorder %v1496, 1
      %vm1505 = vcmp.eq.s32.totalorder %v1497, 1
      %vm1506 = vcmp.eq.s32.totalorder %v1498, 1
      %vm1507 = vcmp.eq.s32.totalorder %v1499, 1
      %vm1508 = vcmp.eq.s32.totalorder %v1500, 1
      %vm1509 = vcmp.eq.s32.totalorder %v1501, 1
      %v1510 = vsel %vm1502, %v1484, 0.0
      %v1511 = vsel %vm1503, %v1483, 0.0
      %v1512 = vsel %vm1504, %v1482, 0.0
      %v1513 = vsel %vm1505, %v1481, 0.0
      %v1514 = vsel %vm1506, %v1480, 0.0
      %v1515 = vsel %vm1507, %v1479, 0.0
      %v1516 = vsel %vm1508, %v1478, 0.0
      %v1517 = vsel %vm1509, %v1485, 0.0
      %1526 = vrot.lane.b32.xlu0 %v1412, 32
      %v1527 = vpop.permute.xlu0 %1526
      %1528 = vrot.lane.b32.xlu0 %v1413, 32
      %v1529 = vpop.permute.xlu0 %1528
      %1530 = vrot.lane.b32.xlu0 %v1414, 32
      %v1531 = vpop.permute.xlu0 %1530
      %1532 = vrot.lane.b32.xlu0 %v1415, 32
      %v1533 = vpop.permute.xlu0 %1532
      %1534 = vrot.lane.b32.xlu0 %v1416, 32
      %v1535 = vpop.permute.xlu0 %1534
      %1536 = vrot.lane.b32.xlu0 %v1417, 32
      %v1537 = vpop.permute.xlu0 %1536
      %1538 = vrot.lane.b32.xlu0 %v1418, 32
      %v1539 = vpop.permute.xlu0 %1538
      %1540 = vrot.lane.b32.xlu0 %v1419, 32
      %v1541 = vpop.permute.xlu0 %1540
      %1558 = vrot.lane.b32.xlu0 %v1510, 64
      %v1559 = vpop.permute.xlu0 %1558
      %1560 = vrot.lane.b32.xlu0 %v1511, 64
      %v1561 = vpop.permute.xlu0 %1560
      %1562 = vrot.lane.b32.xlu0 %v1512, 64
      %v1563 = vpop.permute.xlu0 %1562
      %1564 = vrot.lane.b32.xlu0 %v1513, 64
      %v1565 = vpop.permute.xlu0 %1564
      %1566 = vrot.lane.b32.xlu0 %v1514, 64
      %v1567 = vpop.permute.xlu0 %1566
      %1568 = vrot.lane.b32.xlu0 %v1515, 64
      %v1569 = vpop.permute.xlu0 %1568
      %1570 = vrot.lane.b32.xlu0 %v1516, 64
      %v1571 = vpop.permute.xlu0 %1570
      %1572 = vrot.lane.b32.xlu0 %v1517, 64
      %v1573 = vpop.permute.xlu0 %1572
      %v1582 = vsel %vm873, %v1461, %v1527
      %v1583 = vsel %vm873, %v1462, %v1529
      %v1584 = vsel %vm873, %v1463, %v1531
      %v1585 = vsel %vm873, %v1464, %v1533
      %v1586 = vsel %vm873, %v1465, %v1535
      %v1587 = vsel %vm873, %v1466, %v1537
      %v1588 = vsel %vm873, %v1467, %v1539
      %v1589 = vsel %vm873, %v1468, %v1541
      %v1590 = vsel %vm882, %v1582, %v1559
      %v1591 = vsel %vm882, %v1583, %v1561
      %v1592 = vsel %vm882, %v1584, %v1563
      %v1593 = vsel %vm882, %v1585, %v1565
      %v1594 = vsel %vm882, %v1586, %v1567
      %v1595 = vsel %vm882, %v1587, %v1569
      %v1596 = vsel %vm882, %v1588, %v1571
      %v1597 = vsel %vm882, %v1589, %v1573
      %v1598 = vpack.c.bf16 %v1591, %v1590
      %v1599 = vpack.c.bf16 %v1593, %v1592
      %v1600 = vpack.c.bf16 %v1595, %v1594
      %v1601 = vpack.c.bf16 %v1597, %v1596
      %s1602 = scalar_lea.vmem %s5, 48
      %v1603 = vld [vmem:[%s1602] sm:$0xf]
      %v1604 = vld [vmem:[%s1602 + $0x4] sm:$0xf]
      %v1605 = vld [vmem:[%s1602 + $0x8] sm:$0xf]
      %v1606 = vld [vmem:[%s1602 + $0xc] sm:$0xf]
      %v1607 = vld [vmem:[%s1602 + $0x10] sm:$0xf]
      %v1608 = vld [vmem:[%s1602 + $0x14] sm:$0xf]
      %v1609 = vld [vmem:[%s1602 + $0x18] sm:$0xf]
      %v1610 = vld [vmem:[%s1602 + $0x1c] sm:$0xf]
      %v1611 = vld [vmem:[%s1602 + $0x20] sm:$0xf]
      %v1612 = vld [vmem:[%s1602 + $0x24] sm:$0xf]
      %v1613 = vld [vmem:[%s1602 + $0x28] sm:$0xf]
      %v1614 = vld [vmem:[%s1602 + $0x2c] sm:$0xf]
      %s1615 = scalar_lea.vmem %s6, 1
      %v1616 = vld [vmem:[%s1615] sm:$0x1]
      %v1618 = vlaneseq
      %v1619 = vshrl.u32 %v1618, 7
      %v1620 = vsub.s32 0, %v1619
      %v1621 = vrot.slane %v1616, %v1620
      %v1635 = vunpack.c.l.b16 %v1603
      %v1636 = vunpack.c.l.b16 %v1604
      %v1637 = vunpack.c.l.b16 %v1605
      %v1638 = vunpack.c.l.b16 %v1606
      %v1639 = vunpack.c.l.b16 %v1607
      %v1640 = vunpack.c.l.b16 %v1608
      %v1641 = vunpack.c.l.b16 %v1609
      %v1642 = vunpack.c.l.b16 %v1610
      %v1643 = vunpack.c.l.b16 %v1611
      %v1644 = vunpack.c.l.b16 %v1612
      %v1645 = vunpack.c.l.b16 %v1613
      %v1646 = vunpack.c.l.b16 %v1614
      %v1647 = vpack.c.b16 %v1636, %v1635
      %v1648 = vpack.c.b16 %v1638, %v1637
      %v1649 = vpack.c.b16 %v1640, %v1639
      %v1650 = vpack.c.b16 %v1642, %v1641
      %v1651 = vpack.c.b16 %v1644, %v1643
      %v1652 = vpack.c.b16 %v1646, %v1645
      %v1660 = vsel %vm950, %v1598, 0
      %v1663 = vsel %vm950, %v1599, 0
      %v1666 = vsel %vm950, %v1600, 0
      %v1669 = vsel %vm950, %v1601, 0
      %1671 = vmatprep.subr.bf16.mxu0 0
      %1672 = vmatpush1.bf16.msra.mxu0 %v1647
      %1673 = vmatprep.subr.bf16.mxu0 0
      %1674 = vmatpush1.bf16.msra.mxu0 %v1648
      %1675 = vmatprep.subr.bf16.mxu0 0
      %1676 = vmatpush1.bf16.msra.mxu0 %v1649
      %1677 = vmatprep.subr.bf16.mxu0 0
      %1678 = vmatpush1.bf16.msra.mxu0 %v1650
      %1679 = vmatprep.subr.bf16.mxu0 0
      %1680 = vmatpush1.bf16.msra.mxu0 %v1651
      %1681 = vmatprep.subr.bf16.mxu0 0
      %1682 = vmatpush1.bf16.msra.mxu0 %v1652
      %1683 = vmatprep.subr.bf16.mxu0 0
      %1684 = vmatpush1.bf16.msra.mxu0 0
      %1685 = vmatprep.subr.bf16.mxu0 0
      %1686 = vmatpush1.bf16.msra.mxu0 0
      %1687 = vmatprep.subr.bf16.mxu0 0
      %1688 = vmatpush1.bf16.msra.mxu0 0
      %1689 = vmatprep.subr.bf16.mxu0 0
      %1690 = vmatpush1.bf16.msra.mxu0 0
      %1691 = vmatprep.subr.bf16.mxu0 0
      %1692 = vmatpush1.bf16.msra.mxu0 0
      %1693 = vmatprep.subr.bf16.mxu0 0
      %1694 = vmatpush1.bf16.msra.mxu0 0
      %1695 = vmatprep.subr.bf16.mxu0 0
      %1696 = vmatpush1.bf16.msra.mxu0 0
      %1697 = vmatprep.subr.bf16.mxu0 0
      %1698 = vmatpush1.bf16.msra.mxu0 0
      %1699 = vmatprep.subr.bf16.mxu0 0
      %1700 = vmatpush1.bf16.msra.mxu0 0
      %1701 = vmatprep.subr.bf16.mxu0 0
      %1702 = vmatpush1.bf16.msra.mxu0 0
      %1703 = vmatprep.mubr.bf16.mxu0 0
      %1704 = vmatmul.mubr.bf16.gmra.mrb[0].mxu0 %v1660
      %v1705 = vpop.f32.mrb[0].mxu0
      %v1706 = vadd.f32 %v1621, %v1705
      %v1707 = vpop.f32.mrb[0].mxu0
      %v1708 = vpop.f32.mrb[0].mxu0
      %v1709 = vadd.f32 %v1621, %v1708
      %v1710 = vpop.f32.mrb[0].mxu0
      %1711 = vmatprep.mubr.bf16.mxu0 0
      %1712 = vmatmul.mubr.bf16.gmra.mrb[0].mxu0 %v1663
      %v1713 = vpop.f32.mrb[0].mxu0
      %v1714 = vadd.f32 %v1621, %v1713
      %v1715 = vpop.f32.mrb[0].mxu0
      %v1716 = vpop.f32.mrb[0].mxu0
      %v1717 = vadd.f32 %v1621, %v1716
      %v1718 = vpop.f32.mrb[0].mxu0
      %1719 = vmatprep.mubr.bf16.mxu0 0
      %1720 = vmatmul.mubr.bf16.gmra.mrb[0].mxu0 %v1666
      %v1721 = vpop.f32.mrb[0].mxu0
      %v1722 = vadd.f32 %v1621, %v1721
      %v1723 = vpop.f32.mrb[0].mxu0
      %v1724 = vpop.f32.mrb[0].mxu0
      %v1725 = vadd.f32 %v1621, %v1724
      %v1726 = vpop.f32.mrb[0].mxu0
      %1727 = vmatprep.mubr.bf16.mxu0 0
      %1728 = vmatmul.mubr.bf16.gmra.mrb[0].mxu0 %v1669
      %v1729 = vpop.f32.mrb[0].mxu0
      %v1730 = vadd.f32 %v1621, %v1729
      %v1731 = vpop.f32.mrb[0].mxu0
      %v1732 = vpop.f32.mrb[0].mxu0
      %v1733 = vadd.f32 %v1621, %v1732
      %v1734 = vpop.f32.mrb[0].mxu0
      %1735 = vdwg.mxu0
      %s1736 = scalar_lea.vmem %s7, 48
      %v1737 = vld [vmem:[%s1736] sm:$0xf]
      %v1738 = vld [vmem:[%s1736 + $0x4] sm:$0xf]
      %v1739 = vld [vmem:[%s1736 + $0x8] sm:$0xf]
      %v1740 = vld [vmem:[%s1736 + $0xc] sm:$0xf]
      %v1741 = vld [vmem:[%s1736 + $0x10] sm:$0xf]
      %v1742 = vld [vmem:[%s1736 + $0x14] sm:$0xf]
      %v1743 = vld [vmem:[%s1736 + $0x18] sm:$0xf]
      %v1744 = vld [vmem:[%s1736 + $0x1c] sm:$0xf]
      %v1745 = vld [vmem:[%s1736 + $0x20] sm:$0xf]
      %v1746 = vld [vmem:[%s1736 + $0x24] sm:$0xf]
      %v1747 = vld [vmem:[%s1736 + $0x28] sm:$0xf]
      %v1748 = vld [vmem:[%s1736 + $0x2c] sm:$0xf]
      %s1749 = scalar_lea.vmem %s8, 1
      %v1750 = vld [vmem:[%s1749] sm:$0x1]
      %v1752 = vlaneseq
      %v1753 = vshrl.u32 %v1752, 7
      %v1754 = vsub.s32 0, %v1753
      %v1755 = vrot.slane %v1750, %v1754
      %v1769 = vunpack.c.l.b16 %v1737
      %v1770 = vunpack.c.l.b16 %v1738
      %v1771 = vunpack.c.l.b16 %v1739
      %v1772 = vunpack.c.l.b16 %v1740
      %v1773 = vunpack.c.l.b16 %v1741
      %v1774 = vunpack.c.l.b16 %v1742
      %v1775 = vunpack.c.l.b16 %v1743
      %v1776 = vunpack.c.l.b16 %v1744
      %v1777 = vunpack.c.l.b16 %v1745
      %v1778 = vunpack.c.l.b16 %v1746
      %v1779 = vunpack.c.l.b16 %v1747
      %v1780 = vunpack.c.l.b16 %v1748
      %v1781 = vpack.c.b16 %v1770, %v1769
      %v1782 = vpack.c.b16 %v1772, %v1771
      %v1783 = vpack.c.b16 %v1774, %v1773
      %v1784 = vpack.c.b16 %v1776, %v1775
      %v1785 = vpack.c.b16 %v1778, %v1777
      %v1786 = vpack.c.b16 %v1780, %v1779
      %1793 = vmatprep.subr.bf16.mxu0 0
      %1794 = vmatpush1.bf16.msra.mxu0 %v1781
      %1795 = vmatprep.subr.bf16.mxu0 0
      %1796 = vmatpush1.bf16.msra.mxu0 %v1782
      %1797 = vmatprep.subr.bf16.mxu0 0
      %1798 = vmatpush1.bf16.msra.mxu0 %v1783
      %1799 = vmatprep.subr.bf16.mxu0 0
      %1800 = vmatpush1.bf16.msra.mxu0 %v1784
      %1801 = vmatprep.subr.bf16.mxu0 0
      %1802 = vmatpush1.bf16.msra.mxu0 %v1785
      %1803 = vmatprep.subr.bf16.mxu0 0
      %1804 = vmatpush1.bf16.msra.mxu0 %v1786
      %1805 = vmatprep.subr.bf16.mxu0 0
      %1806 = vmatpush1.bf16.msra.mxu0 0
      %1807 = vmatprep.subr.bf16.mxu0 0
      %1808 = vmatpush1.bf16.msra.mxu0 0
      %1809 = vmatprep.subr.bf16.mxu0 0
      %1810 = vmatpush1.bf16.msra.mxu0 0
      %1811 = vmatprep.subr.bf16.mxu0 0
      %1812 = vmatpush1.bf16.msra.mxu0 0
      %1813 = vmatprep.subr.bf16.mxu0 0
      %1814 = vmatpush1.bf16.msra.mxu0 0
      %1815 = vmatprep.subr.bf16.mxu0 0
      %1816 = vmatpush1.bf16.msra.mxu0 0
      %1817 = vmatprep.subr.bf16.mxu0 0
      %1818 = vmatpush1.bf16.msra.mxu0 0
      %1819 = vmatprep.subr.bf16.mxu0 0
      %1820 = vmatpush1.bf16.msra.mxu0 0
      %1821 = vmatprep.subr.bf16.mxu0 0
      %1822 = vmatpush1.bf16.msra.mxu0 0
      %1823 = vmatprep.subr.bf16.mxu0 0
      %1824 = vmatpush1.bf16.msra.mxu0 0
      %1825 = vmatprep.mubr.bf16.mxu0 0
      %1826 = vmatmul.mubr.bf16.gmra.mrb[0].mxu0 %v1660
      %v1827 = vpop.f32.mrb[0].mxu0
      %v1828 = vadd.f32 %v1755, %v1827
      %v1829 = vpop.f32.mrb[0].mxu0
      %v1830 = vpop.f32.mrb[0].mxu0
      %v1831 = vadd.f32 %v1755, %v1830
      %v1832 = vpop.f32.mrb[0].mxu0
      %1833 = vmatprep.mubr.bf16.mxu0 0
      %1834 = vmatmul.mubr.bf16.gmra.mrb[0].mxu0 %v1663
      %v1835 = vpop.f32.mrb[0].mxu0
      %v1836 = vadd.f32 %v1755, %v1835
      %v1837 = vpop.f32.mrb[0].mxu0
      %v1838 = vpop.f32.mrb[0].mxu0
      %v1839 = vadd.f32 %v1755, %v1838
      %v1840 = vpop.f32.mrb[0].mxu0
      %1841 = vmatprep.mubr.bf16.mxu0 0
      %1842 = vmatmul.mubr.bf16.gmra.mrb[0].mxu0 %v1666
      %v1843 = vpop.f32.mrb[0].mxu0
      %v1844 = vadd.f32 %v1755, %v1843
      %v1845 = vpop.f32.mrb[0].mxu0
      %v1846 = vpop.f32.mrb[0].mxu0
      %v1847 = vadd.f32 %v1755, %v1846
      %v1848 = vpop.f32.mrb[0].mxu0
      %1849 = vmatprep.mubr.bf16.mxu0 0
      %1850 = vmatmul.mubr.bf16.gmra.mrb[0].mxu0 %v1669
      %v1851 = vpop.f32.mrb[0].mxu0
      %v1852 = vadd.f32 %v1755, %v1851
      %v1853 = vpop.f32.mrb[0].mxu0
      %v1854 = vpop.f32.mrb[0].mxu0
      %v1855 = vadd.f32 %v1755, %v1854
      %v1856 = vpop.f32.mrb[0].mxu0
      %1857 = vdwg.mxu0
      %v1858 = vtanh.pop %v1706
      %v1859 = vtanh.pop %v1709
      %v1860 = vtanh.pop %v1714
      %v1861 = vtanh.pop %v1717
      %v1862 = vtanh.pop %v1722
      %v1863 = vtanh.pop %v1725
      %v1864 = vtanh.pop %v1730
      %v1865 = vtanh.pop %v1733
      %v1866 = vxor.u32 %v1828, 2147483648
      %v1867 = vxor.u32 %v1831, 2147483648
      %v1868 = vxor.u32 %v1836, 2147483648
      %v1869 = vxor.u32 %v1839, 2147483648
      %v1870 = vxor.u32 %v1844, 2147483648
      %v1871 = vxor.u32 %v1847, 2147483648
      %v1872 = vxor.u32 %v1852, 2147483648
      %v1873 = vxor.u32 %v1855, 2147483648
      %v1874 = vmul.f32 %v1866, 1.442695
      %v1875 = vpow.pop %v1874
      %v1876 = vmul.f32 %v1867, 1.442695
      %v1877 = vpow.pop %v1876
      %v1878 = vmul.f32 %v1868, 1.442695
      %v1879 = vpow.pop %v1878
      %v1880 = vmul.f32 %v1869, 1.442695
      %v1881 = vpow.pop %v1880
      %v1882 = vmul.f32 %v1870, 1.442695
      %v1883 = vpow.pop %v1882
      %v1884 = vmul.f32 %v1871, 1.442695
      %v1885 = vpow.pop %v1884
      %v1886 = vmul.f32 %v1872, 1.442695
      %v1887 = vpow.pop %v1886
      %v1888 = vmul.f32 %v1873, 1.442695
      %v1889 = vpow.pop %v1888
      %v1890 = vadd.f32 %v1875, 1.0
      %v1891 = vadd.f32 %v1877, 1.0
      %v1892 = vadd.f32 %v1879, 1.0
      %v1893 = vadd.f32 %v1881, 1.0
      %v1894 = vadd.f32 %v1883, 1.0
      %v1895 = vadd.f32 %v1885, 1.0
      %v1896 = vadd.f32 %v1887, 1.0
      %v1897 = vadd.f32 %v1889, 1.0
      %v1898 = vrcp.pop %v1890
      %v1899 = vmul.f32 1.0, %v1898
      %v1900 = vrcp.pop %v1891
      %v1901 = vmul.f32 1.0, %v1900
      %v1902 = vrcp.pop %v1892
      %v1903 = vmul.f32 1.0, %v1902
      %v1904 = vrcp.pop %v1893
      %v1905 = vmul.f32 1.0, %v1904
      %v1906 = vrcp.pop %v1894
      %v1907 = vmul.f32 1.0, %v1906
      %v1908 = vrcp.pop %v1895
      %v1909 = vmul.f32 1.0, %v1908
      %v1910 = vrcp.pop %v1896
      %v1911 = vmul.f32 1.0, %v1910
      %v1912 = vrcp.pop %v1897
      %v1913 = vmul.f32 1.0, %v1912
      %v1914 = vmul.f32 %v1858, %v1899
      %v1915 = vmul.f32 %v1859, %v1901
      %v1916 = vmul.f32 %v1860, %v1903
      %v1917 = vmul.f32 %v1861, %v1905
      %v1918 = vmul.f32 %v1862, %v1907
      %v1919 = vmul.f32 %v1863, %v1909
      %v1920 = vmul.f32 %v1864, %v1911
      %v1921 = vmul.f32 %v1865, %v1913
      %v1922 = vpack.c.bf16 %v1915, %v1914
      %v1923 = vpack.c.bf16 %v1917, %v1916
      %v1924 = vpack.c.bf16 %v1919, %v1918
      %v1925 = vpack.c.bf16 %v1921, %v1920
      %s1926 = scalar_lea.vmem %s11, 16
      %v1927 = vld [vmem:[%s1926] sm:$0xf]
      %v1928 = vld [vmem:[%s1926 + $0x4] sm:$0xf]
      %v1929 = vld [vmem:[%s1926 + $0x8] sm:$0xf]
      %v1930 = vld [vmem:[%s1926 + $0xc] sm:$0xf]
      %s1931 = scalar_lea.vmem %s12, 1
      %v1932 = vld [vmem:[%s1931] sm:$0x1]
      %v1934 = vlaneseq
      %v1935 = vshrl.u32 %v1934, 7
      %v1936 = vsub.s32 0, %v1935
      %v1937 = vrot.slane %v1932, %v1936
      %v1943 = vunpack.c.l.b16 %v1927
      %v1944 = vunpack.c.l.b16 %v1928
      %v1945 = vunpack.c.l.b16 %v1929
      %v1946 = vunpack.c.l.b16 %v1930
      %v1947 = vpack.c.b16 %v1944, %v1943
      %v1948 = vpack.c.b16 %v1946, %v1945
      %v1952 = vsel %vm873, %v1922, 0
      %v1955 = vsel %vm873, %v1923, 0
      %v1958 = vsel %vm873, %v1924, 0
      %v1961 = vsel %vm873, %v1925, 0
      %1963 = vmatprep.subr.bf16.mxu0 0
      %1964 = vmatpush1.bf16.msra.mxu0 %v1947
      %1965 = vmatprep.subr.bf16.mxu0 0
      %1966 = vmatpush1.bf16.msra.mxu0 %v1948
      %1967 = vmatprep.subr.bf16.mxu0 0
      %1968 = vmatpush1.bf16.msra.mxu0 0
      %1969 = vmatprep.subr.bf16.mxu0 0
      %1970 = vmatpush1.bf16.msra.mxu0 0
      %1971 = vmatprep.subr.bf16.mxu0 0
      %1972 = vmatpush1.bf16.msra.mxu0 0
      %1973 = vmatprep.subr.bf16.mxu0 0
      %1974 = vmatpush1.bf16.msra.mxu0 0
      %1975 = vmatprep.subr.bf16.mxu0 0
      %1976 = vmatpush1.bf16.msra.mxu0 0
      %1977 = vmatprep.subr.bf16.mxu0 0
      %1978 = vmatpush1.bf16.msra.mxu0 0
      %1979 = vmatprep.subr.bf16.mxu0 0
      %1980 = vmatpush1.bf16.msra.mxu0 0
      %1981 = vmatprep.subr.bf16.mxu0 0
      %1982 = vmatpush1.bf16.msra.mxu0 0
      %1983 = vmatprep.subr.bf16.mxu0 0
      %1984 = vmatpush1.bf16.msra.mxu0 0
      %1985 = vmatprep.subr.bf16.mxu0 0
      %1986 = vmatpush1.bf16.msra.mxu0 0
      %1987 = vmatprep.subr.bf16.mxu0 0
      %1988 = vmatpush1.bf16.msra.mxu0 0
      %1989 = vmatprep.subr.bf16.mxu0 0
      %1990 = vmatpush1.bf16.msra.mxu0 0
      %1991 = vmatprep.subr.bf16.mxu0 0
      %1992 = vmatpush1.bf16.msra.mxu0 0
      %1993 = vmatprep.subr.bf16.mxu0 0
      %1994 = vmatpush1.bf16.msra.mxu0 0
      %1995 = vmatprep.mubr.bf16.mxu0 0
      %1996 = vmatmul.mubr.bf16.gmra.mrb[0].mxu0 %v1952
      %v1997 = vpop.f32.mrb[0].mxu0
      %v1998 = vadd.f32 %v1937, %v1997
      %v1999 = vpop.f32.mrb[0].mxu0
      %v2000 = vpop.f32.mrb[0].mxu0
      %v2001 = vadd.f32 %v1937, %v2000
      %v2002 = vpop.f32.mrb[0].mxu0
      %2003 = vmatprep.mubr.bf16.mxu0 0
      %2004 = vmatmul.mubr.bf16.gmra.mrb[0].mxu0 %v1955
      %v2005 = vpop.f32.mrb[0].mxu0
      %v2006 = vadd.f32 %v1937, %v2005
      %v2007 = vpop.f32.mrb[0].mxu0
      %v2008 = vpop.f32.mrb[0].mxu0
      %v2009 = vadd.f32 %v1937, %v2008
      %v2010 = vpop.f32.mrb[0].mxu0
      %2011 = vmatprep.mubr.bf16.mxu0 0
      %2012 = vmatmul.mubr.bf16.gmra.mrb[0].mxu0 %v1958
      %v2013 = vpop.f32.mrb[0].mxu0
      %v2014 = vadd.f32 %v1937, %v2013
      %v2015 = vpop.f32.mrb[0].mxu0
      %v2016 = vpop.f32.mrb[0].mxu0
      %v2017 = vadd.f32 %v1937, %v2016
      %v2018 = vpop.f32.mrb[0].mxu0
      %2019 = vmatprep.mubr.bf16.mxu0 0
      %2020 = vmatmul.mubr.bf16.gmra.mrb[0].mxu0 %v1961
      %v2021 = vpop.f32.mrb[0].mxu0
      %v2022 = vadd.f32 %v1937, %v2021
      %v2023 = vpop.f32.mrb[0].mxu0
      %v2024 = vpop.f32.mrb[0].mxu0
      %v2025 = vadd.f32 %v1937, %v2024
      %v2026 = vpop.f32.mrb[0].mxu0
      %2027 = vdwg.mxu0
      %v2028 = vadd.f32 %v1286, %v1998
      %v2029 = vadd.f32 %v1289, %v2001
      %v2030 = vadd.f32 %v1294, %v2006
      %v2031 = vadd.f32 %v1297, %v2009
      %v2032 = vadd.f32 %v1302, %v2014
      %v2033 = vadd.f32 %v1305, %v2017
      %v2034 = vadd.f32 %v1310, %v2022
      %v2035 = vadd.f32 %v1313, %v2025
      %s2036 = scalar_lea.vmem %s9, 16
      %v2037 = vld [vmem:[%s2036] sm:$0xf]
      %v2038 = vld [vmem:[%s2036 + $0x4] sm:$0xf]
      %v2039 = vld [vmem:[%s2036 + $0x8] sm:$0xf]
      %v2040 = vld [vmem:[%s2036 + $0xc] sm:$0xf]
      %s2041 = scalar_lea.vmem %s10, 1
      %v2042 = vld [vmem:[%s2041] sm:$0x1]
      %v2044 = vlaneseq
      %v2045 = vshrl.u32 %v2044, 7
      %v2046 = vsub.s32 0, %v2045
      %v2047 = vrot.slane %v2042, %v2046
      %v2053 = vunpack.c.l.b16 %v2037
      %v2054 = vunpack.c.l.b16 %v2038
      %v2055 = vunpack.c.l.b16 %v2039
      %v2056 = vunpack.c.l.b16 %v2040
      %v2057 = vpack.c.b16 %v2054, %v2053
      %v2058 = vpack.c.b16 %v2056, %v2055
      %2061 = vmatprep.subr.bf16.mxu0 0
      %2062 = vmatpush1.bf16.msra.mxu0 %v2057
      %2063 = vmatprep.subr.bf16.mxu0 0
      %2064 = vmatpush1.bf16.msra.mxu0 %v2058
      %2065 = vmatprep.subr.bf16.mxu0 0
      %2066 = vmatpush1.bf16.msra.mxu0 0
      %2067 = vmatprep.subr.bf16.mxu0 0
      %2068 = vmatpush1.bf16.msra.mxu0 0
      %2069 = vmatprep.subr.bf16.mxu0 0
      %2070 = vmatpush1.bf16.msra.mxu0 0
      %2071 = vmatprep.subr.bf16.mxu0 0
      %2072 = vmatpush1.bf16.msra.mxu0 0
      %2073 = vmatprep.subr.bf16.mxu0 0
      %2074 = vmatpush1.bf16.msra.mxu0 0
      %2075 = vmatprep.subr.bf16.mxu0 0
      %2076 = vmatpush1.bf16.msra.mxu0 0
      %2077 = vmatprep.subr.bf16.mxu0 0
      %2078 = vmatpush1.bf16.msra.mxu0 0
      %2079 = vmatprep.subr.bf16.mxu0 0
      %2080 = vmatpush1.bf16.msra.mxu0 0
      %2081 = vmatprep.subr.bf16.mxu0 0
      %2082 = vmatpush1.bf16.msra.mxu0 0
      %2083 = vmatprep.subr.bf16.mxu0 0
      %2084 = vmatpush1.bf16.msra.mxu0 0
      %2085 = vmatprep.subr.bf16.mxu0 0
      %2086 = vmatpush1.bf16.msra.mxu0 0
      %2087 = vmatprep.subr.bf16.mxu0 0
      %2088 = vmatpush1.bf16.msra.mxu0 0
      %2089 = vmatprep.subr.bf16.mxu0 0
      %2090 = vmatpush1.bf16.msra.mxu0 0
      %2091 = vmatprep.subr.bf16.mxu0 0
      %2092 = vmatpush1.bf16.msra.mxu0 0
      %2093 = vmatprep.mubr.bf16.mxu0 0
      %2094 = vmatmul.mubr.bf16.gmra.mrb[0].mxu0 %v1952
      %v2095 = vpop.f32.mrb[0].mxu0
      %v2096 = vadd.f32 %v2047, %v2095
      %v2097 = vpop.f32.mrb[0].mxu0
      %v2098 = vpop.f32.mrb[0].mxu0
      %v2099 = vadd.f32 %v2047, %v2098
      %v2100 = vpop.f32.mrb[0].mxu0
      %2101 = vmatprep.mubr.bf16.mxu0 0
      %2102 = vmatmul.mubr.bf16.gmra.mrb[0].mxu0 %v1955
      %v2103 = vpop.f32.mrb[0].mxu0
      %v2104 = vadd.f32 %v2047, %v2103
      %v2105 = vpop.f32.mrb[0].mxu0
      %v2106 = vpop.f32.mrb[0].mxu0
      %v2107 = vadd.f32 %v2047, %v2106
      %v2108 = vpop.f32.mrb[0].mxu0
      %2109 = vmatprep.mubr.bf16.mxu0 0
      %2110 = vmatmul.mubr.bf16.gmra.mrb[0].mxu0 %v1958
      %v2111 = vpop.f32.mrb[0].mxu0
      %v2112 = vadd.f32 %v2047, %v2111
      %v2113 = vpop.f32.mrb[0].mxu0
      %v2114 = vpop.f32.mrb[0].mxu0
      %v2115 = vadd.f32 %v2047, %v2114
      %v2116 = vpop.f32.mrb[0].mxu0
      %2117 = vmatprep.mubr.bf16.mxu0 0
      %2118 = vmatmul.mubr.bf16.gmra.mrb[0].mxu0 %v1961
      %v2119 = vpop.f32.mrb[0].mxu0
      %v2120 = vadd.f32 %v2047, %v2119
      %v2121 = vpop.f32.mrb[0].mxu0
      %v2122 = vpop.f32.mrb[0].mxu0
      %v2123 = vadd.f32 %v2047, %v2122
      %v2124 = vpop.f32.mrb[0].mxu0
      %2125 = vdwg.mxu0
      %v2126 = vadd.f32 %v1412, %v2096
      %v2127 = vadd.f32 %v1413, %v2099
      %v2128 = vadd.f32 %v1414, %v2104
      %v2129 = vadd.f32 %v1415, %v2107
      %v2130 = vadd.f32 %v1416, %v2112
      %v2131 = vadd.f32 %v1417, %v2115
      %v2132 = vadd.f32 %v1418, %v2120
      %v2133 = vadd.f32 %v1419, %v2123
      %v2134 = vmul.f32 %v2126, %v577
      %v2135 = vmul.f32 %v2127, %v578
      %v2136 = vmul.f32 %v2128, %v579
      %v2137 = vmul.f32 %v2129, %v580
      %v2138 = vmul.f32 %v2130, %v581
      %v2139 = vmul.f32 %v2131, %v582
      %v2140 = vmul.f32 %v2132, %v583
      %v2141 = vmul.f32 %v2133, %v584
      %v2142 = vrot.slane %v2134, 4
      %v2143 = vrot.slane %v2135, 4
      %v2144 = vrot.slane %v2136, 4
      %v2145 = vrot.slane %v2137, 4
      %v2146 = vrot.slane %v2138, 4
      %v2147 = vrot.slane %v2139, 4
      %v2148 = vrot.slane %v2140, 4
      %v2149 = vrot.slane %v2141, 4
      %vm2150 = vcmp.lt.s32.totalorder %v552, 4
      %v2151 = vsel %vm2150, %v2148, %v2149
      %v2152 = vsel %vm2150, %v2147, %v2148
      %v2153 = vsel %vm2150, %v2146, %v2147
      %v2154 = vsel %vm2150, %v2145, %v2146
      %v2155 = vsel %vm2150, %v2144, %v2145
      %v2156 = vsel %vm2150, %v2143, %v2144
      %v2157 = vsel %vm2150, %v2142, %v2143
      %v2158 = vsel %vm2150, %v2149, %v2142
      %vm2159 = vcmp.ge.s32.totalorder %v552, 4
      %vm2160 = vcmp.ge.s32.totalorder %v553, 4
      %vm2161 = vcmp.ge.s32.totalorder %v554, 4
      %vm2162 = vcmp.ge.s32.totalorder %v555, 4
      %vm2163 = vcmp.ge.s32.totalorder %v556, 4
      %vm2164 = vcmp.ge.s32.totalorder %v557, 4
      %vm2165 = vcmp.ge.s32.totalorder %v558, 4
      %vm2166 = vcmp.ge.s32.totalorder %v559, 4
      %v2167 = vsel %vm2159, 1, 0
      %v2168 = vsel %vm2160, 1, 0
      %v2169 = vsel %vm2161, 1, 0
      %v2170 = vsel %vm2162, 1, 0
      %v2171 = vsel %vm2163, 1, 0
      %v2172 = vsel %vm2164, 1, 0
      %v2173 = vsel %vm2165, 1, 0
      %v2174 = vsel %vm2166, 1, 0
      %vm2175 = vcmp.eq.s32.totalorder %v2167, 1
      %vm2176 = vcmp.eq.s32.totalorder %v2168, 1
      %vm2177 = vcmp.eq.s32.totalorder %v2169, 1
      %vm2178 = vcmp.eq.s32.totalorder %v2170, 1
      %vm2179 = vcmp.eq.s32.totalorder %v2171, 1
      %vm2180 = vcmp.eq.s32.totalorder %v2172, 1
      %vm2181 = vcmp.eq.s32.totalorder %v2173, 1
      %vm2182 = vcmp.eq.s32.totalorder %v2174, 1
      %v2183 = vsel %vm2175, %v2158, 0.0
      %v2184 = vsel %vm2176, %v2157, 0.0
      %v2185 = vsel %vm2177, %v2156, 0.0
      %v2186 = vsel %vm2178, %v2155, 0.0
      %v2187 = vsel %vm2179, %v2154, 0.0
      %v2188 = vsel %vm2180, %v2153, 0.0
      %v2189 = vsel %vm2181, %v2152, 0.0
      %v2190 = vsel %vm2182, %v2151, 0.0
      %vm2191 = vcmp.lt.s32.totalorder %v552, 60
      %vm2192 = vcmp.lt.s32.totalorder %v553, 60
      %vm2193 = vcmp.lt.s32.totalorder %v554, 60
      %vm2194 = vcmp.lt.s32.totalorder %v555, 60
      %vm2195 = vcmp.lt.s32.totalorder %v556, 60
      %vm2196 = vcmp.lt.s32.totalorder %v557, 60
      %vm2197 = vcmp.lt.s32.totalorder %v558, 60
      %vm2198 = vcmp.lt.s32.totalorder %v559, 60
      %v2199 = vsel %vm2191, 1, 0
      %v2200 = vsel %vm2192, 1, 0
      %v2201 = vsel %vm2193, 1, 0
      %v2202 = vsel %vm2194, 1, 0
      %v2203 = vsel %vm2195, 1, 0
      %v2204 = vsel %vm2196, 1, 0
      %v2205 = vsel %vm2197, 1, 0
      %v2206 = vsel %vm2198, 1, 0
      %vm2207 = vcmp.eq.s32.totalorder %v2199, 1
      %vm2208 = vcmp.eq.s32.totalorder %v2200, 1
      %vm2209 = vcmp.eq.s32.totalorder %v2201, 1
      %vm2210 = vcmp.eq.s32.totalorder %v2202, 1
      %vm2211 = vcmp.eq.s32.totalorder %v2203, 1
      %vm2212 = vcmp.eq.s32.totalorder %v2204, 1
      %vm2213 = vcmp.eq.s32.totalorder %v2205, 1
      %vm2214 = vcmp.eq.s32.totalorder %v2206, 1
      %v2215 = vsel %vm2207, %v2157, 0.0
      %v2216 = vsel %vm2208, %v2156, 0.0
      %v2217 = vsel %vm2209, %v2155, 0.0
      %v2218 = vsel %vm2210, %v2154, 0.0
      %v2219 = vsel %vm2211, %v2153, 0.0
      %v2220 = vsel %vm2212, %v2152, 0.0
      %v2221 = vsel %vm2213, %v2151, 0.0
      %v2222 = vsel %vm2214, %v2158, 0.0
      %2231 = vrot.lane.b32.xlu0 %v2134, 32
      %v2232 = vpop.permute.xlu0 %2231
      %2233 = vrot.lane.b32.xlu0 %v2135, 32
      %v2234 = vpop.permute.xlu0 %2233
      %2235 = vrot.lane.b32.xlu0 %v2136, 32
      %v2236 = vpop.permute.xlu0 %2235
      %2237 = vrot.lane.b32.xlu0 %v2137, 32
      %v2238 = vpop.permute.xlu0 %2237
      %2239 = vrot.lane.b32.xlu0 %v2138, 32
      %v2240 = vpop.permute.xlu0 %2239
      %2241 = vrot.lane.b32.xlu0 %v2139, 32
      %v2242 = vpop.permute.xlu0 %2241
      %2243 = vrot.lane.b32.xlu0 %v2140, 32
      %v2244 = vpop.permute.xlu0 %2243
      %2245 = vrot.lane.b32.xlu0 %v2141, 32
      %v2246 = vpop.permute.xlu0 %2245
      %2263 = vrot.lane.b32.xlu0 %v2215, 64
      %v2264 = vpop.permute.xlu0 %2263
      %2265 = vrot.lane.b32.xlu0 %v2216, 64
      %v2266 = vpop.permute.xlu0 %2265
      %2267 = vrot.lane.b32.xlu0 %v2217, 64
      %v2268 = vpop.permute.xlu0 %2267
      %2269 = vrot.lane.b32.xlu0 %v2218, 64
      %v2270 = vpop.permute.xlu0 %2269
      %2271 = vrot.lane.b32.xlu0 %v2219, 64
      %v2272 = vpop.permute.xlu0 %2271
      %2273 = vrot.lane.b32.xlu0 %v2220, 64
      %v2274 = vpop.permute.xlu0 %2273
      %2275 = vrot.lane.b32.xlu0 %v2221, 64
      %v2276 = vpop.permute.xlu0 %2275
      %2277 = vrot.lane.b32.xlu0 %v2222, 64
      %v2278 = vpop.permute.xlu0 %2277
      %v2287 = vsel %vm873, %v2183, %v2232
      %v2288 = vsel %vm873, %v2184, %v2234
      %v2289 = vsel %vm873, %v2185, %v2236
      %v2290 = vsel %vm873, %v2186, %v2238
      %v2291 = vsel %vm873, %v2187, %v2240
      %v2292 = vsel %vm873, %v2188, %v2242
      %v2293 = vsel %vm873, %v2189, %v2244
      %v2294 = vsel %vm873, %v2190, %v2246
      %v2295 = vsel %vm882, %v2287, %v2264
      %v2296 = vsel %vm882, %v2288, %v2266
      %v2297 = vsel %vm882, %v2289, %v2268
      %v2298 = vsel %vm882, %v2290, %v2270
      %v2299 = vsel %vm882, %v2291, %v2272
      %v2300 = vsel %vm882, %v2292, %v2274
      %v2301 = vsel %vm882, %v2293, %v2276
      %v2302 = vsel %vm882, %v2294, %v2278
      %v2303 = vpack.c.bf16 %v2296, %v2295
      %v2304 = vpack.c.bf16 %v2298, %v2297
      %v2305 = vpack.c.bf16 %v2300, %v2299
      %v2306 = vpack.c.bf16 %v2302, %v2301
      %s2307 = scalar_lea.vmem %s5, 96
      %v2308 = vld [vmem:[%s2307] sm:$0xf]
      %v2309 = vld [vmem:[%s2307 + $0x4] sm:$0xf]
      %v2310 = vld [vmem:[%s2307 + $0x8] sm:$0xf]
      %v2311 = vld [vmem:[%s2307 + $0xc] sm:$0xf]
      %v2312 = vld [vmem:[%s2307 + $0x10] sm:$0xf]
      %v2313 = vld [vmem:[%s2307 + $0x14] sm:$0xf]
      %v2314 = vld [vmem:[%s2307 + $0x18] sm:$0xf]
      %v2315 = vld [vmem:[%s2307 + $0x1c] sm:$0xf]
      %v2316 = vld [vmem:[%s2307 + $0x20] sm:$0xf]
      %v2317 = vld [vmem:[%s2307 + $0x24] sm:$0xf]
      %v2318 = vld [vmem:[%s2307 + $0x28] sm:$0xf]
      %v2319 = vld [vmem:[%s2307 + $0x2c] sm:$0xf]
      %s2320 = scalar_lea.vmem %s6, 2
      %v2321 = vld [vmem:[%s2320] sm:$0x1]
      %v2323 = vlaneseq
      %v2324 = vshrl.u32 %v2323, 7
      %v2325 = vsub.s32 0, %v2324
      %v2326 = vrot.slane %v2321, %v2325
      %v2340 = vunpack.c.l.b16 %v2308
      %v2341 = vunpack.c.l.b16 %v2309
      %v2342 = vunpack.c.l.b16 %v2310
      %v2343 = vunpack.c.l.b16 %v2311
      %v2344 = vunpack.c.l.b16 %v2312
      %v2345 = vunpack.c.l.b16 %v2313
      %v2346 = vunpack.c.l.b16 %v2314
      %v2347 = vunpack.c.l.b16 %v2315
      %v2348 = vunpack.c.l.b16 %v2316
      %v2349 = vunpack.c.l.b16 %v2317
      %v2350 = vunpack.c.l.b16 %v2318
      %v2351 = vunpack.c.l.b16 %v2319
      %v2352 = vpack.c.b16 %v2341, %v2340
      %v2353 = vpack.c.b16 %v2343, %v2342
      %v2354 = vpack.c.b16 %v2345, %v2344
      %v2355 = vpack.c.b16 %v2347, %v2346
      %v2356 = vpack.c.b16 %v2349, %v2348
      %v2357 = vpack.c.b16 %v2351, %v2350
      %v2365 = vsel %vm950, %v2303, 0
      %v2368 = vsel %vm950, %v2304, 0
      %v2371 = vsel %vm950, %v2305, 0
      %v2374 = vsel %vm950, %v2306, 0
      %2376 = vmatprep.subr.bf16.mxu0 0
      %2377 = vmatpush1.bf16.msra.mxu0 %v2352
      %2378 = vmatprep.subr.bf16.mxu0 0
      %2379 = vmatpush1.bf16.msra.mxu0 %v2353
      %2380 = vmatprep.subr.bf16.mxu0 0
      %2381 = vmatpush1.bf16.msra.mxu0 %v2354
      %2382 = vmatprep.subr.bf16.mxu0 0
      %2383 = vmatpush1.bf16.msra.mxu0 %v2355
      %2384 = vmatprep.subr.bf16.mxu0 0
      %2385 = vmatpush1.bf16.msra.mxu0 %v2356
      %2386 = vmatprep.subr.bf16.mxu0 0
      %2387 = vmatpush1.bf16.msra.mxu0 %v2357
      %2388 = vmatprep.subr.bf16.mxu0 0
      %2389 = vmatpush1.bf16.msra.mxu0 0
      %2390 = vmatprep.subr.bf16.mxu0 0
      %2391 = vmatpush1.bf16.msra.mxu0 0
      %2392 = vmatprep.subr.bf16.mxu0 0
      %2393 = vmatpush1.bf16.msra.mxu0 0
      %2394 = vmatprep.subr.bf16.mxu0 0
      %2395 = vmatpush1.bf16.msra.mxu0 0
      %2396 = vmatprep.subr.bf16.mxu0 0
      %2397 = vmatpush1.bf16.msra.mxu0 0
      %2398 = vmatprep.subr.bf16.mxu0 0
      %2399 = vmatpush1.bf16.msra.mxu0 0
      %2400 = vmatprep.subr.bf16.mxu0 0
      %2401 = vmatpush1.bf16.msra.mxu0 0
      %2402 = vmatprep.subr.bf16.mxu0 0
      %2403 = vmatpush1.bf16.msra.mxu0 0
      %2404 = vmatprep.subr.bf16.mxu0 0
      %2405 = vmatpush1.bf16.msra.mxu0 0
      %2406 = vmatprep.subr.bf16.mxu0 0
      %2407 = vmatpush1.bf16.msra.mxu0 0
      %2408 = vmatprep.mubr.bf16.mxu0 0
      %2409 = vmatmul.mubr.bf16.gmra.mrb[0].mxu0 %v2365
      %v2410 = vpop.f32.mrb[0].mxu0
      %v2411 = vadd.f32 %v2326, %v2410
      %v2412 = vpop.f32.mrb[0].mxu0
      %v2413 = vpop.f32.mrb[0].mxu0
      %v2414 = vadd.f32 %v2326, %v2413
      %v2415 = vpop.f32.mrb[0].mxu0
      %2416 = vmatprep.mubr.bf16.mxu0 0
      %2417 = vmatmul.mubr.bf16.gmra.mrb[0].mxu0 %v2368
      %v2418 = vpop.f32.mrb[0].mxu0
      %v2419 = vadd.f32 %v2326, %v2418
      %v2420 = vpop.f32.mrb[0].mxu0
      %v2421 = vpop.f32.mrb[0].mxu0
      %v2422 = vadd.f32 %v2326, %v2421
      %v2423 = vpop.f32.mrb[0].mxu0
      %2424 = vmatprep.mubr.bf16.mxu0 0
      %2425 = vmatmul.mubr.bf16.gmra.mrb[0].mxu0 %v2371
      %v2426 = vpop.f32.mrb[0].mxu0
      %v2427 = vadd.f32 %v2326, %v2426
      %v2428 = vpop.f32.mrb[0].mxu0
      %v2429 = vpop.f32.mrb[0].mxu0
      %v2430 = vadd.f32 %v2326, %v2429
      %v2431 = vpop.f32.mrb[0].mxu0
      %2432 = vmatprep.mubr.bf16.mxu0 0
      %2433 = vmatmul.mubr.bf16.gmra.mrb[0].mxu0 %v2374
      %v2434 = vpop.f32.mrb[0].mxu0
      %v2435 = vadd.f32 %v2326, %v2434
      %v2436 = vpop.f32.mrb[0].mxu0
      %v2437 = vpop.f32.mrb[0].mxu0
      %v2438 = vadd.f32 %v2326, %v2437
      %v2439 = vpop.f32.mrb[0].mxu0
      %2440 = vdwg.mxu0
      %s2441 = scalar_lea.vmem %s7, 96
      %v2442 = vld [vmem:[%s2441] sm:$0xf]
      %v2443 = vld [vmem:[%s2441 + $0x4] sm:$0xf]
      %v2444 = vld [vmem:[%s2441 + $0x8] sm:$0xf]
      %v2445 = vld [vmem:[%s2441 + $0xc] sm:$0xf]
      %v2446 = vld [vmem:[%s2441 + $0x10] sm:$0xf]
      %v2447 = vld [vmem:[%s2441 + $0x14] sm:$0xf]
      %v2448 = vld [vmem:[%s2441 + $0x18] sm:$0xf]
      %v2449 = vld [vmem:[%s2441 + $0x1c] sm:$0xf]
      %v2450 = vld [vmem:[%s2441 + $0x20] sm:$0xf]
      %v2451 = vld [vmem:[%s2441 + $0x24] sm:$0xf]
      %v2452 = vld [vmem:[%s2441 + $0x28] sm:$0xf]
      %v2453 = vld [vmem:[%s2441 + $0x2c] sm:$0xf]
      %s2454 = scalar_lea.vmem %s8, 2
      %v2455 = vld [vmem:[%s2454] sm:$0x1]
      %v2457 = vlaneseq
      %v2458 = vshrl.u32 %v2457, 7
      %v2459 = vsub.s32 0, %v2458
      %v2460 = vrot.slane %v2455, %v2459
      %v2474 = vunpack.c.l.b16 %v2442
      %v2475 = vunpack.c.l.b16 %v2443
      %v2476 = vunpack.c.l.b16 %v2444
      %v2477 = vunpack.c.l.b16 %v2445
      %v2478 = vunpack.c.l.b16 %v2446
      %v2479 = vunpack.c.l.b16 %v2447
      %v2480 = vunpack.c.l.b16 %v2448
      %v2481 = vunpack.c.l.b16 %v2449
      %v2482 = vunpack.c.l.b16 %v2450
      %v2483 = vunpack.c.l.b16 %v2451
      %v2484 = vunpack.c.l.b16 %v2452
      %v2485 = vunpack.c.l.b16 %v2453
      %v2486 = vpack.c.b16 %v2475, %v2474
      %v2487 = vpack.c.b16 %v2477, %v2476
      %v2488 = vpack.c.b16 %v2479, %v2478
      %v2489 = vpack.c.b16 %v2481, %v2480
      %v2490 = vpack.c.b16 %v2483, %v2482
      %v2491 = vpack.c.b16 %v2485, %v2484
      %2498 = vmatprep.subr.bf16.mxu0 0
      %2499 = vmatpush1.bf16.msra.mxu0 %v2486
      %2500 = vmatprep.subr.bf16.mxu0 0
      %2501 = vmatpush1.bf16.msra.mxu0 %v2487
      %2502 = vmatprep.subr.bf16.mxu0 0
      %2503 = vmatpush1.bf16.msra.mxu0 %v2488
      %2504 = vmatprep.subr.bf16.mxu0 0
      %2505 = vmatpush1.bf16.msra.mxu0 %v2489
      %2506 = vmatprep.subr.bf16.mxu0 0
      %2507 = vmatpush1.bf16.msra.mxu0 %v2490
      %2508 = vmatprep.subr.bf16.mxu0 0
      %2509 = vmatpush1.bf16.msra.mxu0 %v2491
      %2510 = vmatprep.subr.bf16.mxu0 0
      %2511 = vmatpush1.bf16.msra.mxu0 0
      %2512 = vmatprep.subr.bf16.mxu0 0
      %2513 = vmatpush1.bf16.msra.mxu0 0
      %2514 = vmatprep.subr.bf16.mxu0 0
      %2515 = vmatpush1.bf16.msra.mxu0 0
      %2516 = vmatprep.subr.bf16.mxu0 0
      %2517 = vmatpush1.bf16.msra.mxu0 0
      %2518 = vmatprep.subr.bf16.mxu0 0
      %2519 = vmatpush1.bf16.msra.mxu0 0
      %2520 = vmatprep.subr.bf16.mxu0 0
      %2521 = vmatpush1.bf16.msra.mxu0 0
      %2522 = vmatprep.subr.bf16.mxu0 0
      %2523 = vmatpush1.bf16.msra.mxu0 0
      %2524 = vmatprep.subr.bf16.mxu0 0
      %2525 = vmatpush1.bf16.msra.mxu0 0
      %2526 = vmatprep.subr.bf16.mxu0 0
      %2527 = vmatpush1.bf16.msra.mxu0 0
      %2528 = vmatprep.subr.bf16.mxu0 0
      %2529 = vmatpush1.bf16.msra.mxu0 0
      %2530 = vmatprep.mubr.bf16.mxu0 0
      %2531 = vmatmul.mubr.bf16.gmra.mrb[0].mxu0 %v2365
      %v2532 = vpop.f32.mrb[0].mxu0
      %v2533 = vadd.f32 %v2460, %v2532
      %v2534 = vpop.f32.mrb[0].mxu0
      %v2535 = vpop.f32.mrb[0].mxu0
      %v2536 = vadd.f32 %v2460, %v2535
      %v2537 = vpop.f32.mrb[0].mxu0
      %2538 = vmatprep.mubr.bf16.mxu0 0
      %2539 = vmatmul.mubr.bf16.gmra.mrb[0].mxu0 %v2368
      %v2540 = vpop.f32.mrb[0].mxu0
      %v2541 = vadd.f32 %v2460, %v2540
      %v2542 = vpop.f32.mrb[0].mxu0
      %v2543 = vpop.f32.mrb[0].mxu0
      %v2544 = vadd.f32 %v2460, %v2543
      %v2545 = vpop.f32.mrb[0].mxu0
      %2546 = vmatprep.mubr.bf16.mxu0 0
      %2547 = vmatmul.mubr.bf16.gmra.mrb[0].mxu0 %v2371
      %v2548 = vpop.f32.mrb[0].mxu0
      %v2549 = vadd.f32 %v2460, %v2548
      %v2550 = vpop.f32.mrb[0].mxu0
      %v2551 = vpop.f32.mrb[0].mxu0
      %v2552 = vadd.f32 %v2460, %v2551
      %v2553 = vpop.f32.mrb[0].mxu0
      %2554 = vmatprep.mubr.bf16.mxu0 0
      %2555 = vmatmul.mubr.bf16.gmra.mrb[0].mxu0 %v2374
      %v2556 = vpop.f32.mrb[0].mxu0
      %v2557 = vadd.f32 %v2460, %v2556
      %v2558 = vpop.f32.mrb[0].mxu0
      %v2559 = vpop.f32.mrb[0].mxu0
      %v2560 = vadd.f32 %v2460, %v2559
      %v2561 = vpop.f32.mrb[0].mxu0
      %2562 = vdwg.mxu0
      %v2563 = vtanh.pop %v2411
      %v2564 = vtanh.pop %v2414
      %v2565 = vtanh.pop %v2419
      %v2566 = vtanh.pop %v2422
      %v2567 = vtanh.pop %v2427
      %v2568 = vtanh.pop %v2430
      %v2569 = vtanh.pop %v2435
      %v2570 = vtanh.pop %v2438
      %v2571 = vxor.u32 %v2533, 2147483648
      %v2572 = vxor.u32 %v2536, 2147483648
      %v2573 = vxor.u32 %v2541, 2147483648
      %v2574 = vxor.u32 %v2544, 2147483648
      %v2575 = vxor.u32 %v2549, 2147483648
      %v2576 = vxor.u32 %v2552, 2147483648
      %v2577 = vxor.u32 %v2557, 2147483648
      %v2578 = vxor.u32 %v2560, 2147483648
      %v2579 = vmul.f32 %v2571, 1.442695
      %v2580 = vpow.pop %v2579
      %v2581 = vmul.f32 %v2572, 1.442695
      %v2582 = vpow.pop %v2581
      %v2583 = vmul.f32 %v2573, 1.442695
      %v2584 = vpow.pop %v2583
      %v2585 = vmul.f32 %v2574, 1.442695
      %v2586 = vpow.pop %v2585
      %v2587 = vmul.f32 %v2575, 1.442695
      %v2588 = vpow.pop %v2587
      %v2589 = vmul.f32 %v2576, 1.442695
      %v2590 = vpow.pop %v2589
      %v2591 = vmul.f32 %v2577, 1.442695
      %v2592 = vpow.pop %v2591
      %v2593 = vmul.f32 %v2578, 1.442695
      %v2594 = vpow.pop %v2593
      %v2595 = vadd.f32 %v2580, 1.0
      %v2596 = vadd.f32 %v2582, 1.0
      %v2597 = vadd.f32 %v2584, 1.0
      %v2598 = vadd.f32 %v2586, 1.0
      %v2599 = vadd.f32 %v2588, 1.0
      %v2600 = vadd.f32 %v2590, 1.0
      %v2601 = vadd.f32 %v2592, 1.0
      %v2602 = vadd.f32 %v2594, 1.0
      %v2603 = vrcp.pop %v2595
      %v2604 = vmul.f32 1.0, %v2603
      %v2605 = vrcp.pop %v2596
      %v2606 = vmul.f32 1.0, %v2605
      %v2607 = vrcp.pop %v2597
      %v2608 = vmul.f32 1.0, %v2607
      %v2609 = vrcp.pop %v2598
      %v2610 = vmul.f32 1.0, %v2609
      %v2611 = vrcp.pop %v2599
      %v2612 = vmul.f32 1.0, %v2611
      %v2613 = vrcp.pop %v2600
      %v2614 = vmul.f32 1.0, %v2613
      %v2615 = vrcp.pop %v2601
      %v2616 = vmul.f32 1.0, %v2615
      %v2617 = vrcp.pop %v2602
      %v2618 = vmul.f32 1.0, %v2617
      %v2619 = vmul.f32 %v2563, %v2604
      %v2620 = vmul.f32 %v2564, %v2606
      %v2621 = vmul.f32 %v2565, %v2608
      %v2622 = vmul.f32 %v2566, %v2610
      %v2623 = vmul.f32 %v2567, %v2612
      %v2624 = vmul.f32 %v2568, %v2614
      %v2625 = vmul.f32 %v2569, %v2616
      %v2626 = vmul.f32 %v2570, %v2618
      %v2627 = vpack.c.bf16 %v2620, %v2619
      %v2628 = vpack.c.bf16 %v2622, %v2621
      %v2629 = vpack.c.bf16 %v2624, %v2623
      %v2630 = vpack.c.bf16 %v2626, %v2625
      %s2631 = scalar_lea.vmem %s11, 32
      %v2632 = vld [vmem:[%s2631] sm:$0xf]
      %v2633 = vld [vmem:[%s2631 + $0x4] sm:$0xf]
      %v2634 = vld [vmem:[%s2631 + $0x8] sm:$0xf]
      %v2635 = vld [vmem:[%s2631 + $0xc] sm:$0xf]
      %s2636 = scalar_lea.vmem %s12, 2
      %v2637 = vld [vmem:[%s2636] sm:$0x1]
      %v2639 = vlaneseq
      %v2640 = vshrl.u32 %v2639, 7
      %v2641 = vsub.s32 0, %v2640
      %v2642 = vrot.slane %v2637, %v2641
      %v2648 = vunpack.c.l.b16 %v2632
      %v2649 = vunpack.c.l.b16 %v2633
      %v2650 = vunpack.c.l.b16 %v2634
      %v2651 = vunpack.c.l.b16 %v2635
      %v2652 = vpack.c.b16 %v2649, %v2648
      %v2653 = vpack.c.b16 %v2651, %v2650
      %v2657 = vsel %vm873, %v2627, 0
      %v2660 = vsel %vm873, %v2628, 0
      %v2663 = vsel %vm873, %v2629, 0
      %v2666 = vsel %vm873, %v2630, 0
      %2668 = vmatprep.subr.bf16.mxu0 0
      %2669 = vmatpush1.bf16.msra.mxu0 %v2652
      %2670 = vmatprep.subr.bf16.mxu0 0
      %2671 = vmatpush1.bf16.msra.mxu0 %v2653
      %2672 = vmatprep.subr.bf16.mxu0 0
      %2673 = vmatpush1.bf16.msra.mxu0 0
      %2674 = vmatprep.subr.bf16.mxu0 0
      %2675 = vmatpush1.bf16.msra.mxu0 0
      %2676 = vmatprep.subr.bf16.mxu0 0
      %2677 = vmatpush1.bf16.msra.mxu0 0
      %2678 = vmatprep.subr.bf16.mxu0 0
      %2679 = vmatpush1.bf16.msra.mxu0 0
      %2680 = vmatprep.subr.bf16.mxu0 0
      %2681 = vmatpush1.bf16.msra.mxu0 0
      %2682 = vmatprep.subr.bf16.mxu0 0
      %2683 = vmatpush1.bf16.msra.mxu0 0
      %2684 = vmatprep.subr.bf16.mxu0 0
      %2685 = vmatpush1.bf16.msra.mxu0 0
      %2686 = vmatprep.subr.bf16.mxu0 0
      %2687 = vmatpush1.bf16.msra.mxu0 0
      %2688 = vmatprep.subr.bf16.mxu0 0
      %2689 = vmatpush1.bf16.msra.mxu0 0
      %2690 = vmatprep.subr.bf16.mxu0 0
      %2691 = vmatpush1.bf16.msra.mxu0 0
      %2692 = vmatprep.subr.bf16.mxu0 0
      %2693 = vmatpush1.bf16.msra.mxu0 0
      %2694 = vmatprep.subr.bf16.mxu0 0
      %2695 = vmatpush1.bf16.msra.mxu0 0
      %2696 = vmatprep.subr.bf16.mxu0 0
      %2697 = vmatpush1.bf16.msra.mxu0 0
      %2698 = vmatprep.subr.bf16.mxu0 0
      %2699 = vmatpush1.bf16.msra.mxu0 0
      %2700 = vmatprep.mubr.bf16.mxu0 0
      %2701 = vmatmul.mubr.bf16.gmra.mrb[0].mxu0 %v2657
      %v2702 = vpop.f32.mrb[0].mxu0
      %v2703 = vadd.f32 %v2642, %v2702
      %v2704 = vpop.f32.mrb[0].mxu0
      %v2705 = vpop.f32.mrb[0].mxu0
      %v2706 = vadd.f32 %v2642, %v2705
      %v2707 = vpop.f32.mrb[0].mxu0
      %2708 = vmatprep.mubr.bf16.mxu0 0
      %2709 = vmatmul.mubr.bf16.gmra.mrb[0].mxu0 %v2660
      %v2710 = vpop.f32.mrb[0].mxu0
      %v2711 = vadd.f32 %v2642, %v2710
      %v2712 = vpop.f32.mrb[0].mxu0
      %v2713 = vpop.f32.mrb[0].mxu0
      %v2714 = vadd.f32 %v2642, %v2713
      %v2715 = vpop.f32.mrb[0].mxu0
      %2716 = vmatprep.mubr.bf16.mxu0 0
      %2717 = vmatmul.mubr.bf16.gmra.mrb[0].mxu0 %v2663
      %v2718 = vpop.f32.mrb[0].mxu0
      %v2719 = vadd.f32 %v2642, %v2718
      %v2720 = vpop.f32.mrb[0].mxu0
      %v2721 = vpop.f32.mrb[0].mxu0
      %v2722 = vadd.f32 %v2642, %v2721
      %v2723 = vpop.f32.mrb[0].mxu0
      %2724 = vmatprep.mubr.bf16.mxu0 0
      %2725 = vmatmul.mubr.bf16.gmra.mrb[0].mxu0 %v2666
      %v2726 = vpop.f32.mrb[0].mxu0
      %v2727 = vadd.f32 %v2642, %v2726
      %v2728 = vpop.f32.mrb[0].mxu0
      %v2729 = vpop.f32.mrb[0].mxu0
      %v2730 = vadd.f32 %v2642, %v2729
      %v2731 = vpop.f32.mrb[0].mxu0
      %2732 = vdwg.mxu0
      %v2733 = vadd.f32 %v2028, %v2703
      %v2734 = vadd.f32 %v2029, %v2706
      %v2735 = vadd.f32 %v2030, %v2711
      %v2736 = vadd.f32 %v2031, %v2714
      %v2737 = vadd.f32 %v2032, %v2719
      %v2738 = vadd.f32 %v2033, %v2722
      %v2739 = vadd.f32 %v2034, %v2727
      %v2740 = vadd.f32 %v2035, %v2730
      %s2741 = scalar_lea.vmem %s9, 32
      %v2742 = vld [vmem:[%s2741] sm:$0xf]
      %v2743 = vld [vmem:[%s2741 + $0x4] sm:$0xf]
      %v2744 = vld [vmem:[%s2741 + $0x8] sm:$0xf]
      %v2745 = vld [vmem:[%s2741 + $0xc] sm:$0xf]
      %s2746 = scalar_lea.vmem %s10, 2
      %v2747 = vld [vmem:[%s2746] sm:$0x1]
      %v2749 = vlaneseq
      %v2750 = vshrl.u32 %v2749, 7
      %v2751 = vsub.s32 0, %v2750
      %v2752 = vrot.slane %v2747, %v2751
      %v2758 = vunpack.c.l.b16 %v2742
      %v2759 = vunpack.c.l.b16 %v2743
      %v2760 = vunpack.c.l.b16 %v2744
      %v2761 = vunpack.c.l.b16 %v2745
      %v2762 = vpack.c.b16 %v2759, %v2758
      %v2763 = vpack.c.b16 %v2761, %v2760
      %2766 = vmatprep.subr.bf16.mxu0 0
      %2767 = vmatpush1.bf16.msra.mxu0 %v2762
      %2768 = vmatprep.subr.bf16.mxu0 0
      %2769 = vmatpush1.bf16.msra.mxu0 %v2763
      %2770 = vmatprep.subr.bf16.mxu0 0
      %2771 = vmatpush1.bf16.msra.mxu0 0
      %2772 = vmatprep.subr.bf16.mxu0 0
      %2773 = vmatpush1.bf16.msra.mxu0 0
      %2774 = vmatprep.subr.bf16.mxu0 0
      %2775 = vmatpush1.bf16.msra.mxu0 0
      %2776 = vmatprep.subr.bf16.mxu0 0
      %2777 = vmatpush1.bf16.msra.mxu0 0
      %2778 = vmatprep.subr.bf16.mxu0 0
      %2779 = vmatpush1.bf16.msra.mxu0 0
      %2780 = vmatprep.subr.bf16.mxu0 0
      %2781 = vmatpush1.bf16.msra.mxu0 0
      %2782 = vmatprep.subr.bf16.mxu0 0
      %2783 = vmatpush1.bf16.msra.mxu0 0
      %2784 = vmatprep.subr.bf16.mxu0 0
      %2785 = vmatpush1.bf16.msra.mxu0 0
      %2786 = vmatprep.subr.bf16.mxu0 0
      %2787 = vmatpush1.bf16.msra.mxu0 0
      %2788 = vmatprep.subr.bf16.mxu0 0
      %2789 = vmatpush1.bf16.msra.mxu0 0
      %2790 = vmatprep.subr.bf16.mxu0 0
      %2791 = vmatpush1.bf16.msra.mxu0 0
      %2792 = vmatprep.subr.bf16.mxu0 0
      %2793 = vmatpush1.bf16.msra.mxu0 0
      %2794 = vmatprep.subr.bf16.mxu0 0
      %2795 = vmatpush1.bf16.msra.mxu0 0
      %2796 = vmatprep.subr.bf16.mxu0 0
      %2797 = vmatpush1.bf16.msra.mxu0 0
      %2798 = vmatprep.mubr.bf16.mxu0 0
      %2799 = vmatmul.mubr.bf16.gmra.mrb[0].mxu0 %v2657
      %v2800 = vpop.f32.mrb[0].mxu0
      %v2801 = vadd.f32 %v2752, %v2800
      %v2802 = vpop.f32.mrb[0].mxu0
      %v2803 = vpop.f32.mrb[0].mxu0
      %v2804 = vadd.f32 %v2752, %v2803
      %v2805 = vpop.f32.mrb[0].mxu0
      %2806 = vmatprep.mubr.bf16.mxu0 0
      %2807 = vmatmul.mubr.bf16.gmra.mrb[0].mxu0 %v2660
      %v2808 = vpop.f32.mrb[0].mxu0
      %v2809 = vadd.f32 %v2752, %v2808
      %v2810 = vpop.f32.mrb[0].mxu0
      %v2811 = vpop.f32.mrb[0].mxu0
      %v2812 = vadd.f32 %v2752, %v2811
      %v2813 = vpop.f32.mrb[0].mxu0
      %2814 = vmatprep.mubr.bf16.mxu0 0
      %2815 = vmatmul.mubr.bf16.gmra.mrb[0].mxu0 %v2663
      %v2816 = vpop.f32.mrb[0].mxu0
      %v2817 = vadd.f32 %v2752, %v2816
      %v2818 = vpop.f32.mrb[0].mxu0
      %v2819 = vpop.f32.mrb[0].mxu0
      %v2820 = vadd.f32 %v2752, %v2819
      %v2821 = vpop.f32.mrb[0].mxu0
      %2822 = vmatprep.mubr.bf16.mxu0 0
      %2823 = vmatmul.mubr.bf16.gmra.mrb[0].mxu0 %v2666
      %v2824 = vpop.f32.mrb[0].mxu0
      %v2825 = vadd.f32 %v2752, %v2824
      %v2826 = vpop.f32.mrb[0].mxu0
      %v2827 = vpop.f32.mrb[0].mxu0
      %v2828 = vadd.f32 %v2752, %v2827
      %v2829 = vpop.f32.mrb[0].mxu0
      %2830 = vdwg.mxu0
      %v2831 = vadd.f32 %v2134, %v2801
      %v2832 = vadd.f32 %v2135, %v2804
      %v2833 = vadd.f32 %v2136, %v2809
      %v2834 = vadd.f32 %v2137, %v2812
      %v2835 = vadd.f32 %v2138, %v2817
      %v2836 = vadd.f32 %v2139, %v2820
      %v2837 = vadd.f32 %v2140, %v2825
      %v2838 = vadd.f32 %v2141, %v2828
      %v2839 = vmul.f32 %v2831, %v577
      %v2840 = vmul.f32 %v2832, %v578
      %v2841 = vmul.f32 %v2833, %v579
      %v2842 = vmul.f32 %v2834, %v580
      %v2843 = vmul.f32 %v2835, %v581
      %v2844 = vmul.f32 %v2836, %v582
      %v2845 = vmul.f32 %v2837, %v583
      %v2846 = vmul.f32 %v2838, %v584
      %vm2847 = vcmp.ge.s32.totalorder %v552, 8
      %vm2848 = vcmp.ge.s32.totalorder %v553, 8
      %vm2849 = vcmp.ge.s32.totalorder %v554, 8
      %vm2850 = vcmp.ge.s32.totalorder %v555, 8
      %vm2851 = vcmp.ge.s32.totalorder %v556, 8
      %vm2852 = vcmp.ge.s32.totalorder %v557, 8
      %vm2853 = vcmp.ge.s32.totalorder %v558, 8
      %vm2854 = vcmp.ge.s32.totalorder %v559, 8
      %v2855 = vsel %vm2847, 1, 0
      %v2856 = vsel %vm2848, 1, 0
      %v2857 = vsel %vm2849, 1, 0
      %v2858 = vsel %vm2850, 1, 0
      %v2859 = vsel %vm2851, 1, 0
      %v2860 = vsel %vm2852, 1, 0
      %v2861 = vsel %vm2853, 1, 0
      %v2862 = vsel %vm2854, 1, 0
      %vm2863 = vcmp.eq.s32.totalorder %v2855, 1
      %vm2864 = vcmp.eq.s32.totalorder %v2856, 1
      %vm2865 = vcmp.eq.s32.totalorder %v2857, 1
      %vm2866 = vcmp.eq.s32.totalorder %v2858, 1
      %vm2867 = vcmp.eq.s32.totalorder %v2859, 1
      %vm2868 = vcmp.eq.s32.totalorder %v2860, 1
      %vm2869 = vcmp.eq.s32.totalorder %v2861, 1
      %vm2870 = vcmp.eq.s32.totalorder %v2862, 1
      %v2871 = vsel %vm2863, %v2846, 0.0
      %v2872 = vsel %vm2864, %v2839, 0.0
      %v2873 = vsel %vm2865, %v2840, 0.0
      %v2874 = vsel %vm2866, %v2841, 0.0
      %v2875 = vsel %vm2867, %v2842, 0.0
      %v2876 = vsel %vm2868, %v2843, 0.0
      %v2877 = vsel %vm2869, %v2844, 0.0
      %v2878 = vsel %vm2870, %v2845, 0.0
      %vm2879 = vcmp.lt.s32.totalorder %v552, 56
      %vm2880 = vcmp.lt.s32.totalorder %v553, 56
      %vm2881 = vcmp.lt.s32.totalorder %v554, 56
      %vm2882 = vcmp.lt.s32.totalorder %v555, 56
      %vm2883 = vcmp.lt.s32.totalorder %v556, 56
      %vm2884 = vcmp.lt.s32.totalorder %v557, 56
      %vm2885 = vcmp.lt.s32.totalorder %v558, 56
      %vm2886 = vcmp.lt.s32.totalorder %v559, 56
      %v2887 = vsel %vm2879, 1, 0
      %v2888 = vsel %vm2880, 1, 0
      %v2889 = vsel %vm2881, 1, 0
      %v2890 = vsel %vm2882, 1, 0
      %v2891 = vsel %vm2883, 1, 0
      %v2892 = vsel %vm2884, 1, 0
      %v2893 = vsel %vm2885, 1, 0
      %v2894 = vsel %vm2886, 1, 0
      %vm2895 = vcmp.eq.s32.totalorder %v2887, 1
      %vm2896 = vcmp.eq.s32.totalorder %v2888, 1
      %vm2897 = vcmp.eq.s32.totalorder %v2889, 1
      %vm2898 = vcmp.eq.s32.totalorder %v2890, 1
      %vm2899 = vcmp.eq.s32.totalorder %v2891, 1
      %vm2900 = vcmp.eq.s32.totalorder %v2892, 1
      %vm2901 = vcmp.eq.s32.totalorder %v2893, 1
      %vm2902 = vcmp.eq.s32.totalorder %v2894, 1
      %v2903 = vsel %vm2895, %v2840, 0.0
      %v2904 = vsel %vm2896, %v2841, 0.0
      %v2905 = vsel %vm2897, %v2842, 0.0
      %v2906 = vsel %vm2898, %v2843, 0.0
      %v2907 = vsel %vm2899, %v2844, 0.0
      %v2908 = vsel %vm2900, %v2845, 0.0
      %v2909 = vsel %vm2901, %v2846, 0.0
      %v2910 = vsel %vm2902, %v2839, 0.0
      %2919 = vrot.lane.b32.xlu0 %v2839, 32
      %v2920 = vpop.permute.xlu0 %2919
      %2921 = vrot.lane.b32.xlu0 %v2840, 32
      %v2922 = vpop.permute.xlu0 %2921
      %2923 = vrot.lane.b32.xlu0 %v2841, 32
      %v2924 = vpop.permute.xlu0 %2923
      %2925 = vrot.lane.b32.xlu0 %v2842, 32
      %v2926 = vpop.permute.xlu0 %2925
      %2927 = vrot.lane.b32.xlu0 %v2843, 32
      %v2928 = vpop.permute.xlu0 %2927
      %2929 = vrot.lane.b32.xlu0 %v2844, 32
      %v2930 = vpop.permute.xlu0 %2929
      %2931 = vrot.lane.b32.xlu0 %v2845, 32
      %v2932 = vpop.permute.xlu0 %2931
      %2933 = vrot.lane.b32.xlu0 %v2846, 32
      %v2934 = vpop.permute.xlu0 %2933
      %2951 = vrot.lane.b32.xlu0 %v2903, 64
      %v2952 = vpop.permute.xlu0 %2951
      %2953 = vrot.lane.b32.xlu0 %v2904, 64
      %v2954 = vpop.permute.xlu0 %2953
      %2955 = vrot.lane.b32.xlu0 %v2905, 64
      %v2956 = vpop.permute.xlu0 %2955
      %2957 = vrot.lane.b32.xlu0 %v2906, 64
      %v2958 = vpop.permute.xlu0 %2957
      %2959 = vrot.lane.b32.xlu0 %v2907, 64
      %v2960 = vpop.permute.xlu0 %2959
      %2961 = vrot.lane.b32.xlu0 %v2908, 64
      %v2962 = vpop.permute.xlu0 %2961
      %2963 = vrot.lane.b32.xlu0 %v2909, 64
      %v2964 = vpop.permute.xlu0 %2963
      %2965 = vrot.lane.b32.xlu0 %v2910, 64
      %v2966 = vpop.permute.xlu0 %2965
      %v2975 = vsel %vm873, %v2871, %v2920
      %v2976 = vsel %vm873, %v2872, %v2922
      %v2977 = vsel %vm873, %v2873, %v2924
      %v2978 = vsel %vm873, %v2874, %v2926
      %v2979 = vsel %vm873, %v2875, %v2928
      %v2980 = vsel %vm873, %v2876, %v2930
      %v2981 = vsel %vm873, %v2877, %v2932
      %v2982 = vsel %vm873, %v2878, %v2934
      %v2983 = vsel %vm882, %v2975, %v2952
      %v2984 = vsel %vm882, %v2976, %v2954
      %v2985 = vsel %vm882, %v2977, %v2956
      %v2986 = vsel %vm882, %v2978, %v2958
      %v2987 = vsel %vm882, %v2979, %v2960
      %v2988 = vsel %vm882, %v2980, %v2962
      %v2989 = vsel %vm882, %v2981, %v2964
      %v2990 = vsel %vm882, %v2982, %v2966
      %v2991 = vpack.c.bf16 %v2984, %v2983
      %v2992 = vpack.c.bf16 %v2986, %v2985
      %v2993 = vpack.c.bf16 %v2988, %v2987
      %v2994 = vpack.c.bf16 %v2990, %v2989
      %s2995 = scalar_lea.vmem %s5, 144
      %v2996 = vld [vmem:[%s2995] sm:$0xf]
      %v2997 = vld [vmem:[%s2995 + $0x4] sm:$0xf]
      %v2998 = vld [vmem:[%s2995 + $0x8] sm:$0xf]
      %v2999 = vld [vmem:[%s2995 + $0xc] sm:$0xf]
      %v3000 = vld [vmem:[%s2995 + $0x10] sm:$0xf]
      %v3001 = vld [vmem:[%s2995 + $0x14] sm:$0xf]
      %v3002 = vld [vmem:[%s2995 + $0x18] sm:$0xf]
      %v3003 = vld [vmem:[%s2995 + $0x1c] sm:$0xf]
      %v3004 = vld [vmem:[%s2995 + $0x20] sm:$0xf]
      %v3005 = vld [vmem:[%s2995 + $0x24] sm:$0xf]
      %v3006 = vld [vmem:[%s2995 + $0x28] sm:$0xf]
      %v3007 = vld [vmem:[%s2995 + $0x2c] sm:$0xf]
      %s3008 = scalar_lea.vmem %s6, 3
      %v3009 = vld [vmem:[%s3008] sm:$0x1]
      %v3011 = vlaneseq
      %v3012 = vshrl.u32 %v3011, 7
      %v3013 = vsub.s32 0, %v3012
      %v3014 = vrot.slane %v3009, %v3013
      %v3028 = vunpack.c.l.b16 %v2996
      %v3029 = vunpack.c.l.b16 %v2997
      %v3030 = vunpack.c.l.b16 %v2998
      %v3031 = vunpack.c.l.b16 %v2999
      %v3032 = vunpack.c.l.b16 %v3000
      %v3033 = vunpack.c.l.b16 %v3001
      %v3034 = vunpack.c.l.b16 %v3002
      %v3035 = vunpack.c.l.b16 %v3003
      %v3036 = vunpack.c.l.b16 %v3004
      %v3037 = vunpack.c.l.b16 %v3005
      %v3038 = vunpack.c.l.b16 %v3006
      %v3039 = vunpack.c.l.b16 %v3007
      %v3040 = vpack.c.b16 %v3029, %v3028
      %v3041 = vpack.c.b16 %v3031, %v3030
      %v3042 = vpack.c.b16 %v3033, %v3032
      %v3043 = vpack.c.b16 %v3035, %v3034
      %v3044 = vpack.c.b16 %v3037, %v3036
      %v3045 = vpack.c.b16 %v3039, %v3038
      %v3053 = vsel %vm950, %v2991, 0
      %v3056 = vsel %vm950, %v2992, 0
      %v3059 = vsel %vm950, %v2993, 0
      %v3062 = vsel %vm950, %v2994, 0
      %3064 = vmatprep.subr.bf16.mxu0 0
      %3065 = vmatpush1.bf16.msra.mxu0 %v3040
      %3066 = vmatprep.subr.bf16.mxu0 0
      %3067 = vmatpush1.bf16.msra.mxu0 %v3041
      %3068 = vmatprep.subr.bf16.mxu0 0
      %3069 = vmatpush1.bf16.msra.mxu0 %v3042
      %3070 = vmatprep.subr.bf16.mxu0 0
      %3071 = vmatpush1.bf16.msra.mxu0 %v3043
      %3072 = vmatprep.subr.bf16.mxu0 0
      %3073 = vmatpush1.bf16.msra.mxu0 %v3044
      %3074 = vmatprep.subr.bf16.mxu0 0
      %3075 = vmatpush1.bf16.msra.mxu0 %v3045
      %3076 = vmatprep.subr.bf16.mxu0 0
      %3077 = vmatpush1.bf16.msra.mxu0 0
      %3078 = vmatprep.subr.bf16.mxu0 0
      %3079 = vmatpush1.bf16.msra.mxu0 0
      %3080 = vmatprep.subr.bf16.mxu0 0
      %3081 = vmatpush1.bf16.msra.mxu0 0
      %3082 = vmatprep.subr.bf16.mxu0 0
      %3083 = vmatpush1.bf16.msra.mxu0 0
      %3084 = vmatprep.subr.bf16.mxu0 0
      %3085 = vmatpush1.bf16.msra.mxu0 0
      %3086 = vmatprep.subr.bf16.mxu0 0
      %3087 = vmatpush1.bf16.msra.mxu0 0
      %3088 = vmatprep.subr.bf16.mxu0 0
      %3089 = vmatpush1.bf16.msra.mxu0 0
      %3090 = vmatprep.subr.bf16.mxu0 0
      %3091 = vmatpush1.bf16.msra.mxu0 0
      %3092 = vmatprep.subr.bf16.mxu0 0
      %3093 = vmatpush1.bf16.msra.mxu0 0
      %3094 = vmatprep.subr.bf16.mxu0 0
      %3095 = vmatpush1.bf16.msra.mxu0 0
      %3096 = vmatprep.mubr.bf16.mxu0 0
      %3097 = vmatmul.mubr.bf16.gmra.mrb[0].mxu0 %v3053
      %v3098 = vpop.f32.mrb[0].mxu0
      %v3099 = vadd.f32 %v3014, %v3098
      %v3100 = vpop.f32.mrb[0].mxu0
      %v3101 = vpop.f32.mrb[0].mxu0
      %v3102 = vadd.f32 %v3014, %v3101
      %v3103 = vpop.f32.mrb[0].mxu0
      %3104 = vmatprep.mubr.bf16.mxu0 0
      %3105 = vmatmul.mubr.bf16.gmra.mrb[0].mxu0 %v3056
      %v3106 = vpop.f32.mrb[0].mxu0
      %v3107 = vadd.f32 %v3014, %v3106
      %v3108 = vpop.f32.mrb[0].mxu0
      %v3109 = vpop.f32.mrb[0].mxu0
      %v3110 = vadd.f32 %v3014, %v3109
      %v3111 = vpop.f32.mrb[0].mxu0
      %3112 = vmatprep.mubr.bf16.mxu0 0
      %3113 = vmatmul.mubr.bf16.gmra.mrb[0].mxu0 %v3059
      %v3114 = vpop.f32.mrb[0].mxu0
      %v3115 = vadd.f32 %v3014, %v3114
      %v3116 = vpop.f32.mrb[0].mxu0
      %v3117 = vpop.f32.mrb[0].mxu0
      %v3118 = vadd.f32 %v3014, %v3117
      %v3119 = vpop.f32.mrb[0].mxu0
      %3120 = vmatprep.mubr.bf16.mxu0 0
      %3121 = vmatmul.mubr.bf16.gmra.mrb[0].mxu0 %v3062
      %v3122 = vpop.f32.mrb[0].mxu0
      %v3123 = vadd.f32 %v3014, %v3122
      %v3124 = vpop.f32.mrb[0].mxu0
      %v3125 = vpop.f32.mrb[0].mxu0
      %v3126 = vadd.f32 %v3014, %v3125
      %v3127 = vpop.f32.mrb[0].mxu0
      %3128 = vdwg.mxu0
      %s3129 = scalar_lea.vmem %s7, 144
      %v3130 = vld [vmem:[%s3129] sm:$0xf]
      %v3131 = vld [vmem:[%s3129 + $0x4] sm:$0xf]
      %v3132 = vld [vmem:[%s3129 + $0x8] sm:$0xf]
      %v3133 = vld [vmem:[%s3129 + $0xc] sm:$0xf]
      %v3134 = vld [vmem:[%s3129 + $0x10] sm:$0xf]
      %v3135 = vld [vmem:[%s3129 + $0x14] sm:$0xf]
      %v3136 = vld [vmem:[%s3129 + $0x18] sm:$0xf]
      %v3137 = vld [vmem:[%s3129 + $0x1c] sm:$0xf]
      %v3138 = vld [vmem:[%s3129 + $0x20] sm:$0xf]
      %v3139 = vld [vmem:[%s3129 + $0x24] sm:$0xf]
      %v3140 = vld [vmem:[%s3129 + $0x28] sm:$0xf]
      %v3141 = vld [vmem:[%s3129 + $0x2c] sm:$0xf]
      %s3142 = scalar_lea.vmem %s8, 3
      %v3143 = vld [vmem:[%s3142] sm:$0x1]
      %v3145 = vlaneseq
      %v3146 = vshrl.u32 %v3145, 7
      %v3147 = vsub.s32 0, %v3146
      %v3148 = vrot.slane %v3143, %v3147
      %v3162 = vunpack.c.l.b16 %v3130
      %v3163 = vunpack.c.l.b16 %v3131
      %v3164 = vunpack.c.l.b16 %v3132
      %v3165 = vunpack.c.l.b16 %v3133
      %v3166 = vunpack.c.l.b16 %v3134
      %v3167 = vunpack.c.l.b16 %v3135
      %v3168 = vunpack.c.l.b16 %v3136
      %v3169 = vunpack.c.l.b16 %v3137
      %v3170 = vunpack.c.l.b16 %v3138
      %v3171 = vunpack.c.l.b16 %v3139
      %v3172 = vunpack.c.l.b16 %v3140
      %v3173 = vunpack.c.l.b16 %v3141
      %v3174 = vpack.c.b16 %v3163, %v3162
      %v3175 = vpack.c.b16 %v3165, %v3164
      %v3176 = vpack.c.b16 %v3167, %v3166
      %v3177 = vpack.c.b16 %v3169, %v3168
      %v3178 = vpack.c.b16 %v3171, %v3170
      %v3179 = vpack.c.b16 %v3173, %v3172
      %3186 = vmatprep.subr.bf16.mxu0 0
      %3187 = vmatpush1.bf16.msra.mxu0 %v3174
      %3188 = vmatprep.subr.bf16.mxu0 0
      %3189 = vmatpush1.bf16.msra.mxu0 %v3175
      %3190 = vmatprep.subr.bf16.mxu0 0
      %3191 = vmatpush1.bf16.msra.mxu0 %v3176
      %3192 = vmatprep.subr.bf16.mxu0 0
      %3193 = vmatpush1.bf16.msra.mxu0 %v3177
      %3194 = vmatprep.subr.bf16.mxu0 0
      %3195 = vmatpush1.bf16.msra.mxu0 %v3178
      %3196 = vmatprep.subr.bf16.mxu0 0
      %3197 = vmatpush1.bf16.msra.mxu0 %v3179
      %3198 = vmatprep.subr.bf16.mxu0 0
      %3199 = vmatpush1.bf16.msra.mxu0 0
      %3200 = vmatprep.subr.bf16.mxu0 0
      %3201 = vmatpush1.bf16.msra.mxu0 0
      %3202 = vmatprep.subr.bf16.mxu0 0
      %3203 = vmatpush1.bf16.msra.mxu0 0
      %3204 = vmatprep.subr.bf16.mxu0 0
      %3205 = vmatpush1.bf16.msra.mxu0 0
      %3206 = vmatprep.subr.bf16.mxu0 0
      %3207 = vmatpush1.bf16.msra.mxu0 0
      %3208 = vmatprep.subr.bf16.mxu0 0
      %3209 = vmatpush1.bf16.msra.mxu0 0
      %3210 = vmatprep.subr.bf16.mxu0 0
      %3211 = vmatpush1.bf16.msra.mxu0 0
      %3212 = vmatprep.subr.bf16.mxu0 0
      %3213 = vmatpush1.bf16.msra.mxu0 0
      %3214 = vmatprep.subr.bf16.mxu0 0
      %3215 = vmatpush1.bf16.msra.mxu0 0
      %3216 = vmatprep.subr.bf16.mxu0 0
      %3217 = vmatpush1.bf16.msra.mxu0 0
      %3218 = vmatprep.mubr.bf16.mxu0 0
      %3219 = vmatmul.mubr.bf16.gmra.mrb[0].mxu0 %v3053
      %v3220 = vpop.f32.mrb[0].mxu0
      %v3221 = vadd.f32 %v3148, %v3220
      %v3222 = vpop.f32.mrb[0].mxu0
      %v3223 = vpop.f32.mrb[0].mxu0
      %v3224 = vadd.f32 %v3148, %v3223
      %v3225 = vpop.f32.mrb[0].mxu0
      %3226 = vmatprep.mubr.bf16.mxu0 0
      %3227 = vmatmul.mubr.bf16.gmra.mrb[0].mxu0 %v3056
      %v3228 = vpop.f32.mrb[0].mxu0
      %v3229 = vadd.f32 %v3148, %v3228
      %v3230 = vpop.f32.mrb[0].mxu0
      %v3231 = vpop.f32.mrb[0].mxu0
      %v3232 = vadd.f32 %v3148, %v3231
      %v3233 = vpop.f32.mrb[0].mxu0
      %3234 = vmatprep.mubr.bf16.mxu0 0
      %3235 = vmatmul.mubr.bf16.gmra.mrb[0].mxu0 %v3059
      %v3236 = vpop.f32.mrb[0].mxu0
      %v3237 = vadd.f32 %v3148, %v3236
      %v3238 = vpop.f32.mrb[0].mxu0
      %v3239 = vpop.f32.mrb[0].mxu0
      %v3240 = vadd.f32 %v3148, %v3239
      %v3241 = vpop.f32.mrb[0].mxu0
      %3242 = vmatprep.mubr.bf16.mxu0 0
      %3243 = vmatmul.mubr.bf16.gmra.mrb[0].mxu0 %v3062
      %v3244 = vpop.f32.mrb[0].mxu0
      %v3245 = vadd.f32 %v3148, %v3244
      %v3246 = vpop.f32.mrb[0].mxu0
      %v3247 = vpop.f32.mrb[0].mxu0
      %v3248 = vadd.f32 %v3148, %v3247
      %v3249 = vpop.f32.mrb[0].mxu0
      %3250 = vdwg.mxu0
      %v3251 = vtanh.pop %v3099
      %v3252 = vtanh.pop %v3102
      %v3253 = vtanh.pop %v3107
      %v3254 = vtanh.pop %v3110
      %v3255 = vtanh.pop %v3115
      %v3256 = vtanh.pop %v3118
      %v3257 = vtanh.pop %v3123
      %v3258 = vtanh.pop %v3126
      %v3259 = vxor.u32 %v3221, 2147483648
      %v3260 = vxor.u32 %v3224, 2147483648
      %v3261 = vxor.u32 %v3229, 2147483648
      %v3262 = vxor.u32 %v3232, 2147483648
      %v3263 = vxor.u32 %v3237, 2147483648
      %v3264 = vxor.u32 %v3240, 2147483648
      %v3265 = vxor.u32 %v3245, 2147483648
      %v3266 = vxor.u32 %v3248, 2147483648
      %v3267 = vmul.f32 %v3259, 1.442695
      %v3268 = vpow.pop %v3267
      %v3269 = vmul.f32 %v3260, 1.442695
      %v3270 = vpow.pop %v3269
      %v3271 = vmul.f32 %v3261, 1.442695
      %v3272 = vpow.pop %v3271
      %v3273 = vmul.f32 %v3262, 1.442695
      %v3274 = vpow.pop %v3273
      %v3275 = vmul.f32 %v3263, 1.442695
      %v3276 = vpow.pop %v3275
      %v3277 = vmul.f32 %v3264, 1.442695
      %v3278 = vpow.pop %v3277
      %v3279 = vmul.f32 %v3265, 1.442695
      %v3280 = vpow.pop %v3279
      %v3281 = vmul.f32 %v3266, 1.442695
      %v3282 = vpow.pop %v3281
      %v3283 = vadd.f32 %v3268, 1.0
      %v3284 = vadd.f32 %v3270, 1.0
      %v3285 = vadd.f32 %v3272, 1.0
      %v3286 = vadd.f32 %v3274, 1.0
      %v3287 = vadd.f32 %v3276, 1.0
      %v3288 = vadd.f32 %v3278, 1.0
      %v3289 = vadd.f32 %v3280, 1.0
      %v3290 = vadd.f32 %v3282, 1.0
      %v3291 = vrcp.pop %v3283
      %v3292 = vmul.f32 1.0, %v3291
      %v3293 = vrcp.pop %v3284
      %v3294 = vmul.f32 1.0, %v3293
      %v3295 = vrcp.pop %v3285
      %v3296 = vmul.f32 1.0, %v3295
      %v3297 = vrcp.pop %v3286
      %v3298 = vmul.f32 1.0, %v3297
      %v3299 = vrcp.pop %v3287
      %v3300 = vmul.f32 1.0, %v3299
      %v3301 = vrcp.pop %v3288
      %v3302 = vmul.f32 1.0, %v3301
      %v3303 = vrcp.pop %v3289
      %v3304 = vmul.f32 1.0, %v3303
      %v3305 = vrcp.pop %v3290
      %v3306 = vmul.f32 1.0, %v3305
      %v3307 = vmul.f32 %v3251, %v3292
      %v3308 = vmul.f32 %v3252, %v3294
      %v3309 = vmul.f32 %v3253, %v3296
      %v3310 = vmul.f32 %v3254, %v3298
      %v3311 = vmul.f32 %v3255, %v3300
      %v3312 = vmul.f32 %v3256, %v3302
      %v3313 = vmul.f32 %v3257, %v3304
      %v3314 = vmul.f32 %v3258, %v3306
      %v3315 = vpack.c.bf16 %v3308, %v3307
      %v3316 = vpack.c.bf16 %v3310, %v3309
      %v3317 = vpack.c.bf16 %v3312, %v3311
      %v3318 = vpack.c.bf16 %v3314, %v3313
      %s3319 = scalar_lea.vmem %s11, 48
      %v3320 = vld [vmem:[%s3319] sm:$0xf]
      %v3321 = vld [vmem:[%s3319 + $0x4] sm:$0xf]
      %v3322 = vld [vmem:[%s3319 + $0x8] sm:$0xf]
      %v3323 = vld [vmem:[%s3319 + $0xc] sm:$0xf]
      %s3324 = scalar_lea.vmem %s12, 3
      %v3325 = vld [vmem:[%s3324] sm:$0x1]
      %v3327 = vlaneseq
      %v3328 = vshrl.u32 %v3327, 7
      %v3329 = vsub.s32 0, %v3328
      %v3330 = vrot.slane %v3325, %v3329
      %v3336 = vunpack.c.l.b16 %v3320
      %v3337 = vunpack.c.l.b16 %v3321
      %v3338 = vunpack.c.l.b16 %v3322
      %v3339 = vunpack.c.l.b16 %v3323
      %v3340 = vpack.c.b16 %v3337, %v3336
      %v3341 = vpack.c.b16 %v3339, %v3338
      %v3345 = vsel %vm873, %v3315, 0
      %v3348 = vsel %vm873, %v3316, 0
      %v3351 = vsel %vm873, %v3317, 0
      %v3354 = vsel %vm873, %v3318, 0
      %3356 = vmatprep.subr.bf16.mxu0 0
      %3357 = vmatpush1.bf16.msra.mxu0 %v3340
      %3358 = vmatprep.subr.bf16.mxu0 0
      %3359 = vmatpush1.bf16.msra.mxu0 %v3341
      %3360 = vmatprep.subr.bf16.mxu0 0
      %3361 = vmatpush1.bf16.msra.mxu0 0
      %3362 = vmatprep.subr.bf16.mxu0 0
      %3363 = vmatpush1.bf16.msra.mxu0 0
      %3364 = vmatprep.subr.bf16.mxu0 0
      %3365 = vmatpush1.bf16.msra.mxu0 0
      %3366 = vmatprep.subr.bf16.mxu0 0
      %3367 = vmatpush1.bf16.msra.mxu0 0
      %3368 = vmatprep.subr.bf16.mxu0 0
      %3369 = vmatpush1.bf16.msra.mxu0 0
      %3370 = vmatprep.subr.bf16.mxu0 0
      %3371 = vmatpush1.bf16.msra.mxu0 0
      %3372 = vmatprep.subr.bf16.mxu0 0
      %3373 = vmatpush1.bf16.msra.mxu0 0
      %3374 = vmatprep.subr.bf16.mxu0 0
      %3375 = vmatpush1.bf16.msra.mxu0 0
      %3376 = vmatprep.subr.bf16.mxu0 0
      %3377 = vmatpush1.bf16.msra.mxu0 0
      %3378 = vmatprep.subr.bf16.mxu0 0
      %3379 = vmatpush1.bf16.msra.mxu0 0
      %3380 = vmatprep.subr.bf16.mxu0 0
      %3381 = vmatpush1.bf16.msra.mxu0 0
      %3382 = vmatprep.subr.bf16.mxu0 0
      %3383 = vmatpush1.bf16.msra.mxu0 0
      %3384 = vmatprep.subr.bf16.mxu0 0
      %3385 = vmatpush1.bf16.msra.mxu0 0
      %3386 = vmatprep.subr.bf16.mxu0 0
      %3387 = vmatpush1.bf16.msra.mxu0 0
      %3388 = vmatprep.mubr.bf16.mxu0 0
      %3389 = vmatmul.mubr.bf16.gmra.mrb[0].mxu0 %v3345
      %v3390 = vpop.f32.mrb[0].mxu0
      %v3391 = vadd.f32 %v3330, %v3390
      %v3392 = vpop.f32.mrb[0].mxu0
      %v3393 = vpop.f32.mrb[0].mxu0
      %v3394 = vadd.f32 %v3330, %v3393
      %v3395 = vpop.f32.mrb[0].mxu0
      %3396 = vmatprep.mubr.bf16.mxu0 0
      %3397 = vmatmul.mubr.bf16.gmra.mrb[0].mxu0 %v3348
      %v3398 = vpop.f32.mrb[0].mxu0
      %v3399 = vadd.f32 %v3330, %v3398
      %v3400 = vpop.f32.mrb[0].mxu0
      %v3401 = vpop.f32.mrb[0].mxu0
      %v3402 = vadd.f32 %v3330, %v3401
      %v3403 = vpop.f32.mrb[0].mxu0
      %3404 = vmatprep.mubr.bf16.mxu0 0
      %3405 = vmatmul.mubr.bf16.gmra.mrb[0].mxu0 %v3351
      %v3406 = vpop.f32.mrb[0].mxu0
      %v3407 = vadd.f32 %v3330, %v3406
      %v3408 = vpop.f32.mrb[0].mxu0
      %v3409 = vpop.f32.mrb[0].mxu0
      %v3410 = vadd.f32 %v3330, %v3409
      %v3411 = vpop.f32.mrb[0].mxu0
      %3412 = vmatprep.mubr.bf16.mxu0 0
      %3413 = vmatmul.mubr.bf16.gmra.mrb[0].mxu0 %v3354
      %v3414 = vpop.f32.mrb[0].mxu0
      %v3415 = vadd.f32 %v3330, %v3414
      %v3416 = vpop.f32.mrb[0].mxu0
      %v3417 = vpop.f32.mrb[0].mxu0
      %v3418 = vadd.f32 %v3330, %v3417
      %v3419 = vpop.f32.mrb[0].mxu0
      %3420 = vdwg.mxu0
      %v3421 = vadd.f32 %v2733, %v3391
      %v3422 = vadd.f32 %v2734, %v3394
      %v3423 = vadd.f32 %v2735, %v3399
      %v3424 = vadd.f32 %v2736, %v3402
      %v3425 = vadd.f32 %v2737, %v3407
      %v3426 = vadd.f32 %v2738, %v3410
      %v3427 = vadd.f32 %v2739, %v3415
      %v3428 = vadd.f32 %v2740, %v3418
      %v3429 = vmul.f32 %v3421, %v577
      %v3430 = vmul.f32 %v3422, %v578
      %v3431 = vmul.f32 %v3423, %v579
      %v3432 = vmul.f32 %v3424, %v580
      %v3433 = vmul.f32 %v3425, %v581
      %v3434 = vmul.f32 %v3426, %v582
      %v3435 = vmul.f32 %v3427, %v583
      %v3436 = vmul.f32 %v3428, %v584
      %v3437 = vpack.c.bf16 %v3430, %v3429
      %v3438 = vpack.c.bf16 %v3432, %v3431
      %v3439 = vpack.c.bf16 %v3434, %v3433
      %v3440 = vpack.c.bf16 %v3436, %v3435
      %v3441 = vld [vmem:[%s13] sm:$0xf]
      %v3442 = vld [vmem:[%s13 + $0x4] sm:$0xf]
      %v3443 = vld [vmem:[%s13 + $0x8] sm:$0xf]
      %v3444 = vld [vmem:[%s13 + $0xc] sm:$0xf]
      %v3445 = vld [vmem:[%s14] sm:$0x1]
      %v3447 = vlaneseq
      %v3448 = vshrl.u32 %v3447, 7
      %v3449 = vsub.s32 0, %v3448
      %v3450 = vrot.slane %v3445, %v3449
      %v3456 = vunpack.c.l.b16 %v3441
      %v3457 = vunpack.c.l.b16 %v3442
      %v3458 = vunpack.c.l.b16 %v3443
      %v3459 = vunpack.c.l.b16 %v3444
      %v3460 = vpack.c.b16 %v3457, %v3456
      %v3461 = vpack.c.b16 %v3459, %v3458
      %v3465 = vsel %vm873, %v3437, 0
      %v3468 = vsel %vm873, %v3438, 0
      %v3471 = vsel %vm873, %v3439, 0
      %v3474 = vsel %vm873, %v3440, 0
      %3476 = vmatprep.subr.bf16.mxu0 0
      %3477 = vmatpush1.bf16.msra.mxu0 %v3460
      %3478 = vmatprep.subr.bf16.mxu0 0
      %3479 = vmatpush1.bf16.msra.mxu0 %v3461
      %3480 = vmatprep.subr.bf16.mxu0 0
      %3481 = vmatpush1.bf16.msra.mxu0 0
      %3482 = vmatprep.subr.bf16.mxu0 0
      %3483 = vmatpush1.bf16.msra.mxu0 0
      %3484 = vmatprep.subr.bf16.mxu0 0
      %3485 = vmatpush1.bf16.msra.mxu0 0
      %3486 = vmatprep.subr.bf16.mxu0 0
      %3487 = vmatpush1.bf16.msra.mxu0 0
      %3488 = vmatprep.subr.bf16.mxu0 0
      %3489 = vmatpush1.bf16.msra.mxu0 0
      %3490 = vmatprep.subr.bf16.mxu0 0
      %3491 = vmatpush1.bf16.msra.mxu0 0
      %3492 = vmatprep.subr.bf16.mxu0 0
      %3493 = vmatpush1.bf16.msra.mxu0 0
      %3494 = vmatprep.subr.bf16.mxu0 0
      %3495 = vmatpush1.bf16.msra.mxu0 0
      %3496 = vmatprep.subr.bf16.mxu0 0
      %3497 = vmatpush1.bf16.msra.mxu0 0
      %3498 = vmatprep.subr.bf16.mxu0 0
      %3499 = vmatpush1.bf16.msra.mxu0 0
      %3500 = vmatprep.subr.bf16.mxu0 0
      %3501 = vmatpush1.bf16.msra.mxu0 0
      %3502 = vmatprep.subr.bf16.mxu0 0
      %3503 = vmatpush1.bf16.msra.mxu0 0
      %3504 = vmatprep.subr.bf16.mxu0 0
      %3505 = vmatpush1.bf16.msra.mxu0 0
      %3506 = vmatprep.subr.bf16.mxu0 0
      %3507 = vmatpush1.bf16.msra.mxu0 0
      %3508 = vmatprep.mubr.bf16.mxu0 0
      %3509 = vmatmul.mubr.bf16.gmra.mrb[0].mxu0 %v3465
      %v3510 = vpop.f32.mrb[0].mxu0
      %v3511 = vadd.f32 %v3450, %v3510
      %v3512 = vpop.f32.mrb[0].mxu0
      %v3513 = vpop.f32.mrb[0].mxu0
      %v3514 = vadd.f32 %v3450, %v3513
      %v3515 = vpop.f32.mrb[0].mxu0
      %3516 = vmatprep.mubr.bf16.mxu0 0
      %3517 = vmatmul.mubr.bf16.gmra.mrb[0].mxu0 %v3468
      %v3518 = vpop.f32.mrb[0].mxu0
      %v3519 = vadd.f32 %v3450, %v3518
      %v3520 = vpop.f32.mrb[0].mxu0
      %v3521 = vpop.f32.mrb[0].mxu0
      %v3522 = vadd.f32 %v3450, %v3521
      %v3523 = vpop.f32.mrb[0].mxu0
      %3524 = vmatprep.mubr.bf16.mxu0 0
      %3525 = vmatmul.mubr.bf16.gmra.mrb[0].mxu0 %v3471
      %v3526 = vpop.f32.mrb[0].mxu0
      %v3527 = vadd.f32 %v3450, %v3526
      %v3528 = vpop.f32.mrb[0].mxu0
      %v3529 = vpop.f32.mrb[0].mxu0
      %v3530 = vadd.f32 %v3450, %v3529
      %v3531 = vpop.f32.mrb[0].mxu0
      %3532 = vmatprep.mubr.bf16.mxu0 0
      %3533 = vmatmul.mubr.bf16.gmra.mrb[0].mxu0 %v3474
      %v3534 = vpop.f32.mrb[0].mxu0
      %v3535 = vadd.f32 %v3450, %v3534
      %v3536 = vpop.f32.mrb[0].mxu0
      %v3537 = vpop.f32.mrb[0].mxu0
      %v3538 = vadd.f32 %v3450, %v3537
      %v3539 = vpop.f32.mrb[0].mxu0
      %3540 = vdwg.mxu0
      %v3541 = vmul.f32 %v3511, %v577
      %v3542 = vmul.f32 %v3514, %v578
      %v3543 = vmul.f32 %v3519, %v579
      %v3544 = vmul.f32 %v3522, %v580
      %v3545 = vmul.f32 %v3527, %v581
      %v3546 = vmul.f32 %v3530, %v582
      %v3547 = vmul.f32 %v3535, %v583
      %v3548 = vmul.f32 %v3538, %v584
      %v3549 = vld [vmem:[%s15] sm:$0xf]
      %v3550 = vld [vmem:[%s15 + $0x4] sm:$0xf]
      %v3551 = vld [vmem:[%s15 + $0x8] sm:$0xf]
      %v3552 = vld [vmem:[%s15 + $0xc] sm:$0xf]
      %v3553 = vld [vmem:[%s16] sm:$0x1]
      %v3555 = vlaneseq
      %v3556 = vshrl.u32 %v3555, 7
      %v3557 = vsub.s32 0, %v3556
      %v3558 = vrot.slane %v3553, %v3557
      %v3564 = vunpack.c.l.b16 %v3549
      %v3565 = vunpack.c.l.b16 %v3550
      %v3566 = vunpack.c.l.b16 %v3551
      %v3567 = vunpack.c.l.b16 %v3552
      %v3568 = vpack.c.b16 %v3565, %v3564
      %v3569 = vpack.c.b16 %v3567, %v3566
      %3572 = vmatprep.subr.bf16.mxu0 0
      %3573 = vmatpush1.bf16.msra.mxu0 %v3568
      %3574 = vmatprep.subr.bf16.mxu0 0
      %3575 = vmatpush1.bf16.msra.mxu0 %v3569
      %3576 = vmatprep.subr.bf16.mxu0 0
      %3577 = vmatpush1.bf16.msra.mxu0 0
      %3578 = vmatprep.subr.bf16.mxu0 0
      %3579 = vmatpush1.bf16.msra.mxu0 0
      %3580 = vmatprep.subr.bf16.mxu0 0
      %3581 = vmatpush1.bf16.msra.mxu0 0
      %3582 = vmatprep.subr.bf16.mxu0 0
      %3583 = vmatpush1.bf16.msra.mxu0 0
      %3584 = vmatprep.subr.bf16.mxu0 0
      %3585 = vmatpush1.bf16.msra.mxu0 0
      %3586 = vmatprep.subr.bf16.mxu0 0
      %3587 = vmatpush1.bf16.msra.mxu0 0
      %3588 = vmatprep.subr.bf16.mxu0 0
      %3589 = vmatpush1.bf16.msra.mxu0 0
      %3590 = vmatprep.subr.bf16.mxu0 0
      %3591 = vmatpush1.bf16.msra.mxu0 0
      %3592 = vmatprep.subr.bf16.mxu0 0
      %3593 = vmatpush1.bf16.msra.mxu0 0
      %3594 = vmatprep.subr.bf16.mxu0 0
      %3595 = vmatpush1.bf16.msra.mxu0 0
      %3596 = vmatprep.subr.bf16.mxu0 0
      %3597 = vmatpush1.bf16.msra.mxu0 0
      %3598 = vmatprep.subr.bf16.mxu0 0
      %3599 = vmatpush1.bf16.msra.mxu0 0
      %3600 = vmatprep.subr.bf16.mxu0 0
      %3601 = vmatpush1.bf16.msra.mxu0 0
      %3602 = vmatprep.subr.bf16.mxu0 0
      %3603 = vmatpush1.bf16.msra.mxu0 0
      %3604 = vmatprep.mubr.bf16.mxu0 0
      %3605 = vmatmul.mubr.bf16.gmra.mrb[0].mxu0 %v3465
      %v3606 = vpop.f32.mrb[0].mxu0
      %v3607 = vadd.f32 %v3558, %v3606
      %v3608 = vpop.f32.mrb[0].mxu0
      %v3609 = vpop.f32.mrb[0].mxu0
      %v3610 = vadd.f32 %v3558, %v3609
      %v3611 = vpop.f32.mrb[0].mxu0
      %3612 = vmatprep.mubr.bf16.mxu0 0
      %3613 = vmatmul.mubr.bf16.gmra.mrb[0].mxu0 %v3468
      %v3614 = vpop.f32.mrb[0].mxu0
      %v3615 = vadd.f32 %v3558, %v3614
      %v3616 = vpop.f32.mrb[0].mxu0
      %v3617 = vpop.f32.mrb[0].mxu0
      %v3618 = vadd.f32 %v3558, %v3617
      %v3619 = vpop.f32.mrb[0].mxu0
      %3620 = vmatprep.mubr.bf16.mxu0 0
      %3621 = vmatmul.mubr.bf16.gmra.mrb[0].mxu0 %v3471
      %v3622 = vpop.f32.mrb[0].mxu0
      %v3623 = vadd.f32 %v3558, %v3622
      %v3624 = vpop.f32.mrb[0].mxu0
      %v3625 = vpop.f32.mrb[0].mxu0
      %v3626 = vadd.f32 %v3558, %v3625
      %v3627 = vpop.f32.mrb[0].mxu0
      %3628 = vmatprep.mubr.bf16.mxu0 0
      %3629 = vmatmul.mubr.bf16.gmra.mrb[0].mxu0 %v3474
      %v3630 = vpop.f32.mrb[0].mxu0
      %v3631 = vadd.f32 %v3558, %v3630
      %v3632 = vpop.f32.mrb[0].mxu0
      %v3633 = vpop.f32.mrb[0].mxu0
      %v3634 = vadd.f32 %v3558, %v3633
      %v3635 = vpop.f32.mrb[0].mxu0
      %3636 = vdwg.mxu0
      %v3637 = vmul.f32 %v3607, %v577
      %v3638 = vmul.f32 %v3610, %v578
      %v3639 = vmul.f32 %v3615, %v579
      %v3640 = vmul.f32 %v3618, %v580
      %v3641 = vmul.f32 %v3623, %v581
      %v3642 = vmul.f32 %v3626, %v582
      %v3643 = vmul.f32 %v3631, %v583
      %v3644 = vmul.f32 %v3634, %v584
      %v3645 = vld [vmem:[%s543] sm:$0xff]
      %v3646 = vld [vmem:[%s543 + $0x8] sm:$0xff]
      %v3647 = vld [vmem:[%s543 + $0x10] sm:$0xff]
      %v3648 = vld [vmem:[%s543 + $0x18] sm:$0xff]
      %v3649 = vld [vmem:[%s543 + $0x20] sm:$0xff]
      %v3650 = vld [vmem:[%s543 + $0x28] sm:$0xff]
      %v3651 = vld [vmem:[%s543 + $0x30] sm:$0xff]
      %v3652 = vld [vmem:[%s543 + $0x38] sm:$0xff]
      %v3653 = vmul.f32 %v3637, 1.442695
      %v3654 = vpow.pop %v3653
      %v3655 = vmul.f32 %v3638, 1.442695
      %v3656 = vpow.pop %v3655
      %v3657 = vmul.f32 %v3639, 1.442695
      %v3658 = vpow.pop %v3657
      %v3659 = vmul.f32 %v3640, 1.442695
      %v3660 = vpow.pop %v3659
      %v3661 = vmul.f32 %v3641, 1.442695
      %v3662 = vpow.pop %v3661
      %v3663 = vmul.f32 %v3642, 1.442695
      %v3664 = vpow.pop %v3663
      %v3665 = vmul.f32 %v3643, 1.442695
      %v3666 = vpow.pop %v3665
      %v3667 = vmul.f32 %v3644, 1.442695
      %v3668 = vpow.pop %v3667
      %v3669 = vmul.f32 %v3645, %v3654
      %v3670 = vmul.f32 %v3646, %v3656
      %v3671 = vmul.f32 %v3647, %v3658
      %v3672 = vmul.f32 %v3648, %v3660
      %v3673 = vmul.f32 %v3649, %v3662
      %v3674 = vmul.f32 %v3650, %v3664
      %v3675 = vmul.f32 %v3651, %v3666
      %v3676 = vmul.f32 %v3652, %v3668
      %v3677 = vadd.f32 %v3541, %v3669
      %v3678 = vadd.f32 %v3542, %v3670
      %v3679 = vadd.f32 %v3543, %v3671
      %v3680 = vadd.f32 %v3544, %v3672
      %v3681 = vadd.f32 %v3545, %v3673
      %v3682 = vadd.f32 %v3546, %v3674
      %v3683 = vadd.f32 %v3547, %v3675
      %v3684 = vadd.f32 %v3548, %v3676
      %v3685 = vmul.f32 %v3677, %v577
      %v3686 = vmul.f32 %v3678, %v578
      %v3687 = vmul.f32 %v3679, %v579
      %v3688 = vmul.f32 %v3680, %v580
      %v3689 = vmul.f32 %v3681, %v581
      %v3690 = vmul.f32 %v3682, %v582
      %v3691 = vmul.f32 %v3683, %v583
      %v3692 = vmul.f32 %v3684, %v584
      %3701 = vrot.lane.b32.xlu0 %v3541, 4
      %v3702 = vpop.permute.xlu0 %3701
      %3703 = vrot.lane.b32.xlu0 %v3542, 4
      %v3704 = vpop.permute.xlu0 %3703
      %3705 = vrot.lane.b32.xlu0 %v3543, 4
      %v3706 = vpop.permute.xlu0 %3705
      %3707 = vrot.lane.b32.xlu0 %v3544, 4
      %v3708 = vpop.permute.xlu0 %3707
      %3709 = vrot.lane.b32.xlu0 %v3545, 4
      %v3710 = vpop.permute.xlu0 %3709
      %3711 = vrot.lane.b32.xlu0 %v3546, 4
      %v3712 = vpop.permute.xlu0 %3711
      %3713 = vrot.lane.b32.xlu0 %v3547, 4
      %v3714 = vpop.permute.xlu0 %3713
      %3715 = vrot.lane.b32.xlu0 %v3548, 4
      %v3716 = vpop.permute.xlu0 %3715
      %3733 = vrot.lane.b32.xlu0 %v3637, 8
      %v3734 = vpop.permute.xlu0 %3733
      %3735 = vrot.lane.b32.xlu0 %v3638, 8
      %v3736 = vpop.permute.xlu0 %3735
      %3737 = vrot.lane.b32.xlu0 %v3639, 8
      %v3738 = vpop.permute.xlu0 %3737
      %3739 = vrot.lane.b32.xlu0 %v3640, 8
      %v3740 = vpop.permute.xlu0 %3739
      %3741 = vrot.lane.b32.xlu0 %v3641, 8
      %v3742 = vpop.permute.xlu0 %3741
      %3743 = vrot.lane.b32.xlu0 %v3642, 8
      %v3744 = vpop.permute.xlu0 %3743
      %3745 = vrot.lane.b32.xlu0 %v3643, 8
      %v3746 = vpop.permute.xlu0 %3745
      %3747 = vrot.lane.b32.xlu0 %v3644, 8
      %v3748 = vpop.permute.xlu0 %3747
      %vm3757 = vcmask 31744
      %v3758 = vsel %vm3757, %v3685, %v3702
      %v3759 = vsel %vm3757, %v3686, %v3704
      %v3760 = vsel %vm3757, %v3687, %v3706
      %v3761 = vsel %vm3757, %v3688, %v3708
      %v3762 = vsel %vm3757, %v3689, %v3710
      %v3763 = vsel %vm3757, %v3690, %v3712
      %v3764 = vsel %vm3757, %v3691, %v3714
      %v3765 = vsel %vm3757, %v3692, %v3716
      %v3766 = vsel %vm621, %v3758, %v3734
      %v3767 = vsel %vm621, %v3759, %v3736
      %v3768 = vsel %vm621, %v3760, %v3738
      %v3769 = vsel %vm621, %v3761, %v3740
      %v3770 = vsel %vm621, %v3762, %v3742
      %v3771 = vsel %vm621, %v3763, %v3744
      %v3772 = vsel %vm621, %v3764, %v3746
      %v3773 = vsel %vm621, %v3765, %v3748
      %vm3774 = vcmask 97280
      %3775 = vst.msk [vmem:[%s548] sm:$0xff] %vm3774, %v3766
      %3776 = vst.msk [vmem:[%s548 + $0x8] sm:$0xff] %vm3774, %v3767
      %3777 = vst.msk [vmem:[%s548 + $0x10] sm:$0xff] %vm3774, %v3768
      %3778 = vst.msk [vmem:[%s548 + $0x18] sm:$0xff] %vm3774, %v3769
      %3779 = vst.msk [vmem:[%s548 + $0x20] sm:$0xff] %vm3774, %v3770
      %3780 = vst.msk [vmem:[%s548 + $0x28] sm:$0xff] %vm3774, %v3771
      %3781 = vst.msk [vmem:[%s548 + $0x30] sm:$0xff] %vm3774, %v3772
      %3782 = vst.msk [vmem:[%s548 + $0x38] sm:$0xff] %vm3774, %v3773
      %p3783 = scmp.lt.s32.totalorder %s34, 1
      %s3784 = scalar_select %p3783, %s34, 1
      %s3785 = smul.addr %s3784, 8
      %s3786 = smul.addr %s3785, 8
      %s3787 = scalar_lea.vmem %s17, %s3786
      // Predicated region
      $region85: #{tpu_custom_call.1} parent=83 // pred_check
        %p3788 = pneg %p398
      $region86: #{tpu_custom_call.1} parent=83 // pred_check_branch
        %3790 = sbr.rel (%p3788) target = $region88
      $region87: #{tpu_custom_call.1} parent=83 // pred_region
        _
      $region88: #{tpu_custom_call.1} parent=83 // pred_fallthru
        _
    $region84: #{tpu_custom_call.1} parent=5 // pred_fallthru
      _
    %p3791 = scmp.le.s32.totalorder 2, %s29
    // Predicated region
    $region89: #{tpu_custom_call.1} parent=5 // pred_check
      %p3792 = pneg %p3791
    $region90: #{tpu_custom_call.1} parent=5 // pred_check_branch
      %3794 = sbr.rel (%p3792) target = $region92
    $region91: #{tpu_custom_call.1} parent=5 // pred_region
      %s3795 = ssub.s32 %s29, 2
      // Predicated region
      $region93: #{tpu_custom_call.1} parent=91 // pred_check
        %p3796 = pneg %p404
      $region94: #{tpu_custom_call.1} parent=91 // pred_check_branch
        %3798 = sbr.rel (%p3796) target = $region96
      $region95: #{tpu_custom_call.1} parent=91 // pred_region
        %p3799 = scmp.lt.s32.totalorder %s35, 1
        %s3800 = scalar_select %p3799, %s35, 1
        %s3801 = smul.addr %s3800, 8
        %s3802 = smul.addr %s3801, 8
        %s3803 = scalar_lea.vmem %s17, %s3802
      $region96: #{tpu_custom_call.1} parent=91 // pred_fallthru
        _
    $region92: #{tpu_custom_call.1} parent=5 // pred_fallthru
      _
  $region6: #{tpu_custom_call.1} parent=0 // loop_footer
    %s33 = sadd.s32 1, %s29
  $region7: #{tpu_custom_call.1} parent=0 // loop_footer_branch
    %28 = sbr.rel target = $region3
  $region8: #{tpu_custom_call.1} parent=0 // loop_exit
    _

</llo_original>
